<compile_context>
chip_gen: v5e
topology: v5e:2x2
jax: 0.10.0
libtpu: 0.0.40
codegen_flags: <defaults>
</compile_context>

<pallas_src>
import numpy as np

import jax
import jax.numpy as jnp
from jax.experimental import pallas as pl
from jax.experimental.pallas import tpu as pltpu


# ----------------------------------------------------------------------------
# Pallas kernels
# ----------------------------------------------------------------------------
def _conv_stack_kernel(xs_ref, w1_ref, b1_ref, w2_ref, b2_ref, o_ref):
    """Fused conv1+ReLU+pool+conv2+ReLU+pool for ONE image.

    xs_ref : (1, 8, 8, 48)  space-to-depth (4x4 blocks) input image,
                            lane index = (dy*4 + dx)*3 + c
    w1_ref : (192, 128)     phase-packed conv1 weights
                            row  k   = (p*2+q)*48 + (dy*4+dx)*3 + c
                            col      = (a*2+b)*32 + (alpha*2+beta)*8 + o  (o<6)
    b1_ref : (1, 128)
    w2_ref : (288, 64)      phase-packed conv2 weights
                            row  k   = (p*3+q)*32 + (alpha*2+beta)*8 + c  (c<6)
                            col      = (a*2+b)*16 + o                     (o<16)
    b2_ref : (1, 64)
    o_ref  : (1, 25, 16)    pooled conv2 features, row = h*5 + w, lane = channel
    """
    xs = xs_ref[0]                                        # (8, 8, 48)

    # ---- conv1 + ReLU + 2x2 maxpool, emitted in space-to-depth(2) form -----
    # c1_rows[r][J, (alpha*2+beta)*8 + o] = pool1[2r+alpha, 2J+beta, o]
    c1_rows = []
    for r in range(7):
        y = b1_ref[...]                                   # (1,128) -> broadcast
        for idx, (p, q) in enumerate(((0, 0), (0, 1), (1, 0), (1, 1))):
            piece = xs[r + p, q:q + 7, :]                 # (7, 48)  static slice
            wblk = w1_ref[idx * 48:(idx + 1) * 48, :]     # (48, 128)
            y = y + jnp.dot(piece, wblk, preferred_element_type=jnp.float32)
        y = jnp.maximum(y, 0.0)                           # ReLU, (7, 128)
        # max over the 4 pool phases (a,b) = lane blocks of width 32
        c1 = jnp.maximum(jnp.maximum(y[:, 0:32], y[:, 32:64]),
                         jnp.maximum(y[:, 64:96], y[:, 96:128]))  # (7, 32)
        c1_rows.append(c1)

    # ---- conv2 + ReLU + 2x2 maxpool ----------------------------------------
    for i2 in range(5):
        y = b2_ref[...]                                   # (1, 64) -> broadcast
        idx = 0
        for p in range(3):
            for q in range(3):
                piece = c1_rows[i2 + p][q:q + 5, :]          # (5, 32)
                wblk = w2_ref[idx * 32:(idx + 1) * 32, :]    # (32, 64)
                y = y + jnp.dot(piece, wblk,
                                preferred_element_type=jnp.float32)
                idx += 1
        y = jnp.maximum(y, 0.0)                           # ReLU, (5, 64)
        out5 = jnp.maximum(jnp.maximum(y[:, 0:16], y[:, 16:32]),
                           jnp.maximum(y[:, 32:48], y[:, 48:64]))  # (5, 16)
        o_ref[0, i2 * 5:(i2 + 1) * 5, :] = out5.astype(o_ref.dtype)


def _fc_stack_kernel(x_ref, w1_ref, b1_ref, w2_ref, b2_ref, w3_ref, b3_ref,
                     o_ref):
    """Fused fc1+ReLU+fc2+ReLU+fc3+log_softmax on a (TM, 400) row tile."""
    h = jnp.dot(x_ref[...], w1_ref[...],
                preferred_element_type=jnp.float32) + b1_ref[...]
    h = jnp.maximum(h, 0.0)                                        # (TM, 128)
    h = jnp.dot(h, w2_ref[...],
                preferred_element_type=jnp.float32) + b2_ref[...]
    h = jnp.maximum(h, 0.0)                                        # (TM, 128)
    z = jnp.dot(h, w3_ref[...],
                preferred_element_type=jnp.float32) + b3_ref[...]  # (TM, 100)
    m = jnp.max(z, axis=1, keepdims=True)
    s = z - m
    lse = jnp.log(jnp.sum(jnp.exp(s), axis=1, keepdims=True))
    o_ref[...] = (s - lse).astype(o_ref.dtype)


# ----------------------------------------------------------------------------
# Pallas wrappers
# ----------------------------------------------------------------------------
def conv_stack_pallas(xs, pk):
    n = xs.shape[0]
    flops = 2 * n * (7 * 4 * 7 * 48 * 128 + 5 * 9 * 5 * 32 * 64)
    bytes_accessed = 4 * (n * (8 * 8 * 48 + 25 * 16)
                          + 192 * 128 + 128 + 288 * 64 + 64)
    return pl.pallas_call(
        _conv_stack_kernel,
        out_shape=jax.ShapeDtypeStruct((n, 25, 16), jnp.float32),
        grid=(n,),
        in_specs=[
            pl.BlockSpec((1, 8, 8, 48), lambda i: (i, 0, 0, 0)),
            pl.BlockSpec((192, 128), lambda i: (0, 0)),
            pl.BlockSpec((1, 128), lambda i: (0, 0)),
            pl.BlockSpec((288, 64), lambda i: (0, 0)),
            pl.BlockSpec((1, 64), lambda i: (0, 0)),
        ],
        out_specs=pl.BlockSpec((1, 25, 16), lambda i: (i, 0, 0)),
        compiler_params=pltpu.CompilerParams(
            dimension_semantics=("parallel",)),
        cost_estimate=pl.CostEstimate(flops=flops, transcendentals=0,
                                      bytes_accessed=bytes_accessed),
    )(xs, pk["c1w"], pk["c1b"], pk["c2w"], pk["c2b"])


def fc_stack_pallas(feat, pk):
    n = feat.shape[0]
    tm = 256 if n > 256 else n
    n_pad = ((n + tm - 1) // tm) * tm
    if n_pad != n:
        feat = jnp.pad(feat, ((0, n_pad - n), (0, 0)))
    flops = 2 * n_pad * (400 * 128 + 128 * 128 + 128 * 100)
    bytes_accessed = 4 * (n_pad * (400 + 100)
                          + 400 * 128 + 128 + 128 * 128 + 128 + 128 * 100 + 100)
    out = pl.pallas_call(
        _fc_stack_kernel,
        out_shape=jax.ShapeDtypeStruct((n_pad, 100), jnp.float32),
        grid=(n_pad // tm,),
        in_specs=[
            pl.BlockSpec((tm, 400), lambda i: (i, 0)),
            pl.BlockSpec((400, 128), lambda i: (0, 0)),
            pl.BlockSpec((1, 128), lambda i: (0, 0)),
            pl.BlockSpec((128, 128), lambda i: (0, 0)),
            pl.BlockSpec((1, 128), lambda i: (0, 0)),
            pl.BlockSpec((128, 100), lambda i: (0, 0)),
            pl.BlockSpec((1, 100), lambda i: (0, 0)),
        ],
        out_specs=pl.BlockSpec((tm, 100), lambda i: (i, 0)),
        compiler_params=pltpu.CompilerParams(
            dimension_semantics=("parallel",)),
        cost_estimate=pl.CostEstimate(flops=flops,
                                      transcendentals=101 * n_pad,
                                      bytes_accessed=bytes_accessed),
    )(feat, pk["f1w"], pk["f1b"], pk["f2w"], pk["f2b"], pk["f3w"], pk["f3b"])
    return out[:n] if n_pad != n else out


# ----------------------------------------------------------------------------
# Parameter init (PyTorch layout) + one-time repacking for the kernels
# ----------------------------------------------------------------------------
def init_params(key):
    """Deterministic init mimicking PyTorch's default U(-1/sqrt(fan_in), +)."""
    def u(key, shape, fan_in):
        bound = 1.0 / np.sqrt(float(fan_in))
        return jax.random.uniform(key, shape, jnp.float32, -bound, bound)

    ks = jax.random.split(key, 10)
    return {
        "conv1_w": u(ks[0], (6, 3, 5, 5), 3 * 5 * 5),
        "conv1_b": u(ks[1], (6,), 3 * 5 * 5),
        "conv2_w": u(ks[2], (16, 6, 5, 5), 6 * 5 * 5),
        "conv2_b": u(ks[3], (16,), 6 * 5 * 5),
        "fc1_w": u(ks[4], (120, 400), 400),
        "fc1_b": u(ks[5], (120,), 400),
        "fc2_w": u(ks[6], (84, 120), 120),
        "fc2_b": u(ks[7], (84,), 120),
        "fc3_w": u(ks[8], (100, 84), 84),
        "fc3_b": u(ks[9], (100,), 84),
    }


def pack_params(p):
    """One-time repack of PyTorch-layout params into kernel-friendly matrices."""
    w1 = np.asarray(p["conv1_w"], np.float32)       # (6, 3, 5, 5)
    b1 = np.asarray(p["conv1_b"], np.float32)
    w2 = np.asarray(p["conv2_w"], np.float32)       # (16, 6, 5, 5)
    b2 = np.asarray(p["conv2_b"], np.float32)

    # conv1 phase-packed weight: (192, 128).
    # Row k = (p*2+q)*48 + (dy*4+dx)*3 + c corresponds to raw pixel
    # x[4r + 4p+dy, 4J + 4q+dx, c]; column = (a*2+b)*32 + (alpha*2+beta)*8 + o
    # holds conv1_w[o, c, u-(2*alpha+a), v-(2*beta+b)] (zero outside the 5x5).
    W1 = np.zeros((192, 128), np.float32)
    B1 = np.zeros((1, 128), np.float32)
    w1_t = w1.transpose(2, 3, 1, 0)                 # (di, dj, c, o)
    for alpha in range(2):
        for beta in range(2):
            for a in range(2):
                for b in range(2):
                    col0 = (a * 2 + b) * 32 + (alpha * 2 + beta) * 8
                    off_i, off_j = 2 * alpha + a, 2 * beta + b
                    emb = np.zeros((8, 8, 3, 6), np.float32)   # (u, v, c, o)
                    emb[off_i:off_i + 5, off_j:off_j + 5] = w1_t
                    k = emb.reshape(2, 4, 2, 4, 3, 6)          # (p,dy,q,dx,c,o)
                    k = k.transpose(0, 2, 1, 3, 4, 5)          # (p,q,dy,dx,c,o)
                    W1[:, col0:col0 + 6] = k.reshape(192, 6)
                    B1[0, col0:col0 + 6] = b1

    # conv2 phase-packed weight: (288, 64).
    # Row k = (p*3+q)*32 + (alpha*2+beta)*8 + c corresponds to
    # pool1[2i''+2p+alpha, 2j''+2q+beta, c]; column = (a*2+b)*16 + o.
    W2 = np.zeros((288, 64), np.float32)
    B2 = np.zeros((1, 64), np.float32)
    w2_t = w2.transpose(2, 3, 1, 0)                 # (di, dj, c, o)
    for a in range(2):
        for b in range(2):
            col0 = (a * 2 + b) * 16
            emb = np.zeros((6, 6, 8, 16), np.float32)          # (U, V, c8, o)
            emb[a:a + 5, b:b + 5, :6, :] = w2_t
            k = emb.reshape(3, 2, 3, 2, 8, 16)                 # (p,al,q,be,c,o)
            k = k.transpose(0, 2, 1, 3, 4, 5)                  # (p,q,al,be,c,o)
            W2[:, col0:col0 + 16] = k.reshape(288, 16)
            B2[0, col0:col0 + 16] = b2

    # FC weights: permute fc1's 400 columns from PyTorch's (c,h,w) flatten to
    # the kernel's (h,w,c) flatten, transpose all to (in, out), pad to 128.
    f1w = np.asarray(p["fc1_w"], np.float32)
    f2w = np.asarray(p["fc2_w"], np.float32)
    f3w = np.asarray(p["fc3_w"], np.float32)
    W1p = f1w.reshape(120, 16, 5, 5).transpose(2, 3, 1, 0).reshape(400, 120)

    FC1 = np.zeros((400, 128), np.float32); FC1[:, :120] = W1p
    FB1 = np.zeros((1, 128), np.float32);   FB1[0, :120] = np.asarray(p["fc1_b"])
    FC2 = np.zeros((128, 128), np.float32); FC2[:120, :84] = f2w.T
    FB2 = np.zeros((1, 128), np.float32);   FB2[0, :84] = np.asarray(p["fc2_b"])
    FC3 = np.zeros((128, 100), np.float32); FC3[:84, :] = f3w.T
    FB3 = np.asarray(p["fc3_b"], np.float32).reshape(1, 100)

    return {k: jnp.asarray(v) for k, v in {
        "c1w": W1, "c1b": B1, "c2w": W2, "c2b": B2,
        "f1w": FC1, "f1b": FB1, "f2w": FC2, "f2b": FB2,
        "f3w": FC3, "f3b": FB3,
    }.items()}


# ----------------------------------------------------------------------------
# Forward pass
# ----------------------------------------------------------------------------
@jax.jit
def cnn_cifar_forward(packed, x):
    # layout: x is NCHW float32, (N, 3, 32, 32)
    n = x.shape[0]
    # NCHW -> NHWC -> space-to-depth with 4x4 blocks: (N, 8, 8, 48),
    # lane index = (dy*4 + dx)*3 + c.  (cheap one-time glue on the raw input)
    xs = x.transpose(0, 2, 3, 1).reshape(n, 8, 4, 8, 4, 3)
    xs = xs.transpose(0, 1, 3, 2, 4, 5).reshape(n, 8, 8, 48)
    feat = conv_stack_pallas(xs, packed)         # (N, 25, 16), row = h*5 + w
    feat = feat.reshape(n, 400)                  # flatten order (h, w, c)
    return fc_stack_pallas(feat, packed)         # (N, 100) log-probabilities


# ----------------------------------------------------------------------------
# Pure-JAX reference (correctness sanity check against the raw params)
# ----------------------------------------------------------------------------
def _reference_forward(params, x):
    def conv(x, w, b):
        y = jax.lax.conv_general_dilated(
            x, w, window_strides=(1, 1), padding="VALID",
            dimension_numbers=("NCHW", "OIHW", "NCHW"))
        return jax.nn.relu(y + b[None, :, None, None])

    def pool(x):
        return jax.lax.reduce_window(
            x, -jnp.inf, jax.lax.max, (1, 1, 2, 2), (1, 1, 2, 2), "VALID")

    h = pool(conv(x, params["conv1_w"], params["conv1_b"]))
    h = pool(conv(h, params["conv2_w"], params["conv2_b"]))
    h = h.reshape(h.shape[0], 400)
    h = jax.nn.relu(h @ params["fc1_w"].T + params["fc1_b"])
    h = jax.nn.relu(h @ params["fc2_w"].T + params["fc2_b"])
    z = h @ params["fc3_w"].T + params["fc3_b"]
    return jax.nn.log_softmax(z, axis=1)


if __name__ == "__main__":
    key = jax.random.PRNGKey(0)
    pkey, xkey = jax.random.split(key)
    raw_params = init_params(pkey)
    packed = pack_params(raw_params)

    # CIFAR-shaped input (the flatten to 16*5*5 requires 32x32 spatial).
    x = jax.random.normal(xkey, (2, 3, 32, 32), dtype=jnp.float32)

    out = jax.block_until_ready(cnn_cifar_forward(packed, x))
    assert out.shape == (2, 100), out.shape

    ref = _reference_forward(raw_params, x)
    err = float(jnp.max(jnp.abs(out - ref)))
    assert err < 1e-3, err

    print("KERNEL_OK")
</pallas_src>

<mosaic_0001>
module attributes {stable_mosaic.version = 11 : i64} {
  func.func @_conv_stack_kernel(%arg0: i32, %arg1: memref<1x8x8x48xf32, #tpu.memory_space<vmem>>, %arg2: memref<192x128xf32, #tpu.memory_space<vmem>>, %arg3: memref<1x128xf32, #tpu.memory_space<vmem>>, %arg4: memref<288x64xf32, #tpu.memory_space<vmem>>, %arg5: memref<1x64xf32, #tpu.memory_space<vmem>>, %arg6: memref<1x25x16xf32, #tpu.memory_space<vmem>>) attributes {dimension_semantics = [#tpu.dimension_semantics<parallel>], iteration_bounds = array<i64: 2>, scalar_prefetch = 0 : i64, scratch_operands = 0 : i64, tpu.core_type = #tpu.core_type<tc>, window_params = [{transform_indices = @transform_0, window_bounds = array<i64: 1, 8, 8, 48>}, {pipeline_mode = #tpu.pipeline_mode<synchronous>, transform_indices = @transform_1, window_bounds = array<i64: 192, 128>}, {pipeline_mode = #tpu.pipeline_mode<synchronous>, transform_indices = @transform_2, window_bounds = array<i64: 1, 128>}, {pipeline_mode = #tpu.pipeline_mode<synchronous>, transform_indices = @transform_3, window_bounds = array<i64: 288, 64>}, {pipeline_mode = #tpu.pipeline_mode<synchronous>, transform_indices = @transform_4, window_bounds = array<i64: 1, 64>}, {transform_indices = @transform_5, window_bounds = array<i64: 1, 25, 16>}]} {
    %c0 = arith.constant 0 : index
    %c0_0 = arith.constant 0 : index
    %c0_1 = arith.constant 0 : index
    %c0_2 = arith.constant 0 : index
    %0 = vector.load %arg1[%c0, %c0_0, %c0_1, %c0_2] : memref<1x8x8x48xf32, #tpu.memory_space<vmem>>, vector<1x8x8x48xf32>
    %1 = vector.shape_cast %0 : vector<1x8x8x48xf32> to vector<8x8x48xf32>
    %c0_3 = arith.constant 0 : index
    %c0_4 = arith.constant 0 : index
    %2 = vector.load %arg3[%c0_3, %c0_4] : memref<1x128xf32, #tpu.memory_space<vmem>>, vector<1x128xf32>
    %3 = vector.extract_strided_slice %1 {offsets = [0, 0, 0], sizes = [1, 7, 48], strides = [1, 1, 1]} : vector<8x8x48xf32> to vector<1x7x48xf32>
    %4 = vector.shape_cast %3 : vector<1x7x48xf32> to vector<7x48xf32>
    %c0_5 = arith.constant 0 : index
    %c0_6 = arith.constant 0 : index
    %5 = vector.load %arg2[%c0_5, %c0_6] : memref<192x128xf32, #tpu.memory_space<vmem>>, vector<48x128xf32>
    %cst = arith.constant dense<0.000000e+00> : vector<7x128xf32>
    %6 = tpu.matmul %4, %5, %cst {dimension_numbers = #tpu.dot_dimension_numbers<[1], [0], [0], [1], [0, 0, 1, 1], [], []>} : vector<7x48xf32>, vector<48x128xf32>, vector<7x128xf32> -> vector<7x128xf32>
    %7 = vector.broadcast %2 : vector<1x128xf32> to vector<7x128xf32>
    %8 = arith.addf %7, %6 : vector<7x128xf32>
    %9 = vector.extract_strided_slice %1 {offsets = [0, 1, 0], sizes = [1, 7, 48], strides = [1, 1, 1]} : vector<8x8x48xf32> to vector<1x7x48xf32>
    %10 = vector.shape_cast %9 : vector<1x7x48xf32> to vector<7x48xf32>
    %c48 = arith.constant 48 : index
    %c0_7 = arith.constant 0 : index
    %11 = vector.load %arg2[%c48, %c0_7] : memref<192x128xf32, #tpu.memory_space<vmem>>, vector<48x128xf32>
    %cst_8 = arith.constant dense<0.000000e+00> : vector<7x128xf32>
    %12 = tpu.matmul %10, %11, %cst_8 {dimension_numbers = #tpu.dot_dimension_numbers<[1], [0], [0], [1], [0, 0, 1, 1], [], []>} : vector<7x48xf32>, vector<48x128xf32>, vector<7x128xf32> -> vector<7x128xf32>
    %13 = arith.addf %8, %12 : vector<7x128xf32>
    %14 = vector.extract_strided_slice %1 {offsets = [1, 0, 0], sizes = [1, 7, 48], strides = [1, 1, 1]} : vector<8x8x48xf32> to vector<1x7x48xf32>
    %15 = vector.shape_cast %14 : vector<1x7x48xf32> to vector<7x48xf32>
    %c96 = arith.constant 96 : index
    %c0_9 = arith.constant 0 : index
    %16 = vector.load %arg2[%c96, %c0_9] : memref<192x128xf32, #tpu.memory_space<vmem>>, vector<48x128xf32>
    %cst_10 = arith.constant dense<0.000000e+00> : vector<7x128xf32>
    %17 = tpu.matmul %15, %16, %cst_10 {dimension_numbers = #tpu.dot_dimension_numbers<[1], [0], [0], [1], [0, 0, 1, 1], [], []>} : vector<7x48xf32>, vector<48x128xf32>, vector<7x128xf32> -> vector<7x128xf32>
    %18 = arith.addf %13, %17 : vector<7x128xf32>
    %19 = vector.extract_strided_slice %1 {offsets = [1, 1, 0], sizes = [1, 7, 48], strides = [1, 1, 1]} : vector<8x8x48xf32> to vector<1x7x48xf32>
    %20 = vector.shape_cast %19 : vector<1x7x48xf32> to vector<7x48xf32>
    %c144 = arith.constant 144 : index
    %c0_11 = arith.constant 0 : index
    %21 = vector.load %arg2[%c144, %c0_11] : memref<192x128xf32, #tpu.memory_space<vmem>>, vector<48x128xf32>
    %cst_12 = arith.constant dense<0.000000e+00> : vector<7x128xf32>
    %22 = tpu.matmul %20, %21, %cst_12 {dimension_numbers = #tpu.dot_dimension_numbers<[1], [0], [0], [1], [0, 0, 1, 1], [], []>} : vector<7x48xf32>, vector<48x128xf32>, vector<7x128xf32> -> vector<7x128xf32>
    %23 = arith.addf %18, %22 : vector<7x128xf32>
    %cst_13 = arith.constant 0.000000e+00 : f32
    %24 = vector.broadcast %cst_13 : f32 to vector<7x128xf32>
    %25 = arith.maximumf %23, %24 : vector<7x128xf32>
    %26 = vector.extract_strided_slice %25 {offsets = [0, 0], sizes = [7, 32], strides = [1, 1]} : vector<7x128xf32> to vector<7x32xf32>
    %27 = vector.extract_strided_slice %25 {offsets = [0, 32], sizes = [7, 32], strides = [1, 1]} : vector<7x128xf32> to vector<7x32xf32>
    %28 = arith.maximumf %26, %27 : vector<7x32xf32>
    %29 = vector.extract_strided_slice %25 {offsets = [0, 64], sizes = [7, 32], strides = [1, 1]} : vector<7x128xf32> to vector<7x32xf32>
    %30 = vector.extract_strided_slice %25 {offsets = [0, 96], sizes = [7, 32], strides = [1, 1]} : vector<7x128xf32> to vector<7x32xf32>
    %31 = arith.maximumf %29, %30 : vector<7x32xf32>
    %32 = arith.maximumf %28, %31 : vector<7x32xf32>
    %c0_14 = arith.constant 0 : index
    %c0_15 = arith.constant 0 : index
    %33 = vector.load %arg3[%c0_14, %c0_15] : memref<1x128xf32, #tpu.memory_space<vmem>>, vector<1x128xf32>
    %34 = vector.extract_strided_slice %1 {offsets = [1, 0, 0], sizes = [1, 7, 48], strides = [1, 1, 1]} : vector<8x8x48xf32> to vector<1x7x48xf32>
    %35 = vector.shape_cast %34 : vector<1x7x48xf32> to vector<7x48xf32>
    %c0_16 = arith.constant 0 : index
    %c0_17 = arith.constant 0 : index
    %36 = vector.load %arg2[%c0_16, %c0_17] : memref<192x128xf32, #tpu.memory_space<vmem>>, vector<48x128xf32>
    %cst_18 = arith.constant dense<0.000000e+00> : vector<7x128xf32>
    %37 = tpu.matmul %35, %36, %cst_18 {dimension_numbers = #tpu.dot_dimension_numbers<[1], [0], [0], [1], [0, 0, 1, 1], [], []>} : vector<7x48xf32>, vector<48x128xf32>, vector<7x128xf32> -> vector<7x128xf32>
    %38 = vector.broadcast %33 : vector<1x128xf32> to vector<7x128xf32>
    %39 = arith.addf %38, %37 : vector<7x128xf32>
    %40 = vector.extract_strided_slice %1 {offsets = [1, 1, 0], sizes = [1, 7, 48], strides = [1, 1, 1]} : vector<8x8x48xf32> to vector<1x7x48xf32>
    %41 = vector.shape_cast %40 : vector<1x7x48xf32> to vector<7x48xf32>
    %c48_19 = arith.constant 48 : index
    %c0_20 = arith.constant 0 : index
    %42 = vector.load %arg2[%c48_19, %c0_20] : memref<192x128xf32, #tpu.memory_space<vmem>>, vector<48x128xf32>
    %cst_21 = arith.constant dense<0.000000e+00> : vector<7x128xf32>
    %43 = tpu.matmul %41, %42, %cst_21 {dimension_numbers = #tpu.dot_dimension_numbers<[1], [0], [0], [1], [0, 0, 1, 1], [], []>} : vector<7x48xf32>, vector<48x128xf32>, vector<7x128xf32> -> vector<7x128xf32>
    %44 = arith.addf %39, %43 : vector<7x128xf32>
    %45 = vector.extract_strided_slice %1 {offsets = [2, 0, 0], sizes = [1, 7, 48], strides = [1, 1, 1]} : vector<8x8x48xf32> to vector<1x7x48xf32>
    %46 = vector.shape_cast %45 : vector<1x7x48xf32> to vector<7x48xf32>
    %c96_22 = arith.constant 96 : index
    %c0_23 = arith.constant 0 : index
    %47 = vector.load %arg2[%c96_22, %c0_23] : memref<192x128xf32, #tpu.memory_space<vmem>>, vector<48x128xf32>
    %cst_24 = arith.constant dense<0.000000e+00> : vector<7x128xf32>
    %48 = tpu.matmul %46, %47, %cst_24 {dimension_numbers = #tpu.dot_dimension_numbers<[1], [0], [0], [1], [0, 0, 1, 1], [], []>} : vector<7x48xf32>, vector<48x128xf32>, vector<7x128xf32> -> vector<7x128xf32>
    %49 = arith.addf %44, %48 : vector<7x128xf32>
    %50 = vector.extract_strided_slice %1 {offsets = [2, 1, 0], sizes = [1, 7, 48], strides = [1, 1, 1]} : vector<8x8x48xf32> to vector<1x7x48xf32>
    %51 = vector.shape_cast %50 : vector<1x7x48xf32> to vector<7x48xf32>
    %c144_25 = arith.constant 144 : index
    %c0_26 = arith.constant 0 : index
    %52 = vector.load %arg2[%c144_25, %c0_26] : memref<192x128xf32, #tpu.memory_space<vmem>>, vector<48x128xf32>
    %cst_27 = arith.constant dense<0.000000e+00> : vector<7x128xf32>
    %53 = tpu.matmul %51, %52, %cst_27 {dimension_numbers = #tpu.dot_dimension_numbers<[1], [0], [0], [1], [0, 0, 1, 1], [], []>} : vector<7x48xf32>, vector<48x128xf32>, vector<7x128xf32> -> vector<7x128xf32>
    %54 = arith.addf %49, %53 : vector<7x128xf32>
    %cst_28 = arith.constant 0.000000e+00 : f32
    %55 = vector.broadcast %cst_28 : f32 to vector<7x128xf32>
    %56 = arith.maximumf %54, %55 : vector<7x128xf32>
    %57 = vector.extract_strided_slice %56 {offsets = [0, 0], sizes = [7, 32], strides = [1, 1]} : vector<7x128xf32> to vector<7x32xf32>
    %58 = vector.extract_strided_slice %56 {offsets = [0, 32], sizes = [7, 32], strides = [1, 1]} : vector<7x128xf32> to vector<7x32xf32>
    %59 = arith.maximumf %57, %58 : vector<7x32xf32>
    %60 = vector.extract_strided_slice %56 {offsets = [0, 64], sizes = [7, 32], strides = [1, 1]} : vector<7x128xf32> to vector<7x32xf32>
    %61 = vector.extract_strided_slice %56 {offsets = [0, 96], sizes = [7, 32], strides = [1, 1]} : vector<7x128xf32> to vector<7x32xf32>
    %62 = arith.maximumf %60, %61 : vector<7x32xf32>
    %63 = arith.maximumf %59, %62 : vector<7x32xf32>
    %c0_29 = arith.constant 0 : index
    %c0_30 = arith.constant 0 : index
    %64 = vector.load %arg3[%c0_29, %c0_30] : memref<1x128xf32, #tpu.memory_space<vmem>>, vector<1x128xf32>
    %65 = vector.extract_strided_slice %1 {offsets = [2, 0, 0], sizes = [1, 7, 48], strides = [1, 1, 1]} : vector<8x8x48xf32> to vector<1x7x48xf32>
    %66 = vector.shape_cast %65 : vector<1x7x48xf32> to vector<7x48xf32>
    %c0_31 = arith.constant 0 : index
    %c0_32 = arith.constant 0 : index
    %67 = vector.load %arg2[%c0_31, %c0_32] : memref<192x128xf32, #tpu.memory_space<vmem>>, vector<48x128xf32>
    %cst_33 = arith.constant dense<0.000000e+00> : vector<7x128xf32>
    %68 = tpu.matmul %66, %67, %cst_33 {dimension_numbers = #tpu.dot_dimension_numbers<[1], [0], [0], [1], [0, 0, 1, 1], [], []>} : vector<7x48xf32>, vector<48x128xf32>, vector<7x128xf32> -> vector<7x128xf32>
    %69 = vector.broadcast %64 : vector<1x128xf32> to vector<7x128xf32>
    %70 = arith.addf %69, %68 : vector<7x128xf32>
    %71 = vector.extract_strided_slice %1 {offsets = [2, 1, 0], sizes = [1, 7, 48], strides = [1, 1, 1]} : vector<8x8x48xf32> to vector<1x7x48xf32>
    %72 = vector.shape_cast %71 : vector<1x7x48xf32> to vector<7x48xf32>
    %c48_34 = arith.constant 48 : index
    %c0_35 = arith.constant 0 : index
    %73 = vector.load %arg2[%c48_34, %c0_35] : memref<192x128xf32, #tpu.memory_space<vmem>>, vector<48x128xf32>
    %cst_36 = arith.constant dense<0.000000e+00> : vector<7x128xf32>
    %74 = tpu.matmul %72, %73, %cst_36 {dimension_numbers = #tpu.dot_dimension_numbers<[1], [0], [0], [1], [0, 0, 1, 1], [], []>} : vector<7x48xf32>, vector<48x128xf32>, vector<7x128xf32> -> vector<7x128xf32>
    %75 = arith.addf %70, %74 : vector<7x128xf32>
    %76 = vector.extract_strided_slice %1 {offsets = [3, 0, 0], sizes = [1, 7, 48], strides = [1, 1, 1]} : vector<8x8x48xf32> to vector<1x7x48xf32>
    %77 = vector.shape_cast %76 : vector<1x7x48xf32> to vector<7x48xf32>
    %c96_37 = arith.constant 96 : index
    %c0_38 = arith.constant 0 : index
    %78 = vector.load %arg2[%c96_37, %c0_38] : memref<192x128xf32, #tpu.memory_space<vmem>>, vector<48x128xf32>
    %cst_39 = arith.constant dense<0.000000e+00> : vector<7x128xf32>
    %79 = tpu.matmul %77, %78, %cst_39 {dimension_numbers = #tpu.dot_dimension_numbers<[1], [0], [0], [1], [0, 0, 1, 1], [], []>} : vector<7x48xf32>, vector<48x128xf32>, vector<7x128xf32> -> vector<7x128xf32>
    %80 = arith.addf %75, %79 : vector<7x128xf32>
    %81 = vector.extract_strided_slice %1 {offsets = [3, 1, 0], sizes = [1, 7, 48], strides = [1, 1, 1]} : vector<8x8x48xf32> to vector<1x7x48xf32>
    %82 = vector.shape_cast %81 : vector<1x7x48xf32> to vector<7x48xf32>
    %c144_40 = arith.constant 144 : index
    %c0_41 = arith.constant 0 : index
    %83 = vector.load %arg2[%c144_40, %c0_41] : memref<192x128xf32, #tpu.memory_space<vmem>>, vector<48x128xf32>
    %cst_42 = arith.constant dense<0.000000e+00> : vector<7x128xf32>
    %84 = tpu.matmul %82, %83, %cst_42 {dimension_numbers = #tpu.dot_dimension_numbers<[1], [0], [0], [1], [0, 0, 1, 1], [], []>} : vector<7x48xf32>, vector<48x128xf32>, vector<7x128xf32> -> vector<7x128xf32>
    %85 = arith.addf %80, %84 : vector<7x128xf32>
    %cst_43 = arith.constant 0.000000e+00 : f32
    %86 = vector.broadcast %cst_43 : f32 to vector<7x128xf32>
    %87 = arith.maximumf %85, %86 : vector<7x128xf32>
    %88 = vector.extract_strided_slice %87 {offsets = [0, 0], sizes = [7, 32], strides = [1, 1]} : vector<7x128xf32> to vector<7x32xf32>
    %89 = vector.extract_strided_slice %87 {offsets = [0, 32], sizes = [7, 32], strides = [1, 1]} : vector<7x128xf32> to vector<7x32xf32>
    %90 = arith.maximumf %88, %89 : vector<7x32xf32>
    %91 = vector.extract_strided_slice %87 {offsets = [0, 64], sizes = [7, 32], strides = [1, 1]} : vector<7x128xf32> to vector<7x32xf32>
    %92 = vector.extract_strided_slice %87 {offsets = [0, 96], sizes = [7, 32], strides = [1, 1]} : vector<7x128xf32> to vector<7x32xf32>
    %93 = arith.maximumf %91, %92 : vector<7x32xf32>
    %94 = arith.maximumf %90, %93 : vector<7x32xf32>
    %c0_44 = arith.constant 0 : index
    %c0_45 = arith.constant 0 : index
    %95 = vector.load %arg3[%c0_44, %c0_45] : memref<1x128xf32, #tpu.memory_space<vmem>>, vector<1x128xf32>
    %96 = vector.extract_strided_slice %1 {offsets = [3, 0, 0], sizes = [1, 7, 48], strides = [1, 1, 1]} : vector<8x8x48xf32> to vector<1x7x48xf32>
    %97 = vector.shape_cast %96 : vector<1x7x48xf32> to vector<7x48xf32>
    %c0_46 = arith.constant 0 : index
    %c0_47 = arith.constant 0 : index
    %98 = vector.load %arg2[%c0_46, %c0_47] : memref<192x128xf32, #tpu.memory_space<vmem>>, vector<48x128xf32>
    %cst_48 = arith.constant dense<0.000000e+00> : vector<7x128xf32>
    %99 = tpu.matmul %97, %98, %cst_48 {dimension_numbers = #tpu.dot_dimension_numbers<[1], [0], [0], [1], [0, 0, 1, 1], [], []>} : vector<7x48xf32>, vector<48x128xf32>, vector<7x128xf32> -> vector<7x128xf32>
    %100 = vector.broadcast %95 : vector<1x128xf32> to vector<7x128xf32>
    %101 = arith.addf %100, %99 : vector<7x128xf32>
    %102 = vector.extract_strided_slice %1 {offsets = [3, 1, 0], sizes = [1, 7, 48], strides = [1, 1, 1]} : vector<8x8x48xf32> to vector<1x7x48xf32>
    %103 = vector.shape_cast %102 : vector<1x7x48xf32> to vector<7x48xf32>
    %c48_49 = arith.constant 48 : index
    %c0_50 = arith.constant 0 : index
    %104 = vector.load %arg2[%c48_49, %c0_50] : memref<192x128xf32, #tpu.memory_space<vmem>>, vector<48x128xf32>
    %cst_51 = arith.constant dense<0.000000e+00> : vector<7x128xf32>
    %105 = tpu.matmul %103, %104, %cst_51 {dimension_numbers = #tpu.dot_dimension_numbers<[1], [0], [0], [1], [0, 0, 1, 1], [], []>} : vector<7x48xf32>, vector<48x128xf32>, vector<7x128xf32> -> vector<7x128xf32>
    %106 = arith.addf %101, %105 : vector<7x128xf32>
    %107 = vector.extract_strided_slice %1 {offsets = [4, 0, 0], sizes = [1, 7, 48], strides = [1, 1, 1]} : vector<8x8x48xf32> to vector<1x7x48xf32>
    %108 = vector.shape_cast %107 : vector<1x7x48xf32> to vector<7x48xf32>
    %c96_52 = arith.constant 96 : index
    %c0_53 = arith.constant 0 : index
    %109 = vector.load %arg2[%c96_52, %c0_53] : memref<192x128xf32, #tpu.memory_space<vmem>>, vector<48x128xf32>
    %cst_54 = arith.constant dense<0.000000e+00> : vector<7x128xf32>
    %110 = tpu.matmul %108, %109, %cst_54 {dimension_numbers = #tpu.dot_dimension_numbers<[1], [0], [0], [1], [0, 0, 1, 1], [], []>} : vector<7x48xf32>, vector<48x128xf32>, vector<7x128xf32> -> vector<7x128xf32>
    %111 = arith.addf %106, %110 : vector<7x128xf32>
    %112 = vector.extract_strided_slice %1 {offsets = [4, 1, 0], sizes = [1, 7, 48], strides = [1, 1, 1]} : vector<8x8x48xf32> to vector<1x7x48xf32>
    %113 = vector.shape_cast %112 : vector<1x7x48xf32> to vector<7x48xf32>
    %c144_55 = arith.constant 144 : index
    %c0_56 = arith.constant 0 : index
    %114 = vector.load %arg2[%c144_55, %c0_56] : memref<192x128xf32, #tpu.memory_space<vmem>>, vector<48x128xf32>
    %cst_57 = arith.constant dense<0.000000e+00> : vector<7x128xf32>
    %115 = tpu.matmul %113, %114, %cst_57 {dimension_numbers = #tpu.dot_dimension_numbers<[1], [0], [0], [1], [0, 0, 1, 1], [], []>} : vector<7x48xf32>, vector<48x128xf32>, vector<7x128xf32> -> vector<7x128xf32>
    %116 = arith.addf %111, %115 : vector<7x128xf32>
    %cst_58 = arith.constant 0.000000e+00 : f32
    %117 = vector.broadcast %cst_58 : f32 to vector<7x128xf32>
    %118 = arith.maximumf %116, %117 : vector<7x128xf32>
    %119 = vector.extract_strided_slice %118 {offsets = [0, 0], sizes = [7, 32], strides = [1, 1]} : vector<7x128xf32> to vector<7x32xf32>
    %120 = vector.extract_strided_slice %118 {offsets = [0, 32], sizes = [7, 32], strides = [1, 1]} : vector<7x128xf32> to vector<7x32xf32>
    %121 = arith.maximumf %119, %120 : vector<7x32xf32>
    %122 = vector.extract_strided_slice %118 {offsets = [0, 64], sizes = [7, 32], strides = [1, 1]} : vector<7x128xf32> to vector<7x32xf32>
    %123 = vector.extract_strided_slice %118 {offsets = [0, 96], sizes = [7, 32], strides = [1, 1]} : vector<7x128xf32> to vector<7x32xf32>
    %124 = arith.maximumf %122, %123 : vector<7x32xf32>
    %125 = arith.maximumf %121, %124 : vector<7x32xf32>
    %c0_59 = arith.constant 0 : index
    %c0_60 = arith.constant 0 : index
    %126 = vector.load %arg3[%c0_59, %c0_60] : memref<1x128xf32, #tpu.memory_space<vmem>>, vector<1x128xf32>
    %127 = vector.extract_strided_slice %1 {offsets = [4, 0, 0], sizes = [1, 7, 48], strides = [1, 1, 1]} : vector<8x8x48xf32> to vector<1x7x48xf32>
    %128 = vector.shape_cast %127 : vector<1x7x48xf32> to vector<7x48xf32>
    %c0_61 = arith.constant 0 : index
    %c0_62 = arith.constant 0 : index
    %129 = vector.load %arg2[%c0_61, %c0_62] : memref<192x128xf32, #tpu.memory_space<vmem>>, vector<48x128xf32>
    %cst_63 = arith.constant dense<0.000000e+00> : vector<7x128xf32>
    %130 = tpu.matmul %128, %129, %cst_63 {dimension_numbers = #tpu.dot_dimension_numbers<[1], [0], [0], [1], [0, 0, 1, 1], [], []>} : vector<7x48xf32>, vector<48x128xf32>, vector<7x128xf32> -> vector<7x128xf32>
    %131 = vector.broadcast %126 : vector<1x128xf32> to vector<7x128xf32>
    %132 = arith.addf %131, %130 : vector<7x128xf32>
    %133 = vector.extract_strided_slice %1 {offsets = [4, 1, 0], sizes = [1, 7, 48], strides = [1, 1, 1]} : vector<8x8x48xf32> to vector<1x7x48xf32>
    %134 = vector.shape_cast %133 : vector<1x7x48xf32> to vector<7x48xf32>
    %c48_64 = arith.constant 48 : index
    %c0_65 = arith.constant 0 : index
    %135 = vector.load %arg2[%c48_64, %c0_65] : memref<192x128xf32, #tpu.memory_space<vmem>>, vector<48x128xf32>
    %cst_66 = arith.constant dense<0.000000e+00> : vector<7x128xf32>
    %136 = tpu.matmul %134, %135, %cst_66 {dimension_numbers = #tpu.dot_dimension_numbers<[1], [0], [0], [1], [0, 0, 1, 1], [], []>} : vector<7x48xf32>, vector<48x128xf32>, vector<7x128xf32> -> vector<7x128xf32>
    %137 = arith.addf %132, %136 : vector<7x128xf32>
    %138 = vector.extract_strided_slice %1 {offsets = [5, 0, 0], sizes = [1, 7, 48], strides = [1, 1, 1]} : vector<8x8x48xf32> to vector<1x7x48xf32>
    %139 = vector.shape_cast %138 : vector<1x7x48xf32> to vector<7x48xf32>
    %c96_67 = arith.constant 96 : index
    %c0_68 = arith.constant 0 : index
    %140 = vector.load %arg2[%c96_67, %c0_68] : memref<192x128xf32, #tpu.memory_space<vmem>>, vector<48x128xf32>
    %cst_69 = arith.constant dense<0.000000e+00> : vector<7x128xf32>
    %141 = tpu.matmul %139, %140, %cst_69 {dimension_numbers = #tpu.dot_dimension_numbers<[1], [0], [0], [1], [0, 0, 1, 1], [], []>} : vector<7x48xf32>, vector<48x128xf32>, vector<7x128xf32> -> vector<7x128xf32>
    %142 = arith.addf %137, %141 : vector<7x128xf32>
    %143 = vector.extract_strided_slice %1 {offsets = [5, 1, 0], sizes = [1, 7, 48], strides = [1, 1, 1]} : vector<8x8x48xf32> to vector<1x7x48xf32>
    %144 = vector.shape_cast %143 : vector<1x7x48xf32> to vector<7x48xf32>
    %c144_70 = arith.constant 144 : index
    %c0_71 = arith.constant 0 : index
    %145 = vector.load %arg2[%c144_70, %c0_71] : memref<192x128xf32, #tpu.memory_space<vmem>>, vector<48x128xf32>
    %cst_72 = arith.constant dense<0.000000e+00> : vector<7x128xf32>
    %146 = tpu.matmul %144, %145, %cst_72 {dimension_numbers = #tpu.dot_dimension_numbers<[1], [0], [0], [1], [0, 0, 1, 1], [], []>} : vector<7x48xf32>, vector<48x128xf32>, vector<7x128xf32> -> vector<7x128xf32>
    %147 = arith.addf %142, %146 : vector<7x128xf32>
    %cst_73 = arith.constant 0.000000e+00 : f32
    %148 = vector.broadcast %cst_73 : f32 to vector<7x128xf32>
    %149 = arith.maximumf %147, %148 : vector<7x128xf32>
    %150 = vector.extract_strided_slice %149 {offsets = [0, 0], sizes = [7, 32], strides = [1, 1]} : vector<7x128xf32> to vector<7x32xf32>
    %151 = vector.extract_strided_slice %149 {offsets = [0, 32], sizes = [7, 32], strides = [1, 1]} : vector<7x128xf32> to vector<7x32xf32>
    %152 = arith.maximumf %150, %151 : vector<7x32xf32>
    %153 = vector.extract_strided_slice %149 {offsets = [0, 64], sizes = [7, 32], strides = [1, 1]} : vector<7x128xf32> to vector<7x32xf32>
    %154 = vector.extract_strided_slice %149 {offsets = [0, 96], sizes = [7, 32], strides = [1, 1]} : vector<7x128xf32> to vector<7x32xf32>
    %155 = arith.maximumf %153, %154 : vector<7x32xf32>
    %156 = arith.maximumf %152, %155 : vector<7x32xf32>
    %c0_74 = arith.constant 0 : index
    %c0_75 = arith.constant 0 : index
    %157 = vector.load %arg3[%c0_74, %c0_75] : memref<1x128xf32, #tpu.memory_space<vmem>>, vector<1x128xf32>
    %158 = vector.extract_strided_slice %1 {offsets = [5, 0, 0], sizes = [1, 7, 48], strides = [1, 1, 1]} : vector<8x8x48xf32> to vector<1x7x48xf32>
    %159 = vector.shape_cast %158 : vector<1x7x48xf32> to vector<7x48xf32>
    %c0_76 = arith.constant 0 : index
    %c0_77 = arith.constant 0 : index
    %160 = vector.load %arg2[%c0_76, %c0_77] : memref<192x128xf32, #tpu.memory_space<vmem>>, vector<48x128xf32>
    %cst_78 = arith.constant dense<0.000000e+00> : vector<7x128xf32>
    %161 = tpu.matmul %159, %160, %cst_78 {dimension_numbers = #tpu.dot_dimension_numbers<[1], [0], [0], [1], [0, 0, 1, 1], [], []>} : vector<7x48xf32>, vector<48x128xf32>, vector<7x128xf32> -> vector<7x128xf32>
    %162 = vector.broadcast %157 : vector<1x128xf32> to vector<7x128xf32>
    %163 = arith.addf %162, %161 : vector<7x128xf32>
    %164 = vector.extract_strided_slice %1 {offsets = [5, 1, 0], sizes = [1, 7, 48], strides = [1, 1, 1]} : vector<8x8x48xf32> to vector<1x7x48xf32>
    %165 = vector.shape_cast %164 : vector<1x7x48xf32> to vector<7x48xf32>
    %c48_79 = arith.constant 48 : index
    %c0_80 = arith.constant 0 : index
    %166 = vector.load %arg2[%c48_79, %c0_80] : memref<192x128xf32, #tpu.memory_space<vmem>>, vector<48x128xf32>
    %cst_81 = arith.constant dense<0.000000e+00> : vector<7x128xf32>
    %167 = tpu.matmul %165, %166, %cst_81 {dimension_numbers = #tpu.dot_dimension_numbers<[1], [0], [0], [1], [0, 0, 1, 1], [], []>} : vector<7x48xf32>, vector<48x128xf32>, vector<7x128xf32> -> vector<7x128xf32>
    %168 = arith.addf %163, %167 : vector<7x128xf32>
    %169 = vector.extract_strided_slice %1 {offsets = [6, 0, 0], sizes = [1, 7, 48], strides = [1, 1, 1]} : vector<8x8x48xf32> to vector<1x7x48xf32>
    %170 = vector.shape_cast %169 : vector<1x7x48xf32> to vector<7x48xf32>
    %c96_82 = arith.constant 96 : index
    %c0_83 = arith.constant 0 : index
    %171 = vector.load %arg2[%c96_82, %c0_83] : memref<192x128xf32, #tpu.memory_space<vmem>>, vector<48x128xf32>
    %cst_84 = arith.constant dense<0.000000e+00> : vector<7x128xf32>
    %172 = tpu.matmul %170, %171, %cst_84 {dimension_numbers = #tpu.dot_dimension_numbers<[1], [0], [0], [1], [0, 0, 1, 1], [], []>} : vector<7x48xf32>, vector<48x128xf32>, vector<7x128xf32> -> vector<7x128xf32>
    %173 = arith.addf %168, %172 : vector<7x128xf32>
    %174 = vector.extract_strided_slice %1 {offsets = [6, 1, 0], sizes = [1, 7, 48], strides = [1, 1, 1]} : vector<8x8x48xf32> to vector<1x7x48xf32>
    %175 = vector.shape_cast %174 : vector<1x7x48xf32> to vector<7x48xf32>
    %c144_85 = arith.constant 144 : index
    %c0_86 = arith.constant 0 : index
    %176 = vector.load %arg2[%c144_85, %c0_86] : memref<192x128xf32, #tpu.memory_space<vmem>>, vector<48x128xf32>
    %cst_87 = arith.constant dense<0.000000e+00> : vector<7x128xf32>
    %177 = tpu.matmul %175, %176, %cst_87 {dimension_numbers = #tpu.dot_dimension_numbers<[1], [0], [0], [1], [0, 0, 1, 1], [], []>} : vector<7x48xf32>, vector<48x128xf32>, vector<7x128xf32> -> vector<7x128xf32>
    %178 = arith.addf %173, %177 : vector<7x128xf32>
    %cst_88 = arith.constant 0.000000e+00 : f32
    %179 = vector.broadcast %cst_88 : f32 to vector<7x128xf32>
    %180 = arith.maximumf %178, %179 : vector<7x128xf32>
    %181 = vector.extract_strided_slice %180 {offsets = [0, 0], sizes = [7, 32], strides = [1, 1]} : vector<7x128xf32> to vector<7x32xf32>
    %182 = vector.extract_strided_slice %180 {offsets = [0, 32], sizes = [7, 32], strides = [1, 1]} : vector<7x128xf32> to vector<7x32xf32>
    %183 = arith.maximumf %181, %182 : vector<7x32xf32>
    %184 = vector.extract_strided_slice %180 {offsets = [0, 64], sizes = [7, 32], strides = [1, 1]} : vector<7x128xf32> to vector<7x32xf32>
    %185 = vector.extract_strided_slice %180 {offsets = [0, 96], sizes = [7, 32], strides = [1, 1]} : vector<7x128xf32> to vector<7x32xf32>
    %186 = arith.maximumf %184, %185 : vector<7x32xf32>
    %187 = arith.maximumf %183, %186 : vector<7x32xf32>
    %c0_89 = arith.constant 0 : index
    %c0_90 = arith.constant 0 : index
    %188 = vector.load %arg3[%c0_89, %c0_90] : memref<1x128xf32, #tpu.memory_space<vmem>>, vector<1x128xf32>
    %189 = vector.extract_strided_slice %1 {offsets = [6, 0, 0], sizes = [1, 7, 48], strides = [1, 1, 1]} : vector<8x8x48xf32> to vector<1x7x48xf32>
    %190 = vector.shape_cast %189 : vector<1x7x48xf32> to vector<7x48xf32>
    %c0_91 = arith.constant 0 : index
    %c0_92 = arith.constant 0 : index
    %191 = vector.load %arg2[%c0_91, %c0_92] : memref<192x128xf32, #tpu.memory_space<vmem>>, vector<48x128xf32>
    %cst_93 = arith.constant dense<0.000000e+00> : vector<7x128xf32>
    %192 = tpu.matmul %190, %191, %cst_93 {dimension_numbers = #tpu.dot_dimension_numbers<[1], [0], [0], [1], [0, 0, 1, 1], [], []>} : vector<7x48xf32>, vector<48x128xf32>, vector<7x128xf32> -> vector<7x128xf32>
    %193 = vector.broadcast %188 : vector<1x128xf32> to vector<7x128xf32>
    %194 = arith.addf %193, %192 : vector<7x128xf32>
    %195 = vector.extract_strided_slice %1 {offsets = [6, 1, 0], sizes = [1, 7, 48], strides = [1, 1, 1]} : vector<8x8x48xf32> to vector<1x7x48xf32>
    %196 = vector.shape_cast %195 : vector<1x7x48xf32> to vector<7x48xf32>
    %c48_94 = arith.constant 48 : index
    %c0_95 = arith.constant 0 : index
    %197 = vector.load %arg2[%c48_94, %c0_95] : memref<192x128xf32, #tpu.memory_space<vmem>>, vector<48x128xf32>
    %cst_96 = arith.constant dense<0.000000e+00> : vector<7x128xf32>
    %198 = tpu.matmul %196, %197, %cst_96 {dimension_numbers = #tpu.dot_dimension_numbers<[1], [0], [0], [1], [0, 0, 1, 1], [], []>} : vector<7x48xf32>, vector<48x128xf32>, vector<7x128xf32> -> vector<7x128xf32>
    %199 = arith.addf %194, %198 : vector<7x128xf32>
    %200 = vector.extract_strided_slice %1 {offsets = [7, 0, 0], sizes = [1, 7, 48], strides = [1, 1, 1]} : vector<8x8x48xf32> to vector<1x7x48xf32>
    %201 = vector.shape_cast %200 : vector<1x7x48xf32> to vector<7x48xf32>
    %c96_97 = arith.constant 96 : index
    %c0_98 = arith.constant 0 : index
    %202 = vector.load %arg2[%c96_97, %c0_98] : memref<192x128xf32, #tpu.memory_space<vmem>>, vector<48x128xf32>
    %cst_99 = arith.constant dense<0.000000e+00> : vector<7x128xf32>
    %203 = tpu.matmul %201, %202, %cst_99 {dimension_numbers = #tpu.dot_dimension_numbers<[1], [0], [0], [1], [0, 0, 1, 1], [], []>} : vector<7x48xf32>, vector<48x128xf32>, vector<7x128xf32> -> vector<7x128xf32>
    %204 = arith.addf %199, %203 : vector<7x128xf32>
    %205 = vector.extract_strided_slice %1 {offsets = [7, 1, 0], sizes = [1, 7, 48], strides = [1, 1, 1]} : vector<8x8x48xf32> to vector<1x7x48xf32>
    %206 = vector.shape_cast %205 : vector<1x7x48xf32> to vector<7x48xf32>
    %c144_100 = arith.constant 144 : index
    %c0_101 = arith.constant 0 : index
    %207 = vector.load %arg2[%c144_100, %c0_101] : memref<192x128xf32, #tpu.memory_space<vmem>>, vector<48x128xf32>
    %cst_102 = arith.constant dense<0.000000e+00> : vector<7x128xf32>
    %208 = tpu.matmul %206, %207, %cst_102 {dimension_numbers = #tpu.dot_dimension_numbers<[1], [0], [0], [1], [0, 0, 1, 1], [], []>} : vector<7x48xf32>, vector<48x128xf32>, vector<7x128xf32> -> vector<7x128xf32>
    %209 = arith.addf %204, %208 : vector<7x128xf32>
    %cst_103 = arith.constant 0.000000e+00 : f32
    %210 = vector.broadcast %cst_103 : f32 to vector<7x128xf32>
    %211 = arith.maximumf %209, %210 : vector<7x128xf32>
    %212 = vector.extract_strided_slice %211 {offsets = [0, 0], sizes = [7, 32], strides = [1, 1]} : vector<7x128xf32> to vector<7x32xf32>
    %213 = vector.extract_strided_slice %211 {offsets = [0, 32], sizes = [7, 32], strides = [1, 1]} : vector<7x128xf32> to vector<7x32xf32>
    %214 = arith.maximumf %212, %213 : vector<7x32xf32>
    %215 = vector.extract_strided_slice %211 {offsets = [0, 64], sizes = [7, 32], strides = [1, 1]} : vector<7x128xf32> to vector<7x32xf32>
    %216 = vector.extract_strided_slice %211 {offsets = [0, 96], sizes = [7, 32], strides = [1, 1]} : vector<7x128xf32> to vector<7x32xf32>
    %217 = arith.maximumf %215, %216 : vector<7x32xf32>
    %218 = arith.maximumf %214, %217 : vector<7x32xf32>
    %c0_104 = arith.constant 0 : index
    %c0_105 = arith.constant 0 : index
    %219 = vector.load %arg5[%c0_104, %c0_105] : memref<1x64xf32, #tpu.memory_space<vmem>>, vector<1x64xf32>
    %220 = vector.extract_strided_slice %32 {offsets = [0, 0], sizes = [5, 32], strides = [1, 1]} : vector<7x32xf32> to vector<5x32xf32>
    %c0_106 = arith.constant 0 : index
    %c0_107 = arith.constant 0 : index
    %221 = vector.load %arg4[%c0_106, %c0_107] : memref<288x64xf32, #tpu.memory_space<vmem>>, vector<32x64xf32>
    %cst_108 = arith.constant dense<0.000000e+00> : vector<5x64xf32>
    %222 = tpu.matmul %220, %221, %cst_108 {dimension_numbers = #tpu.dot_dimension_numbers<[1], [0], [0], [1], [0, 0, 1, 1], [], []>} : vector<5x32xf32>, vector<32x64xf32>, vector<5x64xf32> -> vector<5x64xf32>
    %223 = vector.broadcast %219 : vector<1x64xf32> to vector<5x64xf32>
    %224 = arith.addf %223, %222 : vector<5x64xf32>
    %225 = vector.extract_strided_slice %32 {offsets = [1, 0], sizes = [5, 32], strides = [1, 1]} : vector<7x32xf32> to vector<5x32xf32>
    %c32 = arith.constant 32 : index
    %c0_109 = arith.constant 0 : index
    %226 = vector.load %arg4[%c32, %c0_109] : memref<288x64xf32, #tpu.memory_space<vmem>>, vector<32x64xf32>
    %cst_110 = arith.constant dense<0.000000e+00> : vector<5x64xf32>
    %227 = tpu.matmul %225, %226, %cst_110 {dimension_numbers = #tpu.dot_dimension_numbers<[1], [0], [0], [1], [0, 0, 1, 1], [], []>} : vector<5x32xf32>, vector<32x64xf32>, vector<5x64xf32> -> vector<5x64xf32>
    %228 = arith.addf %224, %227 : vector<5x64xf32>
    %229 = vector.extract_strided_slice %32 {offsets = [2, 0], sizes = [5, 32], strides = [1, 1]} : vector<7x32xf32> to vector<5x32xf32>
    %c64 = arith.constant 64 : index
    %c0_111 = arith.constant 0 : index
    %230 = vector.load %arg4[%c64, %c0_111] : memref<288x64xf32, #tpu.memory_space<vmem>>, vector<32x64xf32>
    %cst_112 = arith.constant dense<0.000000e+00> : vector<5x64xf32>
    %231 = tpu.matmul %229, %230, %cst_112 {dimension_numbers = #tpu.dot_dimension_numbers<[1], [0], [0], [1], [0, 0, 1, 1], [], []>} : vector<5x32xf32>, vector<32x64xf32>, vector<5x64xf32> -> vector<5x64xf32>
    %232 = arith.addf %228, %231 : vector<5x64xf32>
    %233 = vector.extract_strided_slice %63 {offsets = [0, 0], sizes = [5, 32], strides = [1, 1]} : vector<7x32xf32> to vector<5x32xf32>
    %c96_113 = arith.constant 96 : index
    %c0_114 = arith.constant 0 : index
    %234 = vector.load %arg4[%c96_113, %c0_114] : memref<288x64xf32, #tpu.memory_space<vmem>>, vector<32x64xf32>
    %cst_115 = arith.constant dense<0.000000e+00> : vector<5x64xf32>
    %235 = tpu.matmul %233, %234, %cst_115 {dimension_numbers = #tpu.dot_dimension_numbers<[1], [0], [0], [1], [0, 0, 1, 1], [], []>} : vector<5x32xf32>, vector<32x64xf32>, vector<5x64xf32> -> vector<5x64xf32>
    %236 = arith.addf %232, %235 : vector<5x64xf32>
    %237 = vector.extract_strided_slice %63 {offsets = [1, 0], sizes = [5, 32], strides = [1, 1]} : vector<7x32xf32> to vector<5x32xf32>
    %c128 = arith.constant 128 : index
    %c0_116 = arith.constant 0 : index
    %238 = vector.load %arg4[%c128, %c0_116] : memref<288x64xf32, #tpu.memory_space<vmem>>, vector<32x64xf32>
    %cst_117 = arith.constant dense<0.000000e+00> : vector<5x64xf32>
    %239 = tpu.matmul %237, %238, %cst_117 {dimension_numbers = #tpu.dot_dimension_numbers<[1], [0], [0], [1], [0, 0, 1, 1], [], []>} : vector<5x32xf32>, vector<32x64xf32>, vector<5x64xf32> -> vector<5x64xf32>
    %240 = arith.addf %236, %239 : vector<5x64xf32>
    %241 = vector.extract_strided_slice %63 {offsets = [2, 0], sizes = [5, 32], strides = [1, 1]} : vector<7x32xf32> to vector<5x32xf32>
    %c160 = arith.constant 160 : index
    %c0_118 = arith.constant 0 : index
    %242 = vector.load %arg4[%c160, %c0_118] : memref<288x64xf32, #tpu.memory_space<vmem>>, vector<32x64xf32>
    %cst_119 = arith.constant dense<0.000000e+00> : vector<5x64xf32>
    %243 = tpu.matmul %241, %242, %cst_119 {dimension_numbers = #tpu.dot_dimension_numbers<[1], [0], [0], [1], [0, 0, 1, 1], [], []>} : vector<5x32xf32>, vector<32x64xf32>, vector<5x64xf32> -> vector<5x64xf32>
    %244 = arith.addf %240, %243 : vector<5x64xf32>
    %245 = vector.extract_strided_slice %94 {offsets = [0, 0], sizes = [5, 32], strides = [1, 1]} : vector<7x32xf32> to vector<5x32xf32>
    %c192 = arith.constant 192 : index
    %c0_120 = arith.constant 0 : index
    %246 = vector.load %arg4[%c192, %c0_120] : memref<288x64xf32, #tpu.memory_space<vmem>>, vector<32x64xf32>
    %cst_121 = arith.constant dense<0.000000e+00> : vector<5x64xf32>
    %247 = tpu.matmul %245, %246, %cst_121 {dimension_numbers = #tpu.dot_dimension_numbers<[1], [0], [0], [1], [0, 0, 1, 1], [], []>} : vector<5x32xf32>, vector<32x64xf32>, vector<5x64xf32> -> vector<5x64xf32>
    %248 = arith.addf %244, %247 : vector<5x64xf32>
    %249 = vector.extract_strided_slice %94 {offsets = [1, 0], sizes = [5, 32], strides = [1, 1]} : vector<7x32xf32> to vector<5x32xf32>
    %c224 = arith.constant 224 : index
    %c0_122 = arith.constant 0 : index
    %250 = vector.load %arg4[%c224, %c0_122] : memref<288x64xf32, #tpu.memory_space<vmem>>, vector<32x64xf32>
    %cst_123 = arith.constant dense<0.000000e+00> : vector<5x64xf32>
    %251 = tpu.matmul %249, %250, %cst_123 {dimension_numbers = #tpu.dot_dimension_numbers<[1], [0], [0], [1], [0, 0, 1, 1], [], []>} : vector<5x32xf32>, vector<32x64xf32>, vector<5x64xf32> -> vector<5x64xf32>
    %252 = arith.addf %248, %251 : vector<5x64xf32>
    %253 = vector.extract_strided_slice %94 {offsets = [2, 0], sizes = [5, 32], strides = [1, 1]} : vector<7x32xf32> to vector<5x32xf32>
    %c256 = arith.constant 256 : index
    %c0_124 = arith.constant 0 : index
    %254 = vector.load %arg4[%c256, %c0_124] : memref<288x64xf32, #tpu.memory_space<vmem>>, vector<32x64xf32>
    %cst_125 = arith.constant dense<0.000000e+00> : vector<5x64xf32>
    %255 = tpu.matmul %253, %254, %cst_125 {dimension_numbers = #tpu.dot_dimension_numbers<[1], [0], [0], [1], [0, 0, 1, 1], [], []>} : vector<5x32xf32>, vector<32x64xf32>, vector<5x64xf32> -> vector<5x64xf32>
    %256 = arith.addf %252, %255 : vector<5x64xf32>
    %cst_126 = arith.constant 0.000000e+00 : f32
    %257 = vector.broadcast %cst_126 : f32 to vector<5x64xf32>
    %258 = arith.maximumf %256, %257 : vector<5x64xf32>
    %259 = vector.extract_strided_slice %258 {offsets = [0, 0], sizes = [5, 16], strides = [1, 1]} : vector<5x64xf32> to vector<5x16xf32>
    %260 = vector.extract_strided_slice %258 {offsets = [0, 16], sizes = [5, 16], strides = [1, 1]} : vector<5x64xf32> to vector<5x16xf32>
    %261 = arith.maximumf %259, %260 : vector<5x16xf32>
    %262 = vector.extract_strided_slice %258 {offsets = [0, 32], sizes = [5, 16], strides = [1, 1]} : vector<5x64xf32> to vector<5x16xf32>
    %263 = vector.extract_strided_slice %258 {offsets = [0, 48], sizes = [5, 16], strides = [1, 1]} : vector<5x64xf32> to vector<5x16xf32>
    %264 = arith.maximumf %262, %263 : vector<5x16xf32>
    %265 = arith.maximumf %261, %264 : vector<5x16xf32>
    %c0_127 = arith.constant 0 : index
    %c0_128 = arith.constant 0 : index
    %c0_129 = arith.constant 0 : index
    %266 = vector.load %arg6[%c0_127, %c0_128, %c0_129] : memref<1x25x16xf32, #tpu.memory_space<vmem>>, vector<1x5x16xf32>
    %267 = vector.shape_cast %266 : vector<1x5x16xf32> to vector<5x16xf32>
    %268 = vector.shape_cast %265 : vector<5x16xf32> to vector<1x5x16xf32>
    tpu.vector_store %arg6[%c0_127, %c0_128, %c0_129], %268 {strides = array<i32>} : memref<1x25x16xf32, #tpu.memory_space<vmem>>, vector<1x5x16xf32>,
    %c0_130 = arith.constant 0 : index
    %c0_131 = arith.constant 0 : index
    %269 = vector.load %arg5[%c0_130, %c0_131] : memref<1x64xf32, #tpu.memory_space<vmem>>, vector<1x64xf32>
    %270 = vector.extract_strided_slice %63 {offsets = [0, 0], sizes = [5, 32], strides = [1, 1]} : vector<7x32xf32> to vector<5x32xf32>
    %c0_132 = arith.constant 0 : index
    %c0_133 = arith.constant 0 : index
    %271 = vector.load %arg4[%c0_132, %c0_133] : memref<288x64xf32, #tpu.memory_space<vmem>>, vector<32x64xf32>
    %cst_134 = arith.constant dense<0.000000e+00> : vector<5x64xf32>
    %272 = tpu.matmul %270, %271, %cst_134 {dimension_numbers = #tpu.dot_dimension_numbers<[1], [0], [0], [1], [0, 0, 1, 1], [], []>} : vector<5x32xf32>, vector<32x64xf32>, vector<5x64xf32> -> vector<5x64xf32>
    %273 = vector.broadcast %269 : vector<1x64xf32> to vector<5x64xf32>
    %274 = arith.addf %273, %272 : vector<5x64xf32>
    %275 = vector.extract_strided_slice %63 {offsets = [1, 0], sizes = [5, 32], strides = [1, 1]} : vector<7x32xf32> to vector<5x32xf32>
    %c32_135 = arith.constant 32 : index
    %c0_136 = arith.constant 0 : index
    %276 = vector.load %arg4[%c32_135, %c0_136] : memref<288x64xf32, #tpu.memory_space<vmem>>, vector<32x64xf32>
    %cst_137 = arith.constant dense<0.000000e+00> : vector<5x64xf32>
    %277 = tpu.matmul %275, %276, %cst_137 {dimension_numbers = #tpu.dot_dimension_numbers<[1], [0], [0], [1], [0, 0, 1, 1], [], []>} : vector<5x32xf32>, vector<32x64xf32>, vector<5x64xf32> -> vector<5x64xf32>
    %278 = arith.addf %274, %277 : vector<5x64xf32>
    %279 = vector.extract_strided_slice %63 {offsets = [2, 0], sizes = [5, 32], strides = [1, 1]} : vector<7x32xf32> to vector<5x32xf32>
    %c64_138 = arith.constant 64 : index
    %c0_139 = arith.constant 0 : index
    %280 = vector.load %arg4[%c64_138, %c0_139] : memref<288x64xf32, #tpu.memory_space<vmem>>, vector<32x64xf32>
    %cst_140 = arith.constant dense<0.000000e+00> : vector<5x64xf32>
    %281 = tpu.matmul %279, %280, %cst_140 {dimension_numbers = #tpu.dot_dimension_numbers<[1], [0], [0], [1], [0, 0, 1, 1], [], []>} : vector<5x32xf32>, vector<32x64xf32>, vector<5x64xf32> -> vector<5x64xf32>
    %282 = arith.addf %278, %281 : vector<5x64xf32>
    %283 = vector.extract_strided_slice %94 {offsets = [0, 0], sizes = [5, 32], strides = [1, 1]} : vector<7x32xf32> to vector<5x32xf32>
    %c96_141 = arith.constant 96 : index
    %c0_142 = arith.constant 0 : index
    %284 = vector.load %arg4[%c96_141, %c0_142] : memref<288x64xf32, #tpu.memory_space<vmem>>, vector<32x64xf32>
    %cst_143 = arith.constant dense<0.000000e+00> : vector<5x64xf32>
    %285 = tpu.matmul %283, %284, %cst_143 {dimension_numbers = #tpu.dot_dimension_numbers<[1], [0], [0], [1], [0, 0, 1, 1], [], []>} : vector<5x32xf32>, vector<32x64xf32>, vector<5x64xf32> -> vector<5x64xf32>
    %286 = arith.addf %282, %285 : vector<5x64xf32>
    %287 = vector.extract_strided_slice %94 {offsets = [1, 0], sizes = [5, 32], strides = [1, 1]} : vector<7x32xf32> to vector<5x32xf32>
    %c128_144 = arith.constant 128 : index
    %c0_145 = arith.constant 0 : index
    %288 = vector.load %arg4[%c128_144, %c0_145] : memref<288x64xf32, #tpu.memory_space<vmem>>, vector<32x64xf32>
    %cst_146 = arith.constant dense<0.000000e+00> : vector<5x64xf32>
    %289 = tpu.matmul %287, %288, %cst_146 {dimension_numbers = #tpu.dot_dimension_numbers<[1], [0], [0], [1], [0, 0, 1, 1], [], []>} : vector<5x32xf32>, vector<32x64xf32>, vector<5x64xf32> -> vector<5x64xf32>
    %290 = arith.addf %286, %289 : vector<5x64xf32>
    %291 = vector.extract_strided_slice %94 {offsets = [2, 0], sizes = [5, 32], strides = [1, 1]} : vector<7x32xf32> to vector<5x32xf32>
    %c160_147 = arith.constant 160 : index
    %c0_148 = arith.constant 0 : index
    %292 = vector.load %arg4[%c160_147, %c0_148] : memref<288x64xf32, #tpu.memory_space<vmem>>, vector<32x64xf32>
    %cst_149 = arith.constant dense<0.000000e+00> : vector<5x64xf32>
    %293 = tpu.matmul %291, %292, %cst_149 {dimension_numbers = #tpu.dot_dimension_numbers<[1], [0], [0], [1], [0, 0, 1, 1], [], []>} : vector<5x32xf32>, vector<32x64xf32>, vector<5x64xf32> -> vector<5x64xf32>
    %294 = arith.addf %290, %293 : vector<5x64xf32>
    %295 = vector.extract_strided_slice %125 {offsets = [0, 0], sizes = [5, 32], strides = [1, 1]} : vector<7x32xf32> to vector<5x32xf32>
    %c192_150 = arith.constant 192 : index
    %c0_151 = arith.constant 0 : index
    %296 = vector.load %arg4[%c192_150, %c0_151] : memref<288x64xf32, #tpu.memory_space<vmem>>, vector<32x64xf32>
    %cst_152 = arith.constant dense<0.000000e+00> : vector<5x64xf32>
    %297 = tpu.matmul %295, %296, %cst_152 {dimension_numbers = #tpu.dot_dimension_numbers<[1], [0], [0], [1], [0, 0, 1, 1], [], []>} : vector<5x32xf32>, vector<32x64xf32>, vector<5x64xf32> -> vector<5x64xf32>
    %298 = arith.addf %294, %297 : vector<5x64xf32>
    %299 = vector.extract_strided_slice %125 {offsets = [1, 0], sizes = [5, 32], strides = [1, 1]} : vector<7x32xf32> to vector<5x32xf32>
    %c224_153 = arith.constant 224 : index
    %c0_154 = arith.constant 0 : index
    %300 = vector.load %arg4[%c224_153, %c0_154] : memref<288x64xf32, #tpu.memory_space<vmem>>, vector<32x64xf32>
    %cst_155 = arith.constant dense<0.000000e+00> : vector<5x64xf32>
    %301 = tpu.matmul %299, %300, %cst_155 {dimension_numbers = #tpu.dot_dimension_numbers<[1], [0], [0], [1], [0, 0, 1, 1], [], []>} : vector<5x32xf32>, vector<32x64xf32>, vector<5x64xf32> -> vector<5x64xf32>
    %302 = arith.addf %298, %301 : vector<5x64xf32>
    %303 = vector.extract_strided_slice %125 {offsets = [2, 0], sizes = [5, 32], strides = [1, 1]} : vector<7x32xf32> to vector<5x32xf32>
    %c256_156 = arith.constant 256 : index
    %c0_157 = arith.constant 0 : index
    %304 = vector.load %arg4[%c256_156, %c0_157] : memref<288x64xf32, #tpu.memory_space<vmem>>, vector<32x64xf32>
    %cst_158 = arith.constant dense<0.000000e+00> : vector<5x64xf32>
    %305 = tpu.matmul %303, %304, %cst_158 {dimension_numbers = #tpu.dot_dimension_numbers<[1], [0], [0], [1], [0, 0, 1, 1], [], []>} : vector<5x32xf32>, vector<32x64xf32>, vector<5x64xf32> -> vector<5x64xf32>
    %306 = arith.addf %302, %305 : vector<5x64xf32>
    %cst_159 = arith.constant 0.000000e+00 : f32
    %307 = vector.broadcast %cst_159 : f32 to vector<5x64xf32>
    %308 = arith.maximumf %306, %307 : vector<5x64xf32>
    %309 = vector.extract_strided_slice %308 {offsets = [0, 0], sizes = [5, 16], strides = [1, 1]} : vector<5x64xf32> to vector<5x16xf32>
    %310 = vector.extract_strided_slice %308 {offsets = [0, 16], sizes = [5, 16], strides = [1, 1]} : vector<5x64xf32> to vector<5x16xf32>
    %311 = arith.maximumf %309, %310 : vector<5x16xf32>
    %312 = vector.extract_strided_slice %308 {offsets = [0, 32], sizes = [5, 16], strides = [1, 1]} : vector<5x64xf32> to vector<5x16xf32>
    %313 = vector.extract_strided_slice %308 {offsets = [0, 48], sizes = [5, 16], strides = [1, 1]} : vector<5x64xf32> to vector<5x16xf32>
    %314 = arith.maximumf %312, %313 : vector<5x16xf32>
    %315 = arith.maximumf %311, %314 : vector<5x16xf32>
    %c0_160 = arith.constant 0 : index
    %c5 = arith.constant 5 : index
    %c0_161 = arith.constant 0 : index
    %316 = vector.load %arg6[%c0_160, %c5, %c0_161] : memref<1x25x16xf32, #tpu.memory_space<vmem>>, vector<1x5x16xf32>
    %317 = vector.shape_cast %316 : vector<1x5x16xf32> to vector<5x16xf32>
    %318 = vector.shape_cast %315 : vector<5x16xf32> to vector<1x5x16xf32>
    tpu.vector_store %arg6[%c0_160, %c5, %c0_161], %318 {strides = array<i32>} : memref<1x25x16xf32, #tpu.memory_space<vmem>>, vector<1x5x16xf32>,
    %c0_162 = arith.constant 0 : index
    %c0_163 = arith.constant 0 : index
    %319 = vector.load %arg5[%c0_162, %c0_163] : memref<1x64xf32, #tpu.memory_space<vmem>>, vector<1x64xf32>
    %320 = vector.extract_strided_slice %94 {offsets = [0, 0], sizes = [5, 32], strides = [1, 1]} : vector<7x32xf32> to vector<5x32xf32>
    %c0_164 = arith.constant 0 : index
    %c0_165 = arith.constant 0 : index
    %321 = vector.load %arg4[%c0_164, %c0_165] : memref<288x64xf32, #tpu.memory_space<vmem>>, vector<32x64xf32>
    %cst_166 = arith.constant dense<0.000000e+00> : vector<5x64xf32>
    %322 = tpu.matmul %320, %321, %cst_166 {dimension_numbers = #tpu.dot_dimension_numbers<[1], [0], [0], [1], [0, 0, 1, 1], [], []>} : vector<5x32xf32>, vector<32x64xf32>, vector<5x64xf32> -> vector<5x64xf32>
    %323 = vector.broadcast %319 : vector<1x64xf32> to vector<5x64xf32>
    %324 = arith.addf %323, %322 : vector<5x64xf32>
    %325 = vector.extract_strided_slice %94 {offsets = [1, 0], sizes = [5, 32], strides = [1, 1]} : vector<7x32xf32> to vector<5x32xf32>
    %c32_167 = arith.constant 32 : index
    %c0_168 = arith.constant 0 : index
    %326 = vector.load %arg4[%c32_167, %c0_168] : memref<288x64xf32, #tpu.memory_space<vmem>>, vector<32x64xf32>
    %cst_169 = arith.constant dense<0.000000e+00> : vector<5x64xf32>
    %327 = tpu.matmul %325, %326, %cst_169 {dimension_numbers = #tpu.dot_dimension_numbers<[1], [0], [0], [1], [0, 0, 1, 1], [], []>} : vector<5x32xf32>, vector<32x64xf32>, vector<5x64xf32> -> vector<5x64xf32>
    %328 = arith.addf %324, %327 : vector<5x64xf32>
    %329 = vector.extract_strided_slice %94 {offsets = [2, 0], sizes = [5, 32], strides = [1, 1]} : vector<7x32xf32> to vector<5x32xf32>
    %c64_170 = arith.constant 64 : index
    %c0_171 = arith.constant 0 : index
    %330 = vector.load %arg4[%c64_170, %c0_171] : memref<288x64xf32, #tpu.memory_space<vmem>>, vector<32x64xf32>
    %cst_172 = arith.constant dense<0.000000e+00> : vector<5x64xf32>
    %331 = tpu.matmul %329, %330, %cst_172 {dimension_numbers = #tpu.dot_dimension_numbers<[1], [0], [0], [1], [0, 0, 1, 1], [], []>} : vector<5x32xf32>, vector<32x64xf32>, vector<5x64xf32> -> vector<5x64xf32>
    %332 = arith.addf %328, %331 : vector<5x64xf32>
    %333 = vector.extract_strided_slice %125 {offsets = [0, 0], sizes = [5, 32], strides = [1, 1]} : vector<7x32xf32> to vector<5x32xf32>
    %c96_173 = arith.constant 96 : index
    %c0_174 = arith.constant 0 : index
    %334 = vector.load %arg4[%c96_173, %c0_174] : memref<288x64xf32, #tpu.memory_space<vmem>>, vector<32x64xf32>
    %cst_175 = arith.constant dense<0.000000e+00> : vector<5x64xf32>
    %335 = tpu.matmul %333, %334, %cst_175 {dimension_numbers = #tpu.dot_dimension_numbers<[1], [0], [0], [1], [0, 0, 1, 1], [], []>} : vector<5x32xf32>, vector<32x64xf32>, vector<5x64xf32> -> vector<5x64xf32>
    %336 = arith.addf %332, %335 : vector<5x64xf32>
    %337 = vector.extract_strided_slice %125 {offsets = [1, 0], sizes = [5, 32], strides = [1, 1]} : vector<7x32xf32> to vector<5x32xf32>
    %c128_176 = arith.constant 128 : index
    %c0_177 = arith.constant 0 : index
    %338 = vector.load %arg4[%c128_176, %c0_177] : memref<288x64xf32, #tpu.memory_space<vmem>>, vector<32x64xf32>
    %cst_178 = arith.constant dense<0.000000e+00> : vector<5x64xf32>
    %339 = tpu.matmul %337, %338, %cst_178 {dimension_numbers = #tpu.dot_dimension_numbers<[1], [0], [0], [1], [0, 0, 1, 1], [], []>} : vector<5x32xf32>, vector<32x64xf32>, vector<5x64xf32> -> vector<5x64xf32>
    %340 = arith.addf %336, %339 : vector<5x64xf32>
    %341 = vector.extract_strided_slice %125 {offsets = [2, 0], sizes = [5, 32], strides = [1, 1]} : vector<7x32xf32> to vector<5x32xf32>
    %c160_179 = arith.constant 160 : index
    %c0_180 = arith.constant 0 : index
    %342 = vector.load %arg4[%c160_179, %c0_180] : memref<288x64xf32, #tpu.memory_space<vmem>>, vector<32x64xf32>
    %cst_181 = arith.constant dense<0.000000e+00> : vector<5x64xf32>
    %343 = tpu.matmul %341, %342, %cst_181 {dimension_numbers = #tpu.dot_dimension_numbers<[1], [0], [0], [1], [0, 0, 1, 1], [], []>} : vector<5x32xf32>, vector<32x64xf32>, vector<5x64xf32> -> vector<5x64xf32>
    %344 = arith.addf %340, %343 : vector<5x64xf32>
    %345 = vector.extract_strided_slice %156 {offsets = [0, 0], sizes = [5, 32], strides = [1, 1]} : vector<7x32xf32> to vector<5x32xf32>
    %c192_182 = arith.constant 192 : index
    %c0_183 = arith.constant 0 : index
    %346 = vector.load %arg4[%c192_182, %c0_183] : memref<288x64xf32, #tpu.memory_space<vmem>>, vector<32x64xf32>
    %cst_184 = arith.constant dense<0.000000e+00> : vector<5x64xf32>
    %347 = tpu.matmul %345, %346, %cst_184 {dimension_numbers = #tpu.dot_dimension_numbers<[1], [0], [0], [1], [0, 0, 1, 1], [], []>} : vector<5x32xf32>, vector<32x64xf32>, vector<5x64xf32> -> vector<5x64xf32>
    %348 = arith.addf %344, %347 : vector<5x64xf32>
    %349 = vector.extract_strided_slice %156 {offsets = [1, 0], sizes = [5, 32], strides = [1, 1]} : vector<7x32xf32> to vector<5x32xf32>
    %c224_185 = arith.constant 224 : index
    %c0_186 = arith.constant 0 : index
    %350 = vector.load %arg4[%c224_185, %c0_186] : memref<288x64xf32, #tpu.memory_space<vmem>>, vector<32x64xf32>
    %cst_187 = arith.constant dense<0.000000e+00> : vector<5x64xf32>
    %351 = tpu.matmul %349, %350, %cst_187 {dimension_numbers = #tpu.dot_dimension_numbers<[1], [0], [0], [1], [0, 0, 1, 1], [], []>} : vector<5x32xf32>, vector<32x64xf32>, vector<5x64xf32> -> vector<5x64xf32>
    %352 = arith.addf %348, %351 : vector<5x64xf32>
    %353 = vector.extract_strided_slice %156 {offsets = [2, 0], sizes = [5, 32], strides = [1, 1]} : vector<7x32xf32> to vector<5x32xf32>
    %c256_188 = arith.constant 256 : index
    %c0_189 = arith.constant 0 : index
    %354 = vector.load %arg4[%c256_188, %c0_189] : memref<288x64xf32, #tpu.memory_space<vmem>>, vector<32x64xf32>
    %cst_190 = arith.constant dense<0.000000e+00> : vector<5x64xf32>
    %355 = tpu.matmul %353, %354, %cst_190 {dimension_numbers = #tpu.dot_dimension_numbers<[1], [0], [0], [1], [0, 0, 1, 1], [], []>} : vector<5x32xf32>, vector<32x64xf32>, vector<5x64xf32> -> vector<5x64xf32>
    %356 = arith.addf %352, %355 : vector<5x64xf32>
    %cst_191 = arith.constant 0.000000e+00 : f32
    %357 = vector.broadcast %cst_191 : f32 to vector<5x64xf32>
    %358 = arith.maximumf %356, %357 : vector<5x64xf32>
    %359 = vector.extract_strided_slice %358 {offsets = [0, 0], sizes = [5, 16], strides = [1, 1]} : vector<5x64xf32> to vector<5x16xf32>
    %360 = vector.extract_strided_slice %358 {offsets = [0, 16], sizes = [5, 16], strides = [1, 1]} : vector<5x64xf32> to vector<5x16xf32>
    %361 = arith.maximumf %359, %360 : vector<5x16xf32>
    %362 = vector.extract_strided_slice %358 {offsets = [0, 32], sizes = [5, 16], strides = [1, 1]} : vector<5x64xf32> to vector<5x16xf32>
    %363 = vector.extract_strided_slice %358 {offsets = [0, 48], sizes = [5, 16], strides = [1, 1]} : vector<5x64xf32> to vector<5x16xf32>
    %364 = arith.maximumf %362, %363 : vector<5x16xf32>
    %365 = arith.maximumf %361, %364 : vector<5x16xf32>
    %c0_192 = arith.constant 0 : index
    %c10 = arith.constant 10 : index
    %c0_193 = arith.constant 0 : index
    %366 = vector.load %arg6[%c0_192, %c10, %c0_193] : memref<1x25x16xf32, #tpu.memory_space<vmem>>, vector<1x5x16xf32>
    %367 = vector.shape_cast %366 : vector<1x5x16xf32> to vector<5x16xf32>
    %368 = vector.shape_cast %365 : vector<5x16xf32> to vector<1x5x16xf32>
    tpu.vector_store %arg6[%c0_192, %c10, %c0_193], %368 {strides = array<i32>} : memref<1x25x16xf32, #tpu.memory_space<vmem>>, vector<1x5x16xf32>,
    %c0_194 = arith.constant 0 : index
    %c0_195 = arith.constant 0 : index
    %369 = vector.load %arg5[%c0_194, %c0_195] : memref<1x64xf32, #tpu.memory_space<vmem>>, vector<1x64xf32>
    %370 = vector.extract_strided_slice %125 {offsets = [0, 0], sizes = [5, 32], strides = [1, 1]} : vector<7x32xf32> to vector<5x32xf32>
    %c0_196 = arith.constant 0 : index
    %c0_197 = arith.constant 0 : index
    %371 = vector.load %arg4[%c0_196, %c0_197] : memref<288x64xf32, #tpu.memory_space<vmem>>, vector<32x64xf32>
    %cst_198 = arith.constant dense<0.000000e+00> : vector<5x64xf32>
    %372 = tpu.matmul %370, %371, %cst_198 {dimension_numbers = #tpu.dot_dimension_numbers<[1], [0], [0], [1], [0, 0, 1, 1], [], []>} : vector<5x32xf32>, vector<32x64xf32>, vector<5x64xf32> -> vector<5x64xf32>
    %373 = vector.broadcast %369 : vector<1x64xf32> to vector<5x64xf32>
    %374 = arith.addf %373, %372 : vector<5x64xf32>
    %375 = vector.extract_strided_slice %125 {offsets = [1, 0], sizes = [5, 32], strides = [1, 1]} : vector<7x32xf32> to vector<5x32xf32>
    %c32_199 = arith.constant 32 : index
    %c0_200 = arith.constant 0 : index
    %376 = vector.load %arg4[%c32_199, %c0_200] : memref<288x64xf32, #tpu.memory_space<vmem>>, vector<32x64xf32>
    %cst_201 = arith.constant dense<0.000000e+00> : vector<5x64xf32>
    %377 = tpu.matmul %375, %376, %cst_201 {dimension_numbers = #tpu.dot_dimension_numbers<[1], [0], [0], [1], [0, 0, 1, 1], [], []>} : vector<5x32xf32>, vector<32x64xf32>, vector<5x64xf32> -> vector<5x64xf32>
    %378 = arith.addf %374, %377 : vector<5x64xf32>
    %379 = vector.extract_strided_slice %125 {offsets = [2, 0], sizes = [5, 32], strides = [1, 1]} : vector<7x32xf32> to vector<5x32xf32>
    %c64_202 = arith.constant 64 : index
    %c0_203 = arith.constant 0 : index
    %380 = vector.load %arg4[%c64_202, %c0_203] : memref<288x64xf32, #tpu.memory_space<vmem>>, vector<32x64xf32>
    %cst_204 = arith.constant dense<0.000000e+00> : vector<5x64xf32>
    %381 = tpu.matmul %379, %380, %cst_204 {dimension_numbers = #tpu.dot_dimension_numbers<[1], [0], [0], [1], [0, 0, 1, 1], [], []>} : vector<5x32xf32>, vector<32x64xf32>, vector<5x64xf32> -> vector<5x64xf32>
    %382 = arith.addf %378, %381 : vector<5x64xf32>
    %383 = vector.extract_strided_slice %156 {offsets = [0, 0], sizes = [5, 32], strides = [1, 1]} : vector<7x32xf32> to vector<5x32xf32>
    %c96_205 = arith.constant 96 : index
    %c0_206 = arith.constant 0 : index
    %384 = vector.load %arg4[%c96_205, %c0_206] : memref<288x64xf32, #tpu.memory_space<vmem>>, vector<32x64xf32>
    %cst_207 = arith.constant dense<0.000000e+00> : vector<5x64xf32>
    %385 = tpu.matmul %383, %384, %cst_207 {dimension_numbers = #tpu.dot_dimension_numbers<[1], [0], [0], [1], [0, 0, 1, 1], [], []>} : vector<5x32xf32>, vector<32x64xf32>, vector<5x64xf32> -> vector<5x64xf32>
    %386 = arith.addf %382, %385 : vector<5x64xf32>
    %387 = vector.extract_strided_slice %156 {offsets = [1, 0], sizes = [5, 32], strides = [1, 1]} : vector<7x32xf32> to vector<5x32xf32>
    %c128_208 = arith.constant 128 : index
    %c0_209 = arith.constant 0 : index
    %388 = vector.load %arg4[%c128_208, %c0_209] : memref<288x64xf32, #tpu.memory_space<vmem>>, vector<32x64xf32>
    %cst_210 = arith.constant dense<0.000000e+00> : vector<5x64xf32>
    %389 = tpu.matmul %387, %388, %cst_210 {dimension_numbers = #tpu.dot_dimension_numbers<[1], [0], [0], [1], [0, 0, 1, 1], [], []>} : vector<5x32xf32>, vector<32x64xf32>, vector<5x64xf32> -> vector<5x64xf32>
    %390 = arith.addf %386, %389 : vector<5x64xf32>
    %391 = vector.extract_strided_slice %156 {offsets = [2, 0], sizes = [5, 32], strides = [1, 1]} : vector<7x32xf32> to vector<5x32xf32>
    %c160_211 = arith.constant 160 : index
    %c0_212 = arith.constant 0 : index
    %392 = vector.load %arg4[%c160_211, %c0_212] : memref<288x64xf32, #tpu.memory_space<vmem>>, vector<32x64xf32>
    %cst_213 = arith.constant dense<0.000000e+00> : vector<5x64xf32>
    %393 = tpu.matmul %391, %392, %cst_213 {dimension_numbers = #tpu.dot_dimension_numbers<[1], [0], [0], [1], [0, 0, 1, 1], [], []>} : vector<5x32xf32>, vector<32x64xf32>, vector<5x64xf32> -> vector<5x64xf32>
    %394 = arith.addf %390, %393 : vector<5x64xf32>
    %395 = vector.extract_strided_slice %187 {offsets = [0, 0], sizes = [5, 32], strides = [1, 1]} : vector<7x32xf32> to vector<5x32xf32>
    %c192_214 = arith.constant 192 : index
    %c0_215 = arith.constant 0 : index
    %396 = vector.load %arg4[%c192_214, %c0_215] : memref<288x64xf32, #tpu.memory_space<vmem>>, vector<32x64xf32>
    %cst_216 = arith.constant dense<0.000000e+00> : vector<5x64xf32>
    %397 = tpu.matmul %395, %396, %cst_216 {dimension_numbers = #tpu.dot_dimension_numbers<[1], [0], [0], [1], [0, 0, 1, 1], [], []>} : vector<5x32xf32>, vector<32x64xf32>, vector<5x64xf32> -> vector<5x64xf32>
    %398 = arith.addf %394, %397 : vector<5x64xf32>
    %399 = vector.extract_strided_slice %187 {offsets = [1, 0], sizes = [5, 32], strides = [1, 1]} : vector<7x32xf32> to vector<5x32xf32>
    %c224_217 = arith.constant 224 : index
    %c0_218 = arith.constant 0 : index
    %400 = vector.load %arg4[%c224_217, %c0_218] : memref<288x64xf32, #tpu.memory_space<vmem>>, vector<32x64xf32>
    %cst_219 = arith.constant dense<0.000000e+00> : vector<5x64xf32>
    %401 = tpu.matmul %399, %400, %cst_219 {dimension_numbers = #tpu.dot_dimension_numbers<[1], [0], [0], [1], [0, 0, 1, 1], [], []>} : vector<5x32xf32>, vector<32x64xf32>, vector<5x64xf32> -> vector<5x64xf32>
    %402 = arith.addf %398, %401 : vector<5x64xf32>
    %403 = vector.extract_strided_slice %187 {offsets = [2, 0], sizes = [5, 32], strides = [1, 1]} : vector<7x32xf32> to vector<5x32xf32>
    %c256_220 = arith.constant 256 : index
    %c0_221 = arith.constant 0 : index
    %404 = vector.load %arg4[%c256_220, %c0_221] : memref<288x64xf32, #tpu.memory_space<vmem>>, vector<32x64xf32>
    %cst_222 = arith.constant dense<0.000000e+00> : vector<5x64xf32>
    %405 = tpu.matmul %403, %404, %cst_222 {dimension_numbers = #tpu.dot_dimension_numbers<[1], [0], [0], [1], [0, 0, 1, 1], [], []>} : vector<5x32xf32>, vector<32x64xf32>, vector<5x64xf32> -> vector<5x64xf32>
    %406 = arith.addf %402, %405 : vector<5x64xf32>
    %cst_223 = arith.constant 0.000000e+00 : f32
    %407 = vector.broadcast %cst_223 : f32 to vector<5x64xf32>
    %408 = arith.maximumf %406, %407 : vector<5x64xf32>
    %409 = vector.extract_strided_slice %408 {offsets = [0, 0], sizes = [5, 16], strides = [1, 1]} : vector<5x64xf32> to vector<5x16xf32>
    %410 = vector.extract_strided_slice %408 {offsets = [0, 16], sizes = [5, 16], strides = [1, 1]} : vector<5x64xf32> to vector<5x16xf32>
    %411 = arith.maximumf %409, %410 : vector<5x16xf32>
    %412 = vector.extract_strided_slice %408 {offsets = [0, 32], sizes = [5, 16], strides = [1, 1]} : vector<5x64xf32> to vector<5x16xf32>
    %413 = vector.extract_strided_slice %408 {offsets = [0, 48], sizes = [5, 16], strides = [1, 1]} : vector<5x64xf32> to vector<5x16xf32>
    %414 = arith.maximumf %412, %413 : vector<5x16xf32>
    %415 = arith.maximumf %411, %414 : vector<5x16xf32>
    %c0_224 = arith.constant 0 : index
    %c15 = arith.constant 15 : index
    %c0_225 = arith.constant 0 : index
    %416 = vector.load %arg6[%c0_224, %c15, %c0_225] : memref<1x25x16xf32, #tpu.memory_space<vmem>>, vector<1x5x16xf32>
    %417 = vector.shape_cast %416 : vector<1x5x16xf32> to vector<5x16xf32>
    %418 = vector.shape_cast %415 : vector<5x16xf32> to vector<1x5x16xf32>
    tpu.vector_store %arg6[%c0_224, %c15, %c0_225], %418 {strides = array<i32>} : memref<1x25x16xf32, #tpu.memory_space<vmem>>, vector<1x5x16xf32>,
    %c0_226 = arith.constant 0 : index
    %c0_227 = arith.constant 0 : index
    %419 = vector.load %arg5[%c0_226, %c0_227] : memref<1x64xf32, #tpu.memory_space<vmem>>, vector<1x64xf32>
    %420 = vector.extract_strided_slice %156 {offsets = [0, 0], sizes = [5, 32], strides = [1, 1]} : vector<7x32xf32> to vector<5x32xf32>
    %c0_228 = arith.constant 0 : index
    %c0_229 = arith.constant 0 : index
    %421 = vector.load %arg4[%c0_228, %c0_229] : memref<288x64xf32, #tpu.memory_space<vmem>>, vector<32x64xf32>
    %cst_230 = arith.constant dense<0.000000e+00> : vector<5x64xf32>
    %422 = tpu.matmul %420, %421, %cst_230 {dimension_numbers = #tpu.dot_dimension_numbers<[1], [0], [0], [1], [0, 0, 1, 1], [], []>} : vector<5x32xf32>, vector<32x64xf32>, vector<5x64xf32> -> vector<5x64xf32>
    %423 = vector.broadcast %419 : vector<1x64xf32> to vector<5x64xf32>
    %424 = arith.addf %423, %422 : vector<5x64xf32>
    %425 = vector.extract_strided_slice %156 {offsets = [1, 0], sizes = [5, 32], strides = [1, 1]} : vector<7x32xf32> to vector<5x32xf32>
    %c32_231 = arith.constant 32 : index
    %c0_232 = arith.constant 0 : index
    %426 = vector.load %arg4[%c32_231, %c0_232] : memref<288x64xf32, #tpu.memory_space<vmem>>, vector<32x64xf32>
    %cst_233 = arith.constant dense<0.000000e+00> : vector<5x64xf32>
    %427 = tpu.matmul %425, %426, %cst_233 {dimension_numbers = #tpu.dot_dimension_numbers<[1], [0], [0], [1], [0, 0, 1, 1], [], []>} : vector<5x32xf32>, vector<32x64xf32>, vector<5x64xf32> -> vector<5x64xf32>
    %428 = arith.addf %424, %427 : vector<5x64xf32>
    %429 = vector.extract_strided_slice %156 {offsets = [2, 0], sizes = [5, 32], strides = [1, 1]} : vector<7x32xf32> to vector<5x32xf32>
    %c64_234 = arith.constant 64 : index
    %c0_235 = arith.constant 0 : index
    %430 = vector.load %arg4[%c64_234, %c0_235] : memref<288x64xf32, #tpu.memory_space<vmem>>, vector<32x64xf32>
    %cst_236 = arith.constant dense<0.000000e+00> : vector<5x64xf32>
    %431 = tpu.matmul %429, %430, %cst_236 {dimension_numbers = #tpu.dot_dimension_numbers<[1], [0], [0], [1], [0, 0, 1, 1], [], []>} : vector<5x32xf32>, vector<32x64xf32>, vector<5x64xf32> -> vector<5x64xf32>
    %432 = arith.addf %428, %431 : vector<5x64xf32>
    %433 = vector.extract_strided_slice %187 {offsets = [0, 0], sizes = [5, 32], strides = [1, 1]} : vector<7x32xf32> to vector<5x32xf32>
    %c96_237 = arith.constant 96 : index
    %c0_238 = arith.constant 0 : index
    %434 = vector.load %arg4[%c96_237, %c0_238] : memref<288x64xf32, #tpu.memory_space<vmem>>, vector<32x64xf32>
    %cst_239 = arith.constant dense<0.000000e+00> : vector<5x64xf32>
    %435 = tpu.matmul %433, %434, %cst_239 {dimension_numbers = #tpu.dot_dimension_numbers<[1], [0], [0], [1], [0, 0, 1, 1], [], []>} : vector<5x32xf32>, vector<32x64xf32>, vector<5x64xf32> -> vector<5x64xf32>
    %436 = arith.addf %432, %435 : vector<5x64xf32>
    %437 = vector.extract_strided_slice %187 {offsets = [1, 0], sizes = [5, 32], strides = [1, 1]} : vector<7x32xf32> to vector<5x32xf32>
    %c128_240 = arith.constant 128 : index
    %c0_241 = arith.constant 0 : index
    %438 = vector.load %arg4[%c128_240, %c0_241] : memref<288x64xf32, #tpu.memory_space<vmem>>, vector<32x64xf32>
    %cst_242 = arith.constant dense<0.000000e+00> : vector<5x64xf32>
    %439 = tpu.matmul %437, %438, %cst_242 {dimension_numbers = #tpu.dot_dimension_numbers<[1], [0], [0], [1], [0, 0, 1, 1], [], []>} : vector<5x32xf32>, vector<32x64xf32>, vector<5x64xf32> -> vector<5x64xf32>
    %440 = arith.addf %436, %439 : vector<5x64xf32>
    %441 = vector.extract_strided_slice %187 {offsets = [2, 0], sizes = [5, 32], strides = [1, 1]} : vector<7x32xf32> to vector<5x32xf32>
    %c160_243 = arith.constant 160 : index
    %c0_244 = arith.constant 0 : index
    %442 = vector.load %arg4[%c160_243, %c0_244] : memref<288x64xf32, #tpu.memory_space<vmem>>, vector<32x64xf32>
    %cst_245 = arith.constant dense<0.000000e+00> : vector<5x64xf32>
    %443 = tpu.matmul %441, %442, %cst_245 {dimension_numbers = #tpu.dot_dimension_numbers<[1], [0], [0], [1], [0, 0, 1, 1], [], []>} : vector<5x32xf32>, vector<32x64xf32>, vector<5x64xf32> -> vector<5x64xf32>
    %444 = arith.addf %440, %443 : vector<5x64xf32>
    %445 = vector.extract_strided_slice %218 {offsets = [0, 0], sizes = [5, 32], strides = [1, 1]} : vector<7x32xf32> to vector<5x32xf32>
    %c192_246 = arith.constant 192 : index
    %c0_247 = arith.constant 0 : index
    %446 = vector.load %arg4[%c192_246, %c0_247] : memref<288x64xf32, #tpu.memory_space<vmem>>, vector<32x64xf32>
    %cst_248 = arith.constant dense<0.000000e+00> : vector<5x64xf32>
    %447 = tpu.matmul %445, %446, %cst_248 {dimension_numbers = #tpu.dot_dimension_numbers<[1], [0], [0], [1], [0, 0, 1, 1], [], []>} : vector<5x32xf32>, vector<32x64xf32>, vector<5x64xf32> -> vector<5x64xf32>
    %448 = arith.addf %444, %447 : vector<5x64xf32>
    %449 = vector.extract_strided_slice %218 {offsets = [1, 0], sizes = [5, 32], strides = [1, 1]} : vector<7x32xf32> to vector<5x32xf32>
    %c224_249 = arith.constant 224 : index
    %c0_250 = arith.constant 0 : index
    %450 = vector.load %arg4[%c224_249, %c0_250] : memref<288x64xf32, #tpu.memory_space<vmem>>, vector<32x64xf32>
    %cst_251 = arith.constant dense<0.000000e+00> : vector<5x64xf32>
    %451 = tpu.matmul %449, %450, %cst_251 {dimension_numbers = #tpu.dot_dimension_numbers<[1], [0], [0], [1], [0, 0, 1, 1], [], []>} : vector<5x32xf32>, vector<32x64xf32>, vector<5x64xf32> -> vector<5x64xf32>
    %452 = arith.addf %448, %451 : vector<5x64xf32>
    %453 = vector.extract_strided_slice %218 {offsets = [2, 0], sizes = [5, 32], strides = [1, 1]} : vector<7x32xf32> to vector<5x32xf32>
    %c256_252 = arith.constant 256 : index
    %c0_253 = arith.constant 0 : index
    %454 = vector.load %arg4[%c256_252, %c0_253] : memref<288x64xf32, #tpu.memory_space<vmem>>, vector<32x64xf32>
    %cst_254 = arith.constant dense<0.000000e+00> : vector<5x64xf32>
    %455 = tpu.matmul %453, %454, %cst_254 {dimension_numbers = #tpu.dot_dimension_numbers<[1], [0], [0], [1], [0, 0, 1, 1], [], []>} : vector<5x32xf32>, vector<32x64xf32>, vector<5x64xf32> -> vector<5x64xf32>
    %456 = arith.addf %452, %455 : vector<5x64xf32>
    %cst_255 = arith.constant 0.000000e+00 : f32
    %457 = vector.broadcast %cst_255 : f32 to vector<5x64xf32>
    %458 = arith.maximumf %456, %457 : vector<5x64xf32>
    %459 = vector.extract_strided_slice %458 {offsets = [0, 0], sizes = [5, 16], strides = [1, 1]} : vector<5x64xf32> to vector<5x16xf32>
    %460 = vector.extract_strided_slice %458 {offsets = [0, 16], sizes = [5, 16], strides = [1, 1]} : vector<5x64xf32> to vector<5x16xf32>
    %461 = arith.maximumf %459, %460 : vector<5x16xf32>
    %462 = vector.extract_strided_slice %458 {offsets = [0, 32], sizes = [5, 16], strides = [1, 1]} : vector<5x64xf32> to vector<5x16xf32>
    %463 = vector.extract_strided_slice %458 {offsets = [0, 48], sizes = [5, 16], strides = [1, 1]} : vector<5x64xf32> to vector<5x16xf32>
    %464 = arith.maximumf %462, %463 : vector<5x16xf32>
    %465 = arith.maximumf %461, %464 : vector<5x16xf32>
    %c0_256 = arith.constant 0 : index
    %c20 = arith.constant 20 : index
    %c0_257 = arith.constant 0 : index
    %466 = vector.load %arg6[%c0_256, %c20, %c0_257] : memref<1x25x16xf32, #tpu.memory_space<vmem>>, vector<1x5x16xf32>
    %467 = vector.shape_cast %466 : vector<1x5x16xf32> to vector<5x16xf32>
    %468 = vector.shape_cast %465 : vector<5x16xf32> to vector<1x5x16xf32>
    tpu.vector_store %arg6[%c0_256, %c20, %c0_257], %468 {strides = array<i32>} : memref<1x25x16xf32, #tpu.memory_space<vmem>>, vector<1x5x16xf32>,
    return
  }
  func.func @transform_0(%arg0: i32) -> (i32, i32, i32, i32) {
    %c0_i32 = arith.constant 0 : i32
    %c0_i32_0 = arith.constant 0 : i32
    %c0_i32_1 = arith.constant 0 : i32
    %c0_i32_2 = arith.constant 0 : i32
    return %arg0, %c0_i32, %c0_i32_0, %c0_i32_1 : i32, i32, i32, i32
  }
  func.func @transform_1(%arg0: i32) -> (i32, i32) {
    %c0_i32 = arith.constant 0 : i32
    %c0_i32_0 = arith.constant 0 : i32
    %c0_i32_1 = arith.constant 0 : i32
    return %c0_i32, %c0_i32_0 : i32, i32
  }
  func.func @transform_2(%arg0: i32) -> (i32, i32) {
    %c0_i32 = arith.constant 0 : i32
    %c0_i32_0 = arith.constant 0 : i32
    %c0_i32_1 = arith.constant 0 : i32
    return %c0_i32, %c0_i32_0 : i32, i32
  }
  func.func @transform_3(%arg0: i32) -> (i32, i32) {
    %c0_i32 = arith.constant 0 : i32
    %c0_i32_0 = arith.constant 0 : i32
    %c0_i32_1 = arith.constant 0 : i32
    return %c0_i32, %c0_i32_0 : i32, i32
  }
  func.func @transform_4(%arg0: i32) -> (i32, i32) {
    %c0_i32 = arith.constant 0 : i32
    %c0_i32_0 = arith.constant 0 : i32
    %c0_i32_1 = arith.constant 0 : i32
    return %c0_i32, %c0_i32_0 : i32, i32
  }
  func.func @transform_5(%arg0: i32) -> (i32, i32, i32) {
    %c0_i32 = arith.constant 0 : i32
    %c0_i32_0 = arith.constant 0 : i32
    %c0_i32_1 = arith.constant 0 : i32
    return %arg0, %c0_i32, %c0_i32_0 : i32, i32, i32
  }
}

module attributes {stable_mosaic.version = 11 : i64} {
  func.func @_fc_stack_kernel(%arg0: i32, %arg1: memref<2x400xf32, #tpu.memory_space<vmem>>, %arg2: memref<400x128xf32, #tpu.memory_space<vmem>>, %arg3: memref<1x128xf32, #tpu.memory_space<vmem>>, %arg4: memref<128x128xf32, #tpu.memory_space<vmem>>, %arg5: memref<1x128xf32, #tpu.memory_space<vmem>>, %arg6: memref<128x100xf32, #tpu.memory_space<vmem>>, %arg7: memref<1x100xf32, #tpu.memory_space<vmem>>, %arg8: memref<2x100xf32, #tpu.memory_space<vmem>>) attributes {dimension_semantics = [#tpu.dimension_semantics<parallel>], iteration_bounds = array<i64: 1>, scalar_prefetch = 0 : i64, scratch_operands = 0 : i64, tpu.core_type = #tpu.core_type<tc>, window_params = [{transform_indices = @transform_0, window_bounds = array<i64: 2, 400>}, {pipeline_mode = #tpu.pipeline_mode<synchronous>, transform_indices = @transform_1, window_bounds = array<i64: 400, 128>}, {pipeline_mode = #tpu.pipeline_mode<synchronous>, transform_indices = @transform_2, window_bounds = array<i64: 1, 128>}, {pipeline_mode = #tpu.pipeline_mode<synchronous>, transform_indices = @transform_3, window_bounds = array<i64: 128, 128>}, {pipeline_mode = #tpu.pipeline_mode<synchronous>, transform_indices = @transform_4, window_bounds = array<i64: 1, 128>}, {pipeline_mode = #tpu.pipeline_mode<synchronous>, transform_indices = @transform_5, window_bounds = array<i64: 128, 100>}, {pipeline_mode = #tpu.pipeline_mode<synchronous>, transform_indices = @transform_6, window_bounds = array<i64: 1, 100>}, {transform_indices = @transform_7, window_bounds = array<i64: 2, 100>}]} {
    %c0 = arith.constant 0 : index
    %c0_0 = arith.constant 0 : index
    %0 = vector.load %arg1[%c0, %c0_0] : memref<2x400xf32, #tpu.memory_space<vmem>>, vector<2x400xf32>
    %c0_1 = arith.constant 0 : index
    %c0_2 = arith.constant 0 : index
    %1 = vector.load %arg2[%c0_1, %c0_2] : memref<400x128xf32, #tpu.memory_space<vmem>>, vector<400x128xf32>
    %cst = arith.constant dense<0.000000e+00> : vector<2x128xf32>
    %2 = tpu.matmul %0, %1, %cst {dimension_numbers = #tpu.dot_dimension_numbers<[1], [0], [0], [1], [0, 0, 1, 1], [], []>} : vector<2x400xf32>, vector<400x128xf32>, vector<2x128xf32> -> vector<2x128xf32>
    %c0_3 = arith.constant 0 : index
    %c0_4 = arith.constant 0 : index
    %3 = vector.load %arg3[%c0_3, %c0_4] : memref<1x128xf32, #tpu.memory_space<vmem>>, vector<1x128xf32>
    %4 = vector.broadcast %3 : vector<1x128xf32> to vector<2x128xf32>
    %5 = arith.addf %2, %4 : vector<2x128xf32>
    %cst_5 = arith.constant 0.000000e+00 : f32
    %6 = vector.broadcast %cst_5 : f32 to vector<2x128xf32>
    %7 = arith.maximumf %5, %6 : vector<2x128xf32>
    %c0_6 = arith.constant 0 : index
    %c0_7 = arith.constant 0 : index
    %8 = vector.load %arg4[%c0_6, %c0_7] : memref<128x128xf32, #tpu.memory_space<vmem>>, vector<128x128xf32>
    %cst_8 = arith.constant dense<0.000000e+00> : vector<2x128xf32>
    %9 = tpu.matmul %7, %8, %cst_8 {dimension_numbers = #tpu.dot_dimension_numbers<[1], [0], [0], [1], [0, 0, 1, 1], [], []>} : vector<2x128xf32>, vector<128x128xf32>, vector<2x128xf32> -> vector<2x128xf32>
    %c0_9 = arith.constant 0 : index
    %c0_10 = arith.constant 0 : index
    %10 = vector.load %arg5[%c0_9, %c0_10] : memref<1x128xf32, #tpu.memory_space<vmem>>, vector<1x128xf32>
    %11 = vector.broadcast %10 : vector<1x128xf32> to vector<2x128xf32>
    %12 = arith.addf %9, %11 : vector<2x128xf32>
    %cst_11 = arith.constant 0.000000e+00 : f32
    %13 = vector.broadcast %cst_11 : f32 to vector<2x128xf32>
    %14 = arith.maximumf %12, %13 : vector<2x128xf32>
    %c0_12 = arith.constant 0 : index
    %c0_13 = arith.constant 0 : index
    %15 = vector.load %arg6[%c0_12, %c0_13] : memref<128x100xf32, #tpu.memory_space<vmem>>, vector<128x100xf32>
    %cst_14 = arith.constant dense<0.000000e+00> : vector<2x100xf32>
    %16 = tpu.matmul %14, %15, %cst_14 {dimension_numbers = #tpu.dot_dimension_numbers<[1], [0], [0], [1], [0, 0, 1, 1], [], []>} : vector<2x128xf32>, vector<128x100xf32>, vector<2x100xf32> -> vector<2x100xf32>
    %c0_15 = arith.constant 0 : index
    %c0_16 = arith.constant 0 : index
    %17 = vector.load %arg7[%c0_15, %c0_16] : memref<1x100xf32, #tpu.memory_space<vmem>>, vector<1x100xf32>
    %18 = vector.broadcast %17 : vector<1x100xf32> to vector<2x100xf32>
    %19 = arith.addf %16, %18 : vector<2x100xf32>
    %cst_17 = arith.constant dense<0xFF800000> : vector<2xf32>
    %20 = vector.multi_reduction <maximumf>, %19, %cst_17 [1] : vector<2x100xf32> to vector<2xf32>
    %21 = vector.shape_cast %20 : vector<2xf32> to vector<2x1xf32>
    %22 = vector.broadcast %21 : vector<2x1xf32> to vector<2x100xf32>
    %23 = arith.subf %19, %22 : vector<2x100xf32>
    %24 = math.exp %23 : vector<2x100xf32>
    %cst_18 = arith.constant dense<0.000000e+00> : vector<2xf32>
    %25 = vector.multi_reduction <add>, %24, %cst_18 [1] : vector<2x100xf32> to vector<2xf32>
    %26 = vector.shape_cast %25 : vector<2xf32> to vector<2x1xf32>
    %27 = math.log %26 : vector<2x1xf32>
    %28 = vector.broadcast %27 : vector<2x1xf32> to vector<2x100xf32>
    %29 = arith.subf %23, %28 : vector<2x100xf32>
    %c0_19 = arith.constant 0 : index
    %c0_20 = arith.constant 0 : index
    %30 = vector.load %arg8[%c0_19, %c0_20] : memref<2x100xf32, #tpu.memory_space<vmem>>, vector<2x100xf32>
    tpu.vector_store %arg8[%c0_19, %c0_20], %29 {strides = array<i32>} : memref<2x100xf32, #tpu.memory_space<vmem>>, vector<2x100xf32>,
    return
  }
  func.func @transform_0(%arg0: i32) -> (i32, i32) {
    %c0_i32 = arith.constant 0 : i32
    %c0_i32_0 = arith.constant 0 : i32
    return %arg0, %c0_i32 : i32, i32
  }
  func.func @transform_1(%arg0: i32) -> (i32, i32) {
    %c0_i32 = arith.constant 0 : i32
    %c0_i32_0 = arith.constant 0 : i32
    %c0_i32_1 = arith.constant 0 : i32
    return %c0_i32, %c0_i32_0 : i32, i32
  }
  func.func @transform_2(%arg0: i32) -> (i32, i32) {
    %c0_i32 = arith.constant 0 : i32
    %c0_i32_0 = arith.constant 0 : i32
    %c0_i32_1 = arith.constant 0 : i32
    return %c0_i32, %c0_i32_0 : i32, i32
  }
  func.func @transform_3(%arg0: i32) -> (i32, i32) {
    %c0_i32 = arith.constant 0 : i32
    %c0_i32_0 = arith.constant 0 : i32
    %c0_i32_1 = arith.constant 0 : i32
    return %c0_i32, %c0_i32_0 : i32, i32
  }
  func.func @transform_4(%arg0: i32) -> (i32, i32) {
    %c0_i32 = arith.constant 0 : i32
    %c0_i32_0 = arith.constant 0 : i32
    %c0_i32_1 = arith.constant 0 : i32
    return %c0_i32, %c0_i32_0 : i32, i32
  }
  func.func @transform_5(%arg0: i32) -> (i32, i32) {
    %c0_i32 = arith.constant 0 : i32
    %c0_i32_0 = arith.constant 0 : i32
    %c0_i32_1 = arith.constant 0 : i32
    return %c0_i32, %c0_i32_0 : i32, i32
  }
  func.func @transform_6(%arg0: i32) -> (i32, i32) {
    %c0_i32 = arith.constant 0 : i32
    %c0_i32_0 = arith.constant 0 : i32
    %c0_i32_1 = arith.constant 0 : i32
    return %c0_i32, %c0_i32_0 : i32, i32
  }
  func.func @transform_7(%arg0: i32) -> (i32, i32) {
    %c0_i32 = arith.constant 0 : i32
    %c0_i32_0 = arith.constant 0 : i32
    return %arg0, %c0_i32 : i32, i32
  }
}

</mosaic_0001>

<llo_original>
// kernel: cnn_cifar_forward.3
$region0: #{cnn_cifar_forward.3}
  #allocation0 [shape = 'u32[]', space=smem, size = 0x4, offset = 0x4, fixed_abs, tag = 'smem constant byte address 0x4 - core index']
  #allocation1 [shape = 'u32[72,128]{1,0:T(1,128)}', space=vmem, size = 0x9000, scoped, tag = 'internal scratch']
  %s0 = inlined_call_operand.vmem [shape: f32[2,400], index: 0, kind: input, shape index: {}]
  %s1 = inlined_call_operand.vmem [shape: f32[400,128], index: 1, kind: input, shape index: {}]
  %s2 = inlined_call_operand.vmem [shape: f32[1,128], index: 2, kind: input, shape index: {}]
  %s3 = inlined_call_operand.vmem [shape: f32[128,128], index: 3, kind: input, shape index: {}]
  %s4 = inlined_call_operand.vmem [shape: f32[1,128], index: 4, kind: input, shape index: {}]
  %s5 = inlined_call_operand.vmem [shape: f32[128,100], index: 5, kind: input, shape index: {}]
  %s6 = inlined_call_operand.vmem [shape: f32[1,100], index: 6, kind: input, shape index: {}]
  %s7 = inlined_call_operand.hbm [shape: f32[2,100], index: 7, kind: output, shape index: {}]
  %s8 = sld [smem:[#allocation0]]
  $region38: #{cnn_cifar_forward.3} parent=0
    _
  %s10 = ssub.s32 1, %s8
  %s11 = scalar_select 0, %s10, %s8
  $region1: #{cnn_cifar_forward.3} parent=0
    #allocation2 [shape = 'u8[1024]{0}', space=vmem, size = 0x400, scoped, tag = 'output window, operand 0, single buffered']
    #allocation3 [shape = 's32[1]{0}', space=sflag, size = 0x4, scoped, tag = 'scoped memory for cnn_cifar_forward.3']
    %12 = vsyncpa [#allocation3], 0
    // Predicated region
    $region2: #{cnn_cifar_forward.3} parent=1 // pred_check
      _
    $region3: #{cnn_cifar_forward.3} parent=1 // pred_check_branch
      %14 = sbr.rel (0) target = $region5
    $region4: #{cnn_cifar_forward.3} parent=1 // pred_region
      _
    $region5: #{cnn_cifar_forward.3} parent=1 // pred_fallthru
      _
    // Predicated region
    $region6: #{cnn_cifar_forward.3} parent=1 // pred_check
      _
    $region7: #{cnn_cifar_forward.3} parent=1 // pred_check_branch
      %16 = sbr.rel (0) target = $region9
    $region8: #{cnn_cifar_forward.3} parent=1 // pred_region
      _
    $region9: #{cnn_cifar_forward.3} parent=1 // pred_fallthru
      _
    // Predicated region
    $region10: #{cnn_cifar_forward.3} parent=1 // pred_check
      _
    $region11: #{cnn_cifar_forward.3} parent=1 // pred_check_branch
      %18 = sbr.rel (0) target = $region13
    $region12: #{cnn_cifar_forward.3} parent=1 // pred_region
      _
    $region13: #{cnn_cifar_forward.3} parent=1 // pred_fallthru
      _
    // Predicated region
    $region14: #{cnn_cifar_forward.3} parent=1 // pred_check
      _
    $region15: #{cnn_cifar_forward.3} parent=1 // pred_check_branch
      %20 = sbr.rel (0) target = $region17
    $region16: #{cnn_cifar_forward.3} parent=1 // pred_region
      _
    $region17: #{cnn_cifar_forward.3} parent=1 // pred_fallthru
      _
    // Predicated region
    $region18: #{cnn_cifar_forward.3} parent=1 // pred_check
      _
    $region19: #{cnn_cifar_forward.3} parent=1 // pred_check_branch
      %22 = sbr.rel (0) target = $region21
    $region20: #{cnn_cifar_forward.3} parent=1 // pred_region
      _
    $region21: #{cnn_cifar_forward.3} parent=1 // pred_fallthru
      _
    // Predicated region
    $region22: #{cnn_cifar_forward.3} parent=1 // pred_check
      _
    $region23: #{cnn_cifar_forward.3} parent=1 // pred_check_branch
      %24 = sbr.rel (0) target = $region25
    $region24: #{cnn_cifar_forward.3} parent=1 // pred_region
      _
    $region25: #{cnn_cifar_forward.3} parent=1 // pred_fallthru
      _
    // Predicated region
    $region26: #{cnn_cifar_forward.3} parent=1 // pred_check
      _
    $region27: #{cnn_cifar_forward.3} parent=1 // pred_check_branch
      %26 = sbr.rel (0) target = $region29
    $region28: #{cnn_cifar_forward.3} parent=1 // pred_region
      _
    $region29: #{cnn_cifar_forward.3} parent=1 // pred_fallthru
      _
    %v27 = vld [vmem:[%s0] sm:$0xff]
    %v28 = vld [vmem:[%s1] sm:$0xff]
    %v29 = vld [vmem:[%s1 + $0x8] sm:$0xff]
    %v30 = vld [vmem:[%s1 + $0x10] sm:$0xff]
    %v31 = vld [vmem:[%s1 + $0x18] sm:$0xff]
    %v32 = vld [vmem:[%s1 + $0x20] sm:$0xff]
    %v33 = vld [vmem:[%s1 + $0x28] sm:$0xff]
    %v34 = vld [vmem:[%s1 + $0x30] sm:$0xff]
    %v35 = vld [vmem:[%s1 + $0x38] sm:$0xff]
    %v36 = vld [vmem:[%s1 + $0x40] sm:$0xff]
    %v37 = vld [vmem:[%s1 + $0x48] sm:$0xff]
    %v38 = vld [vmem:[%s1 + $0x50] sm:$0xff]
    %v39 = vld [vmem:[%s1 + $0x58] sm:$0xff]
    %v40 = vld [vmem:[%s1 + $0x60] sm:$0xff]
    %v41 = vld [vmem:[%s1 + $0x68] sm:$0xff]
    %v42 = vld [vmem:[%s1 + $0x70] sm:$0xff]
    %v43 = vld [vmem:[%s1 + $0x78] sm:$0xff]
    %v44 = vld [vmem:[%s1 + $0x80] sm:$0xff]
    %v45 = vld [vmem:[%s1 + $0x88] sm:$0xff]
    %v46 = vld [vmem:[%s1 + $0x90] sm:$0xff]
    %v47 = vld [vmem:[%s1 + $0x98] sm:$0xff]
    %v48 = vld [vmem:[%s1 + $0xa0] sm:$0xff]
    %v49 = vld [vmem:[%s1 + $0xa8] sm:$0xff]
    %v50 = vld [vmem:[%s1 + $0xb0] sm:$0xff]
    %v51 = vld [vmem:[%s1 + $0xb8] sm:$0xff]
    %v52 = vld [vmem:[%s1 + $0xc0] sm:$0xff]
    %v53 = vld [vmem:[%s1 + $0xc8] sm:$0xff]
    %v54 = vld [vmem:[%s1 + $0xd0] sm:$0xff]
    %v55 = vld [vmem:[%s1 + $0xd8] sm:$0xff]
    %v56 = vld [vmem:[%s1 + $0xe0] sm:$0xff]
    %v57 = vld [vmem:[%s1 + $0xe8] sm:$0xff]
    %v58 = vld [vmem:[%s1 + $0xf0] sm:$0xff]
    %v59 = vld [vmem:[%s1 + $0xf8] sm:$0xff]
    %v60 = vld [vmem:[%s1 + $0x100] sm:$0xff]
    %v61 = vld [vmem:[%s1 + $0x108] sm:$0xff]
    %v62 = vld [vmem:[%s1 + $0x110] sm:$0xff]
    %v63 = vld [vmem:[%s1 + $0x118] sm:$0xff]
    %v64 = vld [vmem:[%s1 + $0x120] sm:$0xff]
    %v65 = vld [vmem:[%s1 + $0x128] sm:$0xff]
    %v66 = vld [vmem:[%s1 + $0x130] sm:$0xff]
    %v67 = vld [vmem:[%s1 + $0x138] sm:$0xff]
    %v68 = vld [vmem:[%s1 + $0x140] sm:$0xff]
    %v69 = vld [vmem:[%s1 + $0x148] sm:$0xff]
    %v70 = vld [vmem:[%s1 + $0x150] sm:$0xff]
    %v71 = vld [vmem:[%s1 + $0x158] sm:$0xff]
    %v72 = vld [vmem:[%s1 + $0x160] sm:$0xff]
    %v73 = vld [vmem:[%s1 + $0x168] sm:$0xff]
    %v74 = vld [vmem:[%s1 + $0x170] sm:$0xff]
    %v75 = vld [vmem:[%s1 + $0x178] sm:$0xff]
    %v76 = vld [vmem:[%s1 + $0x180] sm:$0xff]
    %v77 = vld [vmem:[%s1 + $0x188] sm:$0xff]
    %v78 = vld [vmem:[%s2] sm:$0x1]
    %v80 = vperm.slane %v78, 0
    %83 = vst [vmem:[#allocation1] ss:$4 sm:$0xff] %v27
    %v84 = vld.sshfl [vmem:[#allocation1] sm:$0xff pattern:$0x73625140]
    %v85 = vld.sshfl [vmem:[#allocation1 + $0x8] sm:$0xff pattern:$0x73625140]
    %v86 = vld.sshfl [vmem:[#allocation1 + $0x10] sm:$0xff pattern:$0x73625140]
    %v87 = vld.sshfl [vmem:[#allocation1 + $0x18] sm:$0xff pattern:$0x73625140]
    %vm91 = vcmask 130048
    %v92 = vsel %vm91, %v87, 0
    %94 = vmatpush.msra.mxu0 %v43
    %95 = vmatpush.msra.mxu0 %v42
    %96 = vmatpush.msra.mxu0 %v41
    %97 = vmatpush.msra.mxu0 %v40
    %98 = vmatpush.msra.mxu0 %v39
    %99 = vmatpush.msra.mxu0 %v38
    %100 = vmatpush.msra.mxu0 %v37
    %101 = vmatpush.msra.mxu0 %v36
    %102 = vmatpush.msra.mxu0 %v35
    %103 = vmatpush.msra.mxu0 %v34
    %104 = vmatpush.msra.mxu0 %v33
    %105 = vmatpush.msra.mxu0 %v32
    %106 = vmatpush.msra.mxu0 %v31
    %107 = vmatpush.msra.mxu0 %v30
    %108 = vmatpush.msra.mxu0 %v29
    %109 = vmatpush.msra.mxu0 %v28
    %110 = vmatmul.f32.gmra.mxu0 %v84
    %v111 = vpop.f32.mrf.mxu0
    %v112 = vadd.f32 %v80, %v111
    %113 = vdwg.mxu0
    %114 = vmatpush.msra.mxu0 %v59
    %115 = vmatpush.msra.mxu0 %v58
    %116 = vmatpush.msra.mxu0 %v57
    %117 = vmatpush.msra.mxu0 %v56
    %118 = vmatpush.msra.mxu0 %v55
    %119 = vmatpush.msra.mxu0 %v54
    %120 = vmatpush.msra.mxu0 %v53
    %121 = vmatpush.msra.mxu0 %v52
    %122 = vmatpush.msra.mxu0 %v51
    %123 = vmatpush.msra.mxu0 %v50
    %124 = vmatpush.msra.mxu0 %v49
    %125 = vmatpush.msra.mxu0 %v48
    %126 = vmatpush.msra.mxu0 %v47
    %127 = vmatpush.msra.mxu0 %v46
    %128 = vmatpush.msra.mxu0 %v45
    %129 = vmatpush.msra.mxu0 %v44
    %130 = vmatmul.f32.gmra.mxu0 %v85
    %v131 = vpop.f32.mrf.mxu0
    %v132 = vadd.f32 %v112, %v131
    %133 = vdwg.mxu0
    %134 = vmatpush.msra.mxu0 %v75
    %135 = vmatpush.msra.mxu0 %v74
    %136 = vmatpush.msra.mxu0 %v73
    %137 = vmatpush.msra.mxu0 %v72
    %138 = vmatpush.msra.mxu0 %v71
    %139 = vmatpush.msra.mxu0 %v70
    %140 = vmatpush.msra.mxu0 %v69
    %141 = vmatpush.msra.mxu0 %v68
    %142 = vmatpush.msra.mxu0 %v67
    %143 = vmatpush.msra.mxu0 %v66
    %144 = vmatpush.msra.mxu0 %v65
    %145 = vmatpush.msra.mxu0 %v64
    %146 = vmatpush.msra.mxu0 %v63
    %147 = vmatpush.msra.mxu0 %v62
    %148 = vmatpush.msra.mxu0 %v61
    %149 = vmatpush.msra.mxu0 %v60
    %150 = vmatmul.f32.gmra.mxu0 %v86
    %v151 = vpop.f32.mrf.mxu0
    %v152 = vadd.f32 %v132, %v151
    %153 = vdwg.mxu0
    %154 = vmatpush.msra.mxu0 0.0
    %155 = vmatpush.msra.mxu0 0.0
    %156 = vmatpush.msra.mxu0 0.0
    %157 = vmatpush.msra.mxu0 0.0
    %158 = vmatpush.msra.mxu0 0.0
    %159 = vmatpush.msra.mxu0 0.0
    %160 = vmatpush.msra.mxu0 0.0
    %161 = vmatpush.msra.mxu0 0.0
    %162 = vmatpush.msra.mxu0 0.0
    %163 = vmatpush.msra.mxu0 0.0
    %164 = vmatpush.msra.mxu0 0.0
    %165 = vmatpush.msra.mxu0 0.0
    %166 = vmatpush.msra.mxu0 0.0
    %167 = vmatpush.msra.mxu0 0.0
    %168 = vmatpush.msra.mxu0 %v77
    %169 = vmatpush.msra.mxu0 %v76
    %170 = vmatmul.f32.gmra.mxu0 %v92
    %v171 = vpop.f32.mrf.mxu0
    %v172 = vadd.f32 %v152, %v171
    %173 = vdwg.mxu0
    %v174 = vmax.f32 %v172, 0.0
    %v175 = vld [vmem:[%s3] sm:$0xff]
    %v176 = vld [vmem:[%s3 + $0x8] sm:$0xff]
    %v177 = vld [vmem:[%s3 + $0x10] sm:$0xff]
    %v178 = vld [vmem:[%s3 + $0x18] sm:$0xff]
    %v179 = vld [vmem:[%s3 + $0x20] sm:$0xff]
    %v180 = vld [vmem:[%s3 + $0x28] sm:$0xff]
    %v181 = vld [vmem:[%s3 + $0x30] sm:$0xff]
    %v182 = vld [vmem:[%s3 + $0x38] sm:$0xff]
    %v183 = vld [vmem:[%s3 + $0x40] sm:$0xff]
    %v184 = vld [vmem:[%s3 + $0x48] sm:$0xff]
    %v185 = vld [vmem:[%s3 + $0x50] sm:$0xff]
    %v186 = vld [vmem:[%s3 + $0x58] sm:$0xff]
    %v187 = vld [vmem:[%s3 + $0x60] sm:$0xff]
    %v188 = vld [vmem:[%s3 + $0x68] sm:$0xff]
    %v189 = vld [vmem:[%s3 + $0x70] sm:$0xff]
    %v190 = vld [vmem:[%s3 + $0x78] sm:$0xff]
    %v191 = vld [vmem:[%s4] sm:$0x1]
    %v193 = vperm.slane %v191, 0
    %195 = vmatpush.msra.mxu0 %v190
    %196 = vmatpush.msra.mxu0 %v189
    %197 = vmatpush.msra.mxu0 %v188
    %198 = vmatpush.msra.mxu0 %v187
    %199 = vmatpush.msra.mxu0 %v186
    %200 = vmatpush.msra.mxu0 %v185
    %201 = vmatpush.msra.mxu0 %v184
    %202 = vmatpush.msra.mxu0 %v183
    %203 = vmatpush.msra.mxu0 %v182
    %204 = vmatpush.msra.mxu0 %v181
    %205 = vmatpush.msra.mxu0 %v180
    %206 = vmatpush.msra.mxu0 %v179
    %207 = vmatpush.msra.mxu0 %v178
    %208 = vmatpush.msra.mxu0 %v177
    %209 = vmatpush.msra.mxu0 %v176
    %210 = vmatpush.msra.mxu0 %v175
    %211 = vmatmul.f32.gmra.mxu0 %v174
    %v212 = vpop.f32.mrf.mxu0
    %v213 = vadd.f32 %v193, %v212
    %214 = vdwg.mxu0
    %v215 = vmax.f32 %v213, 0.0
    %v216 = vld [vmem:[%s5] sm:$0xff]
    %v217 = vld [vmem:[%s5 + $0x8] sm:$0xff]
    %v218 = vld [vmem:[%s5 + $0x10] sm:$0xff]
    %v219 = vld [vmem:[%s5 + $0x18] sm:$0xff]
    %v220 = vld [vmem:[%s5 + $0x20] sm:$0xff]
    %v221 = vld [vmem:[%s5 + $0x28] sm:$0xff]
    %v222 = vld [vmem:[%s5 + $0x30] sm:$0xff]
    %v223 = vld [vmem:[%s5 + $0x38] sm:$0xff]
    %v224 = vld [vmem:[%s5 + $0x40] sm:$0xff]
    %v225 = vld [vmem:[%s5 + $0x48] sm:$0xff]
    %v226 = vld [vmem:[%s5 + $0x50] sm:$0xff]
    %v227 = vld [vmem:[%s5 + $0x58] sm:$0xff]
    %v228 = vld [vmem:[%s5 + $0x60] sm:$0xff]
    %v229 = vld [vmem:[%s5 + $0x68] sm:$0xff]
    %v230 = vld [vmem:[%s5 + $0x70] sm:$0xff]
    %v231 = vld [vmem:[%s5 + $0x78] sm:$0xff]
    %v232 = vld [vmem:[%s6] sm:$0x1]
    %v234 = vperm.slane %v232, 0
    %236 = vmatpush.msra.mxu0 %v231
    %237 = vmatpush.msra.mxu0 %v230
    %238 = vmatpush.msra.mxu0 %v229
    %239 = vmatpush.msra.mxu0 %v228
    %240 = vmatpush.msra.mxu0 %v227
    %241 = vmatpush.msra.mxu0 %v226
    %242 = vmatpush.msra.mxu0 %v225
    %243 = vmatpush.msra.mxu0 %v224
    %244 = vmatpush.msra.mxu0 %v223
    %245 = vmatpush.msra.mxu0 %v222
    %246 = vmatpush.msra.mxu0 %v221
    %247 = vmatpush.msra.mxu0 %v220
    %248 = vmatpush.msra.mxu0 %v219
    %249 = vmatpush.msra.mxu0 %v218
    %250 = vmatpush.msra.mxu0 %v217
    %251 = vmatpush.msra.mxu0 %v216
    %252 = vmatmul.f32.gmra.mxu0 %v215
    %v253 = vpop.f32.mrf.mxu0
    %v254 = vadd.f32 %v234, %v253
    %255 = vdwg.mxu0
    %vm256 = vcmask 812032
    %v257 = vsel %vm256, %v254, -inf
    %258 = vmax.xlane.f32.xlu0 %v257
    %v259 = vpop.xlane.xlu0 %258
    %v260 = vsub.f32 %v254, %v259
    %v261 = vmul.f32 %v260, 1.442695
    %v262 = vpow.pop %v261
    %v263 = vsel %vm256, %v262, 0.0
    %264 = vadd.xlane.f32.xlu0 %v263
    %v265 = vpop.xlane.xlu0 %264
    %v266 = vlog2.pop %v265
    %v267 = vmul.f32 %v266, 0.6931472
    %v268 = vsub.f32 %v260, %v267
    %269 = vst.msk [vmem:[#allocation2] sm:$0x3] %vm256, %v268
    // Predicated region
    $region30: #{cnn_cifar_forward.3} parent=1 // pred_check
      _
    $region31: #{cnn_cifar_forward.3} parent=1 // pred_check_branch
      %271 = sbr.rel (0) target = $region33
    $region32: #{cnn_cifar_forward.3} parent=1 // pred_region
      %273 = vsyncadd [#allocation3], 0
      %s275 = sshll.u32 [#allocation2], 4
      %s276 = int_to_ptr.vmem [resolvable:$true] %s275
      %s277 = sshll.u32 %s7, 4
      %s278 = int_to_ptr.hbm [resolvable:$true] %s277
      %280 = dma.vmem_to_hbm [thread:$0]  %s276, 32, %s278, [#allocation3]
    $region33: #{cnn_cifar_forward.3} parent=1 // pred_fallthru
      _
    // Predicated region
    $region34: #{cnn_cifar_forward.3} parent=1 // pred_check
      _
    $region35: #{cnn_cifar_forward.3} parent=1 // pred_check_branch
      %282 = sbr.rel (0) target = $region37
    $region36: #{cnn_cifar_forward.3} parent=1 // pred_region
      %284 = dma.done [#allocation3], 32
    $region37: #{cnn_cifar_forward.3} parent=1 // pred_fallthru
      _
    %285 = vsyncpa [#allocation3], 1

// kernel: cnn_cifar_forward.2
$region0: #{cnn_cifar_forward.2}
  #allocation0 [shape = 'u32[]', space=smem, size = 0x4, offset = 0x4, fixed_abs, tag = 'smem constant byte address 0x4 - core index']
  #allocation1 [shape = 'u32[72,128]{1,0:T(1,128)}', space=vmem, size = 0x9000, scoped, tag = 'internal scratch']
  %s0 = inlined_call_operand.vmem [shape: f32[2,8,8,48], index: 0, kind: input, shape index: {}]
  %s1 = inlined_call_operand.vmem [shape: f32[192,128], index: 1, kind: input, shape index: {}]
  %s2 = inlined_call_operand.vmem [shape: f32[1,128], index: 2, kind: input, shape index: {}]
  %s3 = inlined_call_operand.vmem [shape: f32[288,64], index: 3, kind: input, shape index: {}]
  %s4 = inlined_call_operand.vmem [shape: f32[1,64], index: 4, kind: input, shape index: {}]
  %s5 = inlined_call_operand.vmem [shape: f32[2,25,16], index: 5, kind: output, shape index: {}]
  %s6 = sld [smem:[#allocation0]]
  $region53: #{cnn_cifar_forward.2} parent=0
    _
  %s8 = ssub.s32 1, %s6
  %s9 = scalar_select 0, %s8, %s6
  loop: start=0, step=1, limit=4
  $region2: #{cnn_cifar_forward.2} parent=0 // loop_pre_header
    _
  $region3: #{cnn_cifar_forward.2} parent=0 // loop_header
    %s11 = sphi 0, %s15
    %p12 = scmp.ge.s32.totalorder %s11, 4
    %s21 = sphi 0, %s23
    %s24 = sphi 0, %s21
    %s25 = sphi 0, %s24
    %s41 = sphi 0, %s25
    %s45 = sphi 0, %s45
    %s47 = sphi 0, %s45
    %s48 = sphi 0, %s47
    %s62 = sphi 0, %s48
    %s66 = sphi 0, %s66
    %s68 = sphi 0, %s66
    %s69 = sphi 0, %s68
    %s83 = sphi 0, %s69
    %s87 = sphi 0, %s87
    %s89 = sphi 0, %s87
    %s90 = sphi 0, %s89
    %s104 = sphi 0, %s90
    %s108 = sphi 0, %s108
    %s110 = sphi 0, %s108
    %s111 = sphi 0, %s110
    %s125 = sphi 0, %s111
    %s131 = sphi 0, %s133
    %s134 = sphi 0, %s131
    %s135 = sphi 0, %s134
    %s151 = sphi 0, %s135
  $region4: #{cnn_cifar_forward.2} parent=0 // loop_header_branch
    %14 = sbr.rel (%p12) target = $region8
  $region5: #{cnn_cifar_forward.2} parent=0 // loop_body
    %s16 = ssub.s32 %s11, 1
    %s17 = ssub.s32 %s11, 2
    %s18 = sadd.s32 %s11, 1
    %s19 = ssub.s32 %s11, %s18
    %p20 = scmp.eq.s32.totalorder %s19, 0
    %s22 = sadd.s32 %s21, 1
    %s23 = scalar_select %p20, %s21, %s22
    %p26 = pneg %p20
    %p27 = scmp.eq.s32.totalorder %s11, 1
    %p28 = por %p26, %p27
    %p29 = scmp.ne.s32.totalorder %s21, %s24
    %p30 = scmp.eq.s32.totalorder %s11, 0
    %p31 = por %p29, %p30
    %p32 = scmp.ne.s32.totalorder %s21, %s24
    %p33 = scmp.eq.s32.totalorder %s16, 1
    %p34 = por %p32, %p33
    %p35 = scmp.ne.s32.totalorder %s24, %s25
    %p36 = scmp.eq.s32.totalorder %s16, 0
    %p37 = por %p35, %p36
    %p38 = scmp.ne.s32.totalorder %s24, %s25
    %p39 = scmp.eq.s32.totalorder %s17, 1
    %p40 = por %p38, %p39
    %p42 = scmp.ne.s32.totalorder %s25, %s41
    %p43 = scmp.eq.s32.totalorder %s17, 0
    %p44 = por %p42, %p43
    %s46 = sadd.s32 %s45, 1
    %p49 = scmp.eq.s32.totalorder %s11, 1
    %p50 = scmp.ne.s32.totalorder %s45, %s47
    %p51 = scmp.eq.s32.totalorder %s11, 0
    %p52 = por %p50, %p51
    %p53 = scmp.ne.s32.totalorder %s45, %s47
    %p54 = scmp.eq.s32.totalorder %s16, 1
    %p55 = por %p53, %p54
    %p56 = scmp.ne.s32.totalorder %s47, %s48
    %p57 = scmp.eq.s32.totalorder %s16, 0
    %p58 = por %p56, %p57
    %p59 = scmp.ne.s32.totalorder %s47, %s48
    %p60 = scmp.eq.s32.totalorder %s17, 1
    %p61 = por %p59, %p60
    %p63 = scmp.ne.s32.totalorder %s48, %s62
    %p64 = scmp.eq.s32.totalorder %s17, 0
    %p65 = por %p63, %p64
    %s67 = sadd.s32 %s66, 1
    %p70 = scmp.eq.s32.totalorder %s11, 1
    %p71 = scmp.ne.s32.totalorder %s66, %s68
    %p72 = scmp.eq.s32.totalorder %s11, 0
    %p73 = por %p71, %p72
    %p74 = scmp.ne.s32.totalorder %s66, %s68
    %p75 = scmp.eq.s32.totalorder %s16, 1
    %p76 = por %p74, %p75
    %p77 = scmp.ne.s32.totalorder %s68, %s69
    %p78 = scmp.eq.s32.totalorder %s16, 0
    %p79 = por %p77, %p78
    %p80 = scmp.ne.s32.totalorder %s68, %s69
    %p81 = scmp.eq.s32.totalorder %s17, 1
    %p82 = por %p80, %p81
    %p84 = scmp.ne.s32.totalorder %s69, %s83
    %p85 = scmp.eq.s32.totalorder %s17, 0
    %p86 = por %p84, %p85
    %s88 = sadd.s32 %s87, 1
    %p91 = scmp.eq.s32.totalorder %s11, 1
    %p92 = scmp.ne.s32.totalorder %s87, %s89
    %p93 = scmp.eq.s32.totalorder %s11, 0
    %p94 = por %p92, %p93
    %p95 = scmp.ne.s32.totalorder %s87, %s89
    %p96 = scmp.eq.s32.totalorder %s16, 1
    %p97 = por %p95, %p96
    %p98 = scmp.ne.s32.totalorder %s89, %s90
    %p99 = scmp.eq.s32.totalorder %s16, 0
    %p100 = por %p98, %p99
    %p101 = scmp.ne.s32.totalorder %s89, %s90
    %p102 = scmp.eq.s32.totalorder %s17, 1
    %p103 = por %p101, %p102
    %p105 = scmp.ne.s32.totalorder %s90, %s104
    %p106 = scmp.eq.s32.totalorder %s17, 0
    %p107 = por %p105, %p106
    %s109 = sadd.s32 %s108, 1
    %p112 = scmp.eq.s32.totalorder %s11, 1
    %p113 = scmp.ne.s32.totalorder %s108, %s110
    %p114 = scmp.eq.s32.totalorder %s11, 0
    %p115 = por %p113, %p114
    %p116 = scmp.ne.s32.totalorder %s108, %s110
    %p117 = scmp.eq.s32.totalorder %s16, 1
    %p118 = por %p116, %p117
    %p119 = scmp.ne.s32.totalorder %s110, %s111
    %p120 = scmp.eq.s32.totalorder %s16, 0
    %p121 = por %p119, %p120
    %p122 = scmp.ne.s32.totalorder %s110, %s111
    %p123 = scmp.eq.s32.totalorder %s17, 1
    %p124 = por %p122, %p123
    %p126 = scmp.ne.s32.totalorder %s111, %s125
    %p127 = scmp.eq.s32.totalorder %s17, 0
    %p128 = por %p126, %p127
    %s129 = ssub.s32 %s11, %s18
    %p130 = scmp.eq.s32.totalorder %s129, 0
    %s132 = sadd.s32 %s131, 1
    %s133 = scalar_select %p130, %s131, %s132
    %p136 = pneg %p130
    %p137 = scmp.eq.s32.totalorder %s11, 1
    %p138 = por %p136, %p137
    %p139 = scmp.ne.s32.totalorder %s131, %s134
    %p140 = scmp.eq.s32.totalorder %s11, 0
    %p141 = por %p139, %p140
    %p142 = scmp.ne.s32.totalorder %s131, %s134
    %p143 = scmp.eq.s32.totalorder %s16, 1
    %p144 = por %p142, %p143
    %p145 = scmp.ne.s32.totalorder %s134, %s135
    %p146 = scmp.eq.s32.totalorder %s16, 0
    %p147 = por %p145, %p146
    %p148 = scmp.ne.s32.totalorder %s134, %s135
    %p149 = scmp.eq.s32.totalorder %s17, 1
    %p150 = por %p148, %p149
    %p152 = scmp.ne.s32.totalorder %s135, %s151
    %p153 = scmp.eq.s32.totalorder %s17, 0
    %p154 = por %p152, %p153
    %p155 = scmp.le.s32.totalorder 1, %s11
    %p156 = scmp.lt.s32.totalorder %s11, 3
    %p157 = pnand %p155, %p156
    %p158 = pneg %p157
    // Predicated region
    $region9: #{cnn_cifar_forward.2} parent=5 // pred_check
      _
    $region10: #{cnn_cifar_forward.2} parent=5 // pred_check_branch
      %160 = sbr.rel (%p157) target = $region12
    $region11: #{cnn_cifar_forward.2} parent=5 // pred_region
      %s161 = ssub.s32 %s11, 1
      // Predicated region
      $region13: #{cnn_cifar_forward.2} parent=11 // pred_check
        %p162 = pneg %p58
      $region14: #{cnn_cifar_forward.2} parent=11 // pred_check_branch
        %164 = sbr.rel (%p162) target = $region16
      $region15: #{cnn_cifar_forward.2} parent=11 // pred_region
        _
      $region16: #{cnn_cifar_forward.2} parent=11 // pred_fallthru
        _
      // Predicated region
      $region17: #{cnn_cifar_forward.2} parent=11 // pred_check
        %p165 = pneg %p79
      $region18: #{cnn_cifar_forward.2} parent=11 // pred_check_branch
        %167 = sbr.rel (%p165) target = $region20
      $region19: #{cnn_cifar_forward.2} parent=11 // pred_region
        _
      $region20: #{cnn_cifar_forward.2} parent=11 // pred_fallthru
        _
      // Predicated region
      $region21: #{cnn_cifar_forward.2} parent=11 // pred_check
        %p168 = pneg %p100
      $region22: #{cnn_cifar_forward.2} parent=11 // pred_check_branch
        %170 = sbr.rel (%p168) target = $region24
      $region23: #{cnn_cifar_forward.2} parent=11 // pred_region
        _
      $region24: #{cnn_cifar_forward.2} parent=11 // pred_fallthru
        _
      // Predicated region
      $region25: #{cnn_cifar_forward.2} parent=11 // pred_check
        %p171 = pneg %p121
      $region26: #{cnn_cifar_forward.2} parent=11 // pred_check_branch
        %173 = sbr.rel (%p171) target = $region28
      $region27: #{cnn_cifar_forward.2} parent=11 // pred_region
        _
      $region28: #{cnn_cifar_forward.2} parent=11 // pred_fallthru
        _
    $region12: #{cnn_cifar_forward.2} parent=5 // pred_fallthru
      _
    %p174 = scmp.lt.s32.totalorder %s11, 2
    // Predicated region
    $region29: #{cnn_cifar_forward.2} parent=5 // pred_check
      %p175 = pneg %p174
    $region30: #{cnn_cifar_forward.2} parent=5 // pred_check_branch
      %177 = sbr.rel (%p175) target = $region32
    $region31: #{cnn_cifar_forward.2} parent=5 // pred_region
      // Predicated region
      $region33: #{cnn_cifar_forward.2} parent=31 // pred_check
        %p178 = pneg %p31
      $region34: #{cnn_cifar_forward.2} parent=31 // pred_check_branch
        %180 = sbr.rel (%p178) target = $region36
      $region35: #{cnn_cifar_forward.2} parent=31 // pred_region
        %p181 = scmp.lt.s32.totalorder %s11, 1
        %s182 = scalar_select %p181, %s11, 1
        %s183 = smul.addr %s182, 8
        %s184 = smul.addr %s183, 8
        %s185 = scalar_lea.vmem %s0, %s184
      $region36: #{cnn_cifar_forward.2} parent=31 // pred_fallthru
        _
    $region32: #{cnn_cifar_forward.2} parent=5 // pred_fallthru
      _
    %p186 = scmp.le.s32.totalorder 1, %s11
    %p187 = scmp.lt.s32.totalorder %s11, 3
    %p188 = pnand %p186, %p187
    %p189 = pneg %p188
    // Predicated region
    $region37: #{cnn_cifar_forward.2} parent=5 // pred_check
      _
    $region38: #{cnn_cifar_forward.2} parent=5 // pred_check_branch
      %191 = sbr.rel (%p188) target = $region40
    $region39: #{cnn_cifar_forward.2} parent=5 // pred_region
      %s192 = ssub.s32 %s11, 1
      %p193 = scmp.lt.s32.totalorder %s16, 1
      %s194 = scalar_select %p193, %s16, 1
      %s195 = smul.addr %s194, 8
      %s196 = smul.addr %s195, 8
      %s197 = scalar_lea.vmem %s0, %s196
      %p198 = pneg %p37
      %p199 = pneg %p34
      %p200 = pneg %p58
      %p201 = pneg %p55
      %p202 = pneg %p79
      %p203 = pneg %p76
      %p204 = pneg %p100
      %p205 = pneg %p97
      %p206 = pneg %p121
      %p207 = pneg %p118
      %p208 = pneg %p147
      %p209 = pneg %p144
      %p210 = scmp.lt.s32.totalorder %s16, 1
      %s211 = scalar_select %p210, %s16, 1
      %s212 = smul.addr %s211, 4
      %s213 = smul.addr %s212, 8
      %s214 = scalar_lea.vmem %s5, %s213
      %p215 = scmp.lt.s32.totalorder %s16, 1
      %s216 = scalar_select %p215, %s16, 1
      %s217 = smul.addr %s216, 8
      %s218 = smul.addr %s217, 8
      %s219 = scalar_lea.vmem %s0, %s218
      %p220 = scmp.lt.s32.totalorder %s16, 1
      %s221 = scalar_select %p220, %s16, 1
      %s222 = smul.addr %s221, 4
      %s223 = smul.addr %s222, 8
      %s224 = scalar_lea.vmem %s5, %s223
      %v225 = vld [vmem:[%s219] sm:$0xff]
      %v226 = vld [vmem:[%s219 + $0x8] sm:$0xff]
      %v227 = vld [vmem:[%s219 + $0x10] sm:$0xff]
      %v228 = vld [vmem:[%s219 + $0x18] sm:$0xff]
      %v229 = vld [vmem:[%s219 + $0x20] sm:$0xff]
      %v230 = vld [vmem:[%s219 + $0x28] sm:$0xff]
      %v231 = vld [vmem:[%s219 + $0x30] sm:$0xff]
      %v232 = vld [vmem:[%s219 + $0x38] sm:$0xff]
      %v233 = vld [vmem:[%s2] sm:$0x1]
      %v234 = vld [vmem:[%s1] sm:$0xff]
      %v235 = vld [vmem:[%s1 + $0x8] sm:$0xff]
      %v236 = vld [vmem:[%s1 + $0x10] sm:$0xff]
      %v237 = vld [vmem:[%s1 + $0x18] sm:$0xff]
      %v238 = vld [vmem:[%s1 + $0x20] sm:$0xff]
      %v239 = vld [vmem:[%s1 + $0x28] sm:$0xff]
      %vm240 = vcmask 392192
      %v242 = vsel %vm240, %v225, 0
      %244 = vmatpush.msra.mxu0 0.0
      %245 = vmatpush.msra.mxu0 0.0
      %246 = vmatpush.msra.mxu0 0.0
      %247 = vmatpush.msra.mxu0 0.0
      %248 = vmatpush.msra.mxu0 0.0
      %249 = vmatpush.msra.mxu0 0.0
      %250 = vmatpush.msra.mxu0 0.0
      %251 = vmatpush.msra.mxu0 0.0
      %252 = vmatpush.msra.mxu0 0.0
      %253 = vmatpush.msra.mxu0 0.0
      %254 = vmatpush.msra.mxu0 %v239
      %255 = vmatpush.msra.mxu0 %v238
      %256 = vmatpush.msra.mxu0 %v237
      %257 = vmatpush.msra.mxu0 %v236
      %258 = vmatpush.msra.mxu0 %v235
      %259 = vmatpush.msra.mxu0 %v234
      %260 = vmatmul.f32.gmra.mxu0 %v242
      %v261 = vpop.f32.mrf.mxu0
      %v262 = vadd.f32 0.0, %v261
      %263 = vdwg.mxu0
      %v265 = vperm.slane %v233, 0
      %v267 = vadd.f32 %v265, %v262
      %v268 = vld [vmem:[%s1 + $0x30] sm:$0xff]
      %v269 = vld [vmem:[%s1 + $0x38] sm:$0xff]
      %v270 = vld [vmem:[%s1 + $0x40] sm:$0xff]
      %v271 = vld [vmem:[%s1 + $0x48] sm:$0xff]
      %v272 = vld [vmem:[%s1 + $0x50] sm:$0xff]
      %v273 = vld [vmem:[%s1 + $0x58] sm:$0xff]
      %v274 = vrot.slane %v225, 1
      %v275 = vsel %vm240, %v274, 0
      %277 = vmatpush.msra.mxu0 0.0
      %278 = vmatpush.msra.mxu0 0.0
      %279 = vmatpush.msra.mxu0 0.0
      %280 = vmatpush.msra.mxu0 0.0
      %281 = vmatpush.msra.mxu0 0.0
      %282 = vmatpush.msra.mxu0 0.0
      %283 = vmatpush.msra.mxu0 0.0
      %284 = vmatpush.msra.mxu0 0.0
      %285 = vmatpush.msra.mxu0 0.0
      %286 = vmatpush.msra.mxu0 0.0
      %287 = vmatpush.msra.mxu0 %v273
      %288 = vmatpush.msra.mxu0 %v272
      %289 = vmatpush.msra.mxu0 %v271
      %290 = vmatpush.msra.mxu0 %v270
      %291 = vmatpush.msra.mxu0 %v269
      %292 = vmatpush.msra.mxu0 %v268
      %293 = vmatmul.f32.gmra.mxu0 %v275
      %v294 = vpop.f32.mrf.mxu0
      %v295 = vadd.f32 0.0, %v294
      %296 = vdwg.mxu0
      %v297 = vadd.f32 %v267, %v295
      %v298 = vld [vmem:[%s1 + $0x60] sm:$0xff]
      %v299 = vld [vmem:[%s1 + $0x68] sm:$0xff]
      %v300 = vld [vmem:[%s1 + $0x70] sm:$0xff]
      %v301 = vld [vmem:[%s1 + $0x78] sm:$0xff]
      %v302 = vld [vmem:[%s1 + $0x80] sm:$0xff]
      %v303 = vld [vmem:[%s1 + $0x88] sm:$0xff]
      %v305 = vsel %vm240, %v226, 0
      %307 = vmatpush.msra.mxu0 0.0
      %308 = vmatpush.msra.mxu0 0.0
      %309 = vmatpush.msra.mxu0 0.0
      %310 = vmatpush.msra.mxu0 0.0
      %311 = vmatpush.msra.mxu0 0.0
      %312 = vmatpush.msra.mxu0 0.0
      %313 = vmatpush.msra.mxu0 0.0
      %314 = vmatpush.msra.mxu0 0.0
      %315 = vmatpush.msra.mxu0 0.0
      %316 = vmatpush.msra.mxu0 0.0
      %317 = vmatpush.msra.mxu0 %v303
      %318 = vmatpush.msra.mxu0 %v302
      %319 = vmatpush.msra.mxu0 %v301
      %320 = vmatpush.msra.mxu0 %v300
      %321 = vmatpush.msra.mxu0 %v299
      %322 = vmatpush.msra.mxu0 %v298
      %323 = vmatmul.f32.gmra.mxu0 %v305
      %v324 = vpop.f32.mrf.mxu0
      %v325 = vadd.f32 0.0, %v324
      %326 = vdwg.mxu0
      %v327 = vadd.f32 %v297, %v325
      %v328 = vld [vmem:[%s1 + $0x90] sm:$0xff]
      %v329 = vld [vmem:[%s1 + $0x98] sm:$0xff]
      %v330 = vld [vmem:[%s1 + $0xa0] sm:$0xff]
      %v331 = vld [vmem:[%s1 + $0xa8] sm:$0xff]
      %v332 = vld [vmem:[%s1 + $0xb0] sm:$0xff]
      %v333 = vld [vmem:[%s1 + $0xb8] sm:$0xff]
      %v334 = vrot.slane %v226, 1
      %v335 = vsel %vm240, %v334, 0
      %337 = vmatpush.msra.mxu0 0.0
      %338 = vmatpush.msra.mxu0 0.0
      %339 = vmatpush.msra.mxu0 0.0
      %340 = vmatpush.msra.mxu0 0.0
      %341 = vmatpush.msra.mxu0 0.0
      %342 = vmatpush.msra.mxu0 0.0
      %343 = vmatpush.msra.mxu0 0.0
      %344 = vmatpush.msra.mxu0 0.0
      %345 = vmatpush.msra.mxu0 0.0
      %346 = vmatpush.msra.mxu0 0.0
      %347 = vmatpush.msra.mxu0 %v333
      %348 = vmatpush.msra.mxu0 %v332
      %349 = vmatpush.msra.mxu0 %v331
      %350 = vmatpush.msra.mxu0 %v330
      %351 = vmatpush.msra.mxu0 %v329
      %352 = vmatpush.msra.mxu0 %v328
      %353 = vmatmul.f32.gmra.mxu0 %v335
      %v354 = vpop.f32.mrf.mxu0
      %v355 = vadd.f32 0.0, %v354
      %356 = vdwg.mxu0
      %v357 = vadd.f32 %v327, %v355
      %v358 = vmax.f32 %v357, 0.0
      %360 = vrot.lane.b32.xlu0 %v358, 96
      %v361 = vpop.permute.xlu0 %360
      %v363 = vmax.f32 %v358, %v361
      %365 = vrot.lane.b32.xlu0 %v363, 64
      %v366 = vpop.permute.xlu0 %365
      %v368 = vmax.f32 %v363, %v366
      %369 = vmatpush.msra.mxu0 0.0
      %370 = vmatpush.msra.mxu0 0.0
      %371 = vmatpush.msra.mxu0 0.0
      %372 = vmatpush.msra.mxu0 0.0
      %373 = vmatpush.msra.mxu0 0.0
      %374 = vmatpush.msra.mxu0 0.0
      %375 = vmatpush.msra.mxu0 0.0
      %376 = vmatpush.msra.mxu0 0.0
      %377 = vmatpush.msra.mxu0 0.0
      %378 = vmatpush.msra.mxu0 0.0
      %379 = vmatpush.msra.mxu0 %v239
      %380 = vmatpush.msra.mxu0 %v238
      %381 = vmatpush.msra.mxu0 %v237
      %382 = vmatpush.msra.mxu0 %v236
      %383 = vmatpush.msra.mxu0 %v235
      %384 = vmatpush.msra.mxu0 %v234
      %385 = vmatmul.f32.gmra.mxu0 %v305
      %v386 = vpop.f32.mrf.mxu0
      %v387 = vadd.f32 0.0, %v386
      %388 = vdwg.mxu0
      %v389 = vadd.f32 %v265, %v387
      %390 = vmatpush.msra.mxu0 0.0
      %391 = vmatpush.msra.mxu0 0.0
      %392 = vmatpush.msra.mxu0 0.0
      %393 = vmatpush.msra.mxu0 0.0
      %394 = vmatpush.msra.mxu0 0.0
      %395 = vmatpush.msra.mxu0 0.0
      %396 = vmatpush.msra.mxu0 0.0
      %397 = vmatpush.msra.mxu0 0.0
      %398 = vmatpush.msra.mxu0 0.0
      %399 = vmatpush.msra.mxu0 0.0
      %400 = vmatpush.msra.mxu0 %v273
      %401 = vmatpush.msra.mxu0 %v272
      %402 = vmatpush.msra.mxu0 %v271
      %403 = vmatpush.msra.mxu0 %v270
      %404 = vmatpush.msra.mxu0 %v269
      %405 = vmatpush.msra.mxu0 %v268
      %406 = vmatmul.f32.gmra.mxu0 %v335
      %v407 = vpop.f32.mrf.mxu0
      %v408 = vadd.f32 0.0, %v407
      %409 = vdwg.mxu0
      %v410 = vadd.f32 %v389, %v408
      %v412 = vsel %vm240, %v227, 0
      %414 = vmatpush.msra.mxu0 0.0
      %415 = vmatpush.msra.mxu0 0.0
      %416 = vmatpush.msra.mxu0 0.0
      %417 = vmatpush.msra.mxu0 0.0
      %418 = vmatpush.msra.mxu0 0.0
      %419 = vmatpush.msra.mxu0 0.0
      %420 = vmatpush.msra.mxu0 0.0
      %421 = vmatpush.msra.mxu0 0.0
      %422 = vmatpush.msra.mxu0 0.0
      %423 = vmatpush.msra.mxu0 0.0
      %424 = vmatpush.msra.mxu0 %v303
      %425 = vmatpush.msra.mxu0 %v302
      %426 = vmatpush.msra.mxu0 %v301
      %427 = vmatpush.msra.mxu0 %v300
      %428 = vmatpush.msra.mxu0 %v299
      %429 = vmatpush.msra.mxu0 %v298
      %430 = vmatmul.f32.gmra.mxu0 %v412
      %v431 = vpop.f32.mrf.mxu0
      %v432 = vadd.f32 0.0, %v431
      %433 = vdwg.mxu0
      %v434 = vadd.f32 %v410, %v432
      %v435 = vrot.slane %v227, 1
      %v436 = vsel %vm240, %v435, 0
      %438 = vmatpush.msra.mxu0 0.0
      %439 = vmatpush.msra.mxu0 0.0
      %440 = vmatpush.msra.mxu0 0.0
      %441 = vmatpush.msra.mxu0 0.0
      %442 = vmatpush.msra.mxu0 0.0
      %443 = vmatpush.msra.mxu0 0.0
      %444 = vmatpush.msra.mxu0 0.0
      %445 = vmatpush.msra.mxu0 0.0
      %446 = vmatpush.msra.mxu0 0.0
      %447 = vmatpush.msra.mxu0 0.0
      %448 = vmatpush.msra.mxu0 %v333
      %449 = vmatpush.msra.mxu0 %v332
      %450 = vmatpush.msra.mxu0 %v331
      %451 = vmatpush.msra.mxu0 %v330
      %452 = vmatpush.msra.mxu0 %v329
      %453 = vmatpush.msra.mxu0 %v328
      %454 = vmatmul.f32.gmra.mxu0 %v436
      %v455 = vpop.f32.mrf.mxu0
      %v456 = vadd.f32 0.0, %v455
      %457 = vdwg.mxu0
      %v458 = vadd.f32 %v434, %v456
      %v459 = vmax.f32 %v458, 0.0
      %461 = vrot.lane.b32.xlu0 %v459, 96
      %v462 = vpop.permute.xlu0 %461
      %v464 = vmax.f32 %v459, %v462
      %466 = vrot.lane.b32.xlu0 %v464, 64
      %v467 = vpop.permute.xlu0 %466
      %v469 = vmax.f32 %v464, %v467
      %470 = vmatpush.msra.mxu0 0.0
      %471 = vmatpush.msra.mxu0 0.0
      %472 = vmatpush.msra.mxu0 0.0
      %473 = vmatpush.msra.mxu0 0.0
      %474 = vmatpush.msra.mxu0 0.0
      %475 = vmatpush.msra.mxu0 0.0
      %476 = vmatpush.msra.mxu0 0.0
      %477 = vmatpush.msra.mxu0 0.0
      %478 = vmatpush.msra.mxu0 0.0
      %479 = vmatpush.msra.mxu0 0.0
      %480 = vmatpush.msra.mxu0 %v239
      %481 = vmatpush.msra.mxu0 %v238
      %482 = vmatpush.msra.mxu0 %v237
      %483 = vmatpush.msra.mxu0 %v236
      %484 = vmatpush.msra.mxu0 %v235
      %485 = vmatpush.msra.mxu0 %v234
      %486 = vmatmul.f32.gmra.mxu0 %v412
      %v487 = vpop.f32.mrf.mxu0
      %v488 = vadd.f32 0.0, %v487
      %489 = vdwg.mxu0
      %v490 = vadd.f32 %v265, %v488
      %491 = vmatpush.msra.mxu0 0.0
      %492 = vmatpush.msra.mxu0 0.0
      %493 = vmatpush.msra.mxu0 0.0
      %494 = vmatpush.msra.mxu0 0.0
      %495 = vmatpush.msra.mxu0 0.0
      %496 = vmatpush.msra.mxu0 0.0
      %497 = vmatpush.msra.mxu0 0.0
      %498 = vmatpush.msra.mxu0 0.0
      %499 = vmatpush.msra.mxu0 0.0
      %500 = vmatpush.msra.mxu0 0.0
      %501 = vmatpush.msra.mxu0 %v273
      %502 = vmatpush.msra.mxu0 %v272
      %503 = vmatpush.msra.mxu0 %v271
      %504 = vmatpush.msra.mxu0 %v270
      %505 = vmatpush.msra.mxu0 %v269
      %506 = vmatpush.msra.mxu0 %v268
      %507 = vmatmul.f32.gmra.mxu0 %v436
      %v508 = vpop.f32.mrf.mxu0
      %v509 = vadd.f32 0.0, %v508
      %510 = vdwg.mxu0
      %v511 = vadd.f32 %v490, %v509
      %v513 = vsel %vm240, %v228, 0
      %515 = vmatpush.msra.mxu0 0.0
      %516 = vmatpush.msra.mxu0 0.0
      %517 = vmatpush.msra.mxu0 0.0
      %518 = vmatpush.msra.mxu0 0.0
      %519 = vmatpush.msra.mxu0 0.0
      %520 = vmatpush.msra.mxu0 0.0
      %521 = vmatpush.msra.mxu0 0.0
      %522 = vmatpush.msra.mxu0 0.0
      %523 = vmatpush.msra.mxu0 0.0
      %524 = vmatpush.msra.mxu0 0.0
      %525 = vmatpush.msra.mxu0 %v303
      %526 = vmatpush.msra.mxu0 %v302
      %527 = vmatpush.msra.mxu0 %v301
      %528 = vmatpush.msra.mxu0 %v300
      %529 = vmatpush.msra.mxu0 %v299
      %530 = vmatpush.msra.mxu0 %v298
      %531 = vmatmul.f32.gmra.mxu0 %v513
      %v532 = vpop.f32.mrf.mxu0
      %v533 = vadd.f32 0.0, %v532
      %534 = vdwg.mxu0
      %v535 = vadd.f32 %v511, %v533
      %v536 = vrot.slane %v228, 1
      %v537 = vsel %vm240, %v536, 0
      %539 = vmatpush.msra.mxu0 0.0
      %540 = vmatpush.msra.mxu0 0.0
      %541 = vmatpush.msra.mxu0 0.0
      %542 = vmatpush.msra.mxu0 0.0
      %543 = vmatpush.msra.mxu0 0.0
      %544 = vmatpush.msra.mxu0 0.0
      %545 = vmatpush.msra.mxu0 0.0
      %546 = vmatpush.msra.mxu0 0.0
      %547 = vmatpush.msra.mxu0 0.0
      %548 = vmatpush.msra.mxu0 0.0
      %549 = vmatpush.msra.mxu0 %v333
      %550 = vmatpush.msra.mxu0 %v332
      %551 = vmatpush.msra.mxu0 %v331
      %552 = vmatpush.msra.mxu0 %v330
      %553 = vmatpush.msra.mxu0 %v329
      %554 = vmatpush.msra.mxu0 %v328
      %555 = vmatmul.f32.gmra.mxu0 %v537
      %v556 = vpop.f32.mrf.mxu0
      %v557 = vadd.f32 0.0, %v556
      %558 = vdwg.mxu0
      %v559 = vadd.f32 %v535, %v557
      %v560 = vmax.f32 %v559, 0.0
      %562 = vrot.lane.b32.xlu0 %v560, 96
      %v563 = vpop.permute.xlu0 %562
      %v565 = vmax.f32 %v560, %v563
      %567 = vrot.lane.b32.xlu0 %v565, 64
      %v568 = vpop.permute.xlu0 %567
      %v570 = vmax.f32 %v565, %v568
      %571 = vmatpush.msra.mxu0 0.0
      %572 = vmatpush.msra.mxu0 0.0
      %573 = vmatpush.msra.mxu0 0.0
      %574 = vmatpush.msra.mxu0 0.0
      %575 = vmatpush.msra.mxu0 0.0
      %576 = vmatpush.msra.mxu0 0.0
      %577 = vmatpush.msra.mxu0 0.0
      %578 = vmatpush.msra.mxu0 0.0
      %579 = vmatpush.msra.mxu0 0.0
      %580 = vmatpush.msra.mxu0 0.0
      %581 = vmatpush.msra.mxu0 %v239
      %582 = vmatpush.msra.mxu0 %v238
      %583 = vmatpush.msra.mxu0 %v237
      %584 = vmatpush.msra.mxu0 %v236
      %585 = vmatpush.msra.mxu0 %v235
      %586 = vmatpush.msra.mxu0 %v234
      %587 = vmatmul.f32.gmra.mxu0 %v513
      %v588 = vpop.f32.mrf.mxu0
      %v589 = vadd.f32 0.0, %v588
      %590 = vdwg.mxu0
      %v591 = vadd.f32 %v265, %v589
      %592 = vmatpush.msra.mxu0 0.0
      %593 = vmatpush.msra.mxu0 0.0
      %594 = vmatpush.msra.mxu0 0.0
      %595 = vmatpush.msra.mxu0 0.0
      %596 = vmatpush.msra.mxu0 0.0
      %597 = vmatpush.msra.mxu0 0.0
      %598 = vmatpush.msra.mxu0 0.0
      %599 = vmatpush.msra.mxu0 0.0
      %600 = vmatpush.msra.mxu0 0.0
      %601 = vmatpush.msra.mxu0 0.0
      %602 = vmatpush.msra.mxu0 %v273
      %603 = vmatpush.msra.mxu0 %v272
      %604 = vmatpush.msra.mxu0 %v271
      %605 = vmatpush.msra.mxu0 %v270
      %606 = vmatpush.msra.mxu0 %v269
      %607 = vmatpush.msra.mxu0 %v268
      %608 = vmatmul.f32.gmra.mxu0 %v537
      %v609 = vpop.f32.mrf.mxu0
      %v610 = vadd.f32 0.0, %v609
      %611 = vdwg.mxu0
      %v612 = vadd.f32 %v591, %v610
      %v614 = vsel %vm240, %v229, 0
      %616 = vmatpush.msra.mxu0 0.0
      %617 = vmatpush.msra.mxu0 0.0
      %618 = vmatpush.msra.mxu0 0.0
      %619 = vmatpush.msra.mxu0 0.0
      %620 = vmatpush.msra.mxu0 0.0
      %621 = vmatpush.msra.mxu0 0.0
      %622 = vmatpush.msra.mxu0 0.0
      %623 = vmatpush.msra.mxu0 0.0
      %624 = vmatpush.msra.mxu0 0.0
      %625 = vmatpush.msra.mxu0 0.0
      %626 = vmatpush.msra.mxu0 %v303
      %627 = vmatpush.msra.mxu0 %v302
      %628 = vmatpush.msra.mxu0 %v301
      %629 = vmatpush.msra.mxu0 %v300
      %630 = vmatpush.msra.mxu0 %v299
      %631 = vmatpush.msra.mxu0 %v298
      %632 = vmatmul.f32.gmra.mxu0 %v614
      %v633 = vpop.f32.mrf.mxu0
      %v634 = vadd.f32 0.0, %v633
      %635 = vdwg.mxu0
      %v636 = vadd.f32 %v612, %v634
      %v637 = vrot.slane %v229, 1
      %v638 = vsel %vm240, %v637, 0
      %640 = vmatpush.msra.mxu0 0.0
      %641 = vmatpush.msra.mxu0 0.0
      %642 = vmatpush.msra.mxu0 0.0
      %643 = vmatpush.msra.mxu0 0.0
      %644 = vmatpush.msra.mxu0 0.0
      %645 = vmatpush.msra.mxu0 0.0
      %646 = vmatpush.msra.mxu0 0.0
      %647 = vmatpush.msra.mxu0 0.0
      %648 = vmatpush.msra.mxu0 0.0
      %649 = vmatpush.msra.mxu0 0.0
      %650 = vmatpush.msra.mxu0 %v333
      %651 = vmatpush.msra.mxu0 %v332
      %652 = vmatpush.msra.mxu0 %v331
      %653 = vmatpush.msra.mxu0 %v330
      %654 = vmatpush.msra.mxu0 %v329
      %655 = vmatpush.msra.mxu0 %v328
      %656 = vmatmul.f32.gmra.mxu0 %v638
      %v657 = vpop.f32.mrf.mxu0
      %v658 = vadd.f32 0.0, %v657
      %659 = vdwg.mxu0
      %v660 = vadd.f32 %v636, %v658
      %v661 = vmax.f32 %v660, 0.0
      %663 = vrot.lane.b32.xlu0 %v661, 96
      %v664 = vpop.permute.xlu0 %663
      %v666 = vmax.f32 %v661, %v664
      %668 = vrot.lane.b32.xlu0 %v666, 64
      %v669 = vpop.permute.xlu0 %668
      %v671 = vmax.f32 %v666, %v669
      %672 = vmatpush.msra.mxu0 0.0
      %673 = vmatpush.msra.mxu0 0.0
      %674 = vmatpush.msra.mxu0 0.0
      %675 = vmatpush.msra.mxu0 0.0
      %676 = vmatpush.msra.mxu0 0.0
      %677 = vmatpush.msra.mxu0 0.0
      %678 = vmatpush.msra.mxu0 0.0
      %679 = vmatpush.msra.mxu0 0.0
      %680 = vmatpush.msra.mxu0 0.0
      %681 = vmatpush.msra.mxu0 0.0
      %682 = vmatpush.msra.mxu0 %v239
      %683 = vmatpush.msra.mxu0 %v238
      %684 = vmatpush.msra.mxu0 %v237
      %685 = vmatpush.msra.mxu0 %v236
      %686 = vmatpush.msra.mxu0 %v235
      %687 = vmatpush.msra.mxu0 %v234
      %688 = vmatmul.f32.gmra.mxu0 %v614
      %v689 = vpop.f32.mrf.mxu0
      %v690 = vadd.f32 0.0, %v689
      %691 = vdwg.mxu0
      %v692 = vadd.f32 %v265, %v690
      %693 = vmatpush.msra.mxu0 0.0
      %694 = vmatpush.msra.mxu0 0.0
      %695 = vmatpush.msra.mxu0 0.0
      %696 = vmatpush.msra.mxu0 0.0
      %697 = vmatpush.msra.mxu0 0.0
      %698 = vmatpush.msra.mxu0 0.0
      %699 = vmatpush.msra.mxu0 0.0
      %700 = vmatpush.msra.mxu0 0.0
      %701 = vmatpush.msra.mxu0 0.0
      %702 = vmatpush.msra.mxu0 0.0
      %703 = vmatpush.msra.mxu0 %v273
      %704 = vmatpush.msra.mxu0 %v272
      %705 = vmatpush.msra.mxu0 %v271
      %706 = vmatpush.msra.mxu0 %v270
      %707 = vmatpush.msra.mxu0 %v269
      %708 = vmatpush.msra.mxu0 %v268
      %709 = vmatmul.f32.gmra.mxu0 %v638
      %v710 = vpop.f32.mrf.mxu0
      %v711 = vadd.f32 0.0, %v710
      %712 = vdwg.mxu0
      %v713 = vadd.f32 %v692, %v711
      %v715 = vsel %vm240, %v230, 0
      %717 = vmatpush.msra.mxu0 0.0
      %718 = vmatpush.msra.mxu0 0.0
      %719 = vmatpush.msra.mxu0 0.0
      %720 = vmatpush.msra.mxu0 0.0
      %721 = vmatpush.msra.mxu0 0.0
      %722 = vmatpush.msra.mxu0 0.0
      %723 = vmatpush.msra.mxu0 0.0
      %724 = vmatpush.msra.mxu0 0.0
      %725 = vmatpush.msra.mxu0 0.0
      %726 = vmatpush.msra.mxu0 0.0
      %727 = vmatpush.msra.mxu0 %v303
      %728 = vmatpush.msra.mxu0 %v302
      %729 = vmatpush.msra.mxu0 %v301
      %730 = vmatpush.msra.mxu0 %v300
      %731 = vmatpush.msra.mxu0 %v299
      %732 = vmatpush.msra.mxu0 %v298
      %733 = vmatmul.f32.gmra.mxu0 %v715
      %v734 = vpop.f32.mrf.mxu0
      %v735 = vadd.f32 0.0, %v734
      %736 = vdwg.mxu0
      %v737 = vadd.f32 %v713, %v735
      %v738 = vrot.slane %v230, 1
      %v739 = vsel %vm240, %v738, 0
      %741 = vmatpush.msra.mxu0 0.0
      %742 = vmatpush.msra.mxu0 0.0
      %743 = vmatpush.msra.mxu0 0.0
      %744 = vmatpush.msra.mxu0 0.0
      %745 = vmatpush.msra.mxu0 0.0
      %746 = vmatpush.msra.mxu0 0.0
      %747 = vmatpush.msra.mxu0 0.0
      %748 = vmatpush.msra.mxu0 0.0
      %749 = vmatpush.msra.mxu0 0.0
      %750 = vmatpush.msra.mxu0 0.0
      %751 = vmatpush.msra.mxu0 %v333
      %752 = vmatpush.msra.mxu0 %v332
      %753 = vmatpush.msra.mxu0 %v331
      %754 = vmatpush.msra.mxu0 %v330
      %755 = vmatpush.msra.mxu0 %v329
      %756 = vmatpush.msra.mxu0 %v328
      %757 = vmatmul.f32.gmra.mxu0 %v739
      %v758 = vpop.f32.mrf.mxu0
      %v759 = vadd.f32 0.0, %v758
      %760 = vdwg.mxu0
      %v761 = vadd.f32 %v737, %v759
      %v762 = vmax.f32 %v761, 0.0
      %764 = vrot.lane.b32.xlu0 %v762, 96
      %v765 = vpop.permute.xlu0 %764
      %v767 = vmax.f32 %v762, %v765
      %769 = vrot.lane.b32.xlu0 %v767, 64
      %v770 = vpop.permute.xlu0 %769
      %v772 = vmax.f32 %v767, %v770
      %773 = vmatpush.msra.mxu0 0.0
      %774 = vmatpush.msra.mxu0 0.0
      %775 = vmatpush.msra.mxu0 0.0
      %776 = vmatpush.msra.mxu0 0.0
      %777 = vmatpush.msra.mxu0 0.0
      %778 = vmatpush.msra.mxu0 0.0
      %779 = vmatpush.msra.mxu0 0.0
      %780 = vmatpush.msra.mxu0 0.0
      %781 = vmatpush.msra.mxu0 0.0
      %782 = vmatpush.msra.mxu0 0.0
      %783 = vmatpush.msra.mxu0 %v239
      %784 = vmatpush.msra.mxu0 %v238
      %785 = vmatpush.msra.mxu0 %v237
      %786 = vmatpush.msra.mxu0 %v236
      %787 = vmatpush.msra.mxu0 %v235
      %788 = vmatpush.msra.mxu0 %v234
      %789 = vmatmul.f32.gmra.mxu0 %v715
      %v790 = vpop.f32.mrf.mxu0
      %v791 = vadd.f32 0.0, %v790
      %792 = vdwg.mxu0
      %v793 = vadd.f32 %v265, %v791
      %794 = vmatpush.msra.mxu0 0.0
      %795 = vmatpush.msra.mxu0 0.0
      %796 = vmatpush.msra.mxu0 0.0
      %797 = vmatpush.msra.mxu0 0.0
      %798 = vmatpush.msra.mxu0 0.0
      %799 = vmatpush.msra.mxu0 0.0
      %800 = vmatpush.msra.mxu0 0.0
      %801 = vmatpush.msra.mxu0 0.0
      %802 = vmatpush.msra.mxu0 0.0
      %803 = vmatpush.msra.mxu0 0.0
      %804 = vmatpush.msra.mxu0 %v273
      %805 = vmatpush.msra.mxu0 %v272
      %806 = vmatpush.msra.mxu0 %v271
      %807 = vmatpush.msra.mxu0 %v270
      %808 = vmatpush.msra.mxu0 %v269
      %809 = vmatpush.msra.mxu0 %v268
      %810 = vmatmul.f32.gmra.mxu0 %v739
      %v811 = vpop.f32.mrf.mxu0
      %v812 = vadd.f32 0.0, %v811
      %813 = vdwg.mxu0
      %v814 = vadd.f32 %v793, %v812
      %v816 = vsel %vm240, %v231, 0
      %818 = vmatpush.msra.mxu0 0.0
      %819 = vmatpush.msra.mxu0 0.0
      %820 = vmatpush.msra.mxu0 0.0
      %821 = vmatpush.msra.mxu0 0.0
      %822 = vmatpush.msra.mxu0 0.0
      %823 = vmatpush.msra.mxu0 0.0
      %824 = vmatpush.msra.mxu0 0.0
      %825 = vmatpush.msra.mxu0 0.0
      %826 = vmatpush.msra.mxu0 0.0
      %827 = vmatpush.msra.mxu0 0.0
      %828 = vmatpush.msra.mxu0 %v303
      %829 = vmatpush.msra.mxu0 %v302
      %830 = vmatpush.msra.mxu0 %v301
      %831 = vmatpush.msra.mxu0 %v300
      %832 = vmatpush.msra.mxu0 %v299
      %833 = vmatpush.msra.mxu0 %v298
      %834 = vmatmul.f32.gmra.mxu0 %v816
      %v835 = vpop.f32.mrf.mxu0
      %v836 = vadd.f32 0.0, %v835
      %837 = vdwg.mxu0
      %v838 = vadd.f32 %v814, %v836
      %v839 = vrot.slane %v231, 1
      %v840 = vsel %vm240, %v839, 0
      %842 = vmatpush.msra.mxu0 0.0
      %843 = vmatpush.msra.mxu0 0.0
      %844 = vmatpush.msra.mxu0 0.0
      %845 = vmatpush.msra.mxu0 0.0
      %846 = vmatpush.msra.mxu0 0.0
      %847 = vmatpush.msra.mxu0 0.0
      %848 = vmatpush.msra.mxu0 0.0
      %849 = vmatpush.msra.mxu0 0.0
      %850 = vmatpush.msra.mxu0 0.0
      %851 = vmatpush.msra.mxu0 0.0
      %852 = vmatpush.msra.mxu0 %v333
      %853 = vmatpush.msra.mxu0 %v332
      %854 = vmatpush.msra.mxu0 %v331
      %855 = vmatpush.msra.mxu0 %v330
      %856 = vmatpush.msra.mxu0 %v329
      %857 = vmatpush.msra.mxu0 %v328
      %858 = vmatmul.f32.gmra.mxu0 %v840
      %v859 = vpop.f32.mrf.mxu0
      %v860 = vadd.f32 0.0, %v859
      %861 = vdwg.mxu0
      %v862 = vadd.f32 %v838, %v860
      %v863 = vmax.f32 %v862, 0.0
      %865 = vrot.lane.b32.xlu0 %v863, 96
      %v866 = vpop.permute.xlu0 %865
      %v868 = vmax.f32 %v863, %v866
      %870 = vrot.lane.b32.xlu0 %v868, 64
      %v871 = vpop.permute.xlu0 %870
      %v873 = vmax.f32 %v868, %v871
      %874 = vmatpush.msra.mxu0 0.0
      %875 = vmatpush.msra.mxu0 0.0
      %876 = vmatpush.msra.mxu0 0.0
      %877 = vmatpush.msra.mxu0 0.0
      %878 = vmatpush.msra.mxu0 0.0
      %879 = vmatpush.msra.mxu0 0.0
      %880 = vmatpush.msra.mxu0 0.0
      %881 = vmatpush.msra.mxu0 0.0
      %882 = vmatpush.msra.mxu0 0.0
      %883 = vmatpush.msra.mxu0 0.0
      %884 = vmatpush.msra.mxu0 %v239
      %885 = vmatpush.msra.mxu0 %v238
      %886 = vmatpush.msra.mxu0 %v237
      %887 = vmatpush.msra.mxu0 %v236
      %888 = vmatpush.msra.mxu0 %v235
      %889 = vmatpush.msra.mxu0 %v234
      %890 = vmatmul.f32.gmra.mxu0 %v816
      %v891 = vpop.f32.mrf.mxu0
      %v892 = vadd.f32 0.0, %v891
      %893 = vdwg.mxu0
      %v894 = vadd.f32 %v265, %v892
      %895 = vmatpush.msra.mxu0 0.0
      %896 = vmatpush.msra.mxu0 0.0
      %897 = vmatpush.msra.mxu0 0.0
      %898 = vmatpush.msra.mxu0 0.0
      %899 = vmatpush.msra.mxu0 0.0
      %900 = vmatpush.msra.mxu0 0.0
      %901 = vmatpush.msra.mxu0 0.0
      %902 = vmatpush.msra.mxu0 0.0
      %903 = vmatpush.msra.mxu0 0.0
      %904 = vmatpush.msra.mxu0 0.0
      %905 = vmatpush.msra.mxu0 %v273
      %906 = vmatpush.msra.mxu0 %v272
      %907 = vmatpush.msra.mxu0 %v271
      %908 = vmatpush.msra.mxu0 %v270
      %909 = vmatpush.msra.mxu0 %v269
      %910 = vmatpush.msra.mxu0 %v268
      %911 = vmatmul.f32.gmra.mxu0 %v840
      %v912 = vpop.f32.mrf.mxu0
      %v913 = vadd.f32 0.0, %v912
      %914 = vdwg.mxu0
      %v915 = vadd.f32 %v894, %v913
      %v917 = vsel %vm240, %v232, 0
      %919 = vmatpush.msra.mxu0 0.0
      %920 = vmatpush.msra.mxu0 0.0
      %921 = vmatpush.msra.mxu0 0.0
      %922 = vmatpush.msra.mxu0 0.0
      %923 = vmatpush.msra.mxu0 0.0
      %924 = vmatpush.msra.mxu0 0.0
      %925 = vmatpush.msra.mxu0 0.0
      %926 = vmatpush.msra.mxu0 0.0
      %927 = vmatpush.msra.mxu0 0.0
      %928 = vmatpush.msra.mxu0 0.0
      %929 = vmatpush.msra.mxu0 %v303
      %930 = vmatpush.msra.mxu0 %v302
      %931 = vmatpush.msra.mxu0 %v301
      %932 = vmatpush.msra.mxu0 %v300
      %933 = vmatpush.msra.mxu0 %v299
      %934 = vmatpush.msra.mxu0 %v298
      %935 = vmatmul.f32.gmra.mxu0 %v917
      %v936 = vpop.f32.mrf.mxu0
      %v937 = vadd.f32 0.0, %v936
      %938 = vdwg.mxu0
      %v939 = vadd.f32 %v915, %v937
      %v940 = vrot.slane %v232, 1
      %v941 = vsel %vm240, %v940, 0
      %943 = vmatpush.msra.mxu0 0.0
      %944 = vmatpush.msra.mxu0 0.0
      %945 = vmatpush.msra.mxu0 0.0
      %946 = vmatpush.msra.mxu0 0.0
      %947 = vmatpush.msra.mxu0 0.0
      %948 = vmatpush.msra.mxu0 0.0
      %949 = vmatpush.msra.mxu0 0.0
      %950 = vmatpush.msra.mxu0 0.0
      %951 = vmatpush.msra.mxu0 0.0
      %952 = vmatpush.msra.mxu0 0.0
      %953 = vmatpush.msra.mxu0 %v333
      %954 = vmatpush.msra.mxu0 %v332
      %955 = vmatpush.msra.mxu0 %v331
      %956 = vmatpush.msra.mxu0 %v330
      %957 = vmatpush.msra.mxu0 %v329
      %958 = vmatpush.msra.mxu0 %v328
      %959 = vmatmul.f32.gmra.mxu0 %v941
      %v960 = vpop.f32.mrf.mxu0
      %v961 = vadd.f32 0.0, %v960
      %962 = vdwg.mxu0
      %v963 = vadd.f32 %v939, %v961
      %v964 = vmax.f32 %v963, 0.0
      %966 = vrot.lane.b32.xlu0 %v964, 96
      %v967 = vpop.permute.xlu0 %966
      %v969 = vmax.f32 %v964, %v967
      %971 = vrot.lane.b32.xlu0 %v969, 64
      %v972 = vpop.permute.xlu0 %971
      %v974 = vmax.f32 %v969, %v972
      %v975 = vld [vmem:[%s4] sm:$0x1]
      %v976 = vld [vmem:[%s3] sm:$0xff]
      %v977 = vld [vmem:[%s3 + $0x8] sm:$0xff]
      %v978 = vld [vmem:[%s3 + $0x10] sm:$0xff]
      %v979 = vld [vmem:[%s3 + $0x18] sm:$0xff]
      %vm980 = vcmask 261120
      %v982 = vsel %vm980, %v368, 0
      %984 = vmatpush.msra.mxu0 0.0
      %985 = vmatpush.msra.mxu0 0.0
      %986 = vmatpush.msra.mxu0 0.0
      %987 = vmatpush.msra.mxu0 0.0
      %988 = vmatpush.msra.mxu0 0.0
      %989 = vmatpush.msra.mxu0 0.0
      %990 = vmatpush.msra.mxu0 0.0
      %991 = vmatpush.msra.mxu0 0.0
      %992 = vmatpush.msra.mxu0 0.0
      %993 = vmatpush.msra.mxu0 0.0
      %994 = vmatpush.msra.mxu0 0.0
      %995 = vmatpush.msra.mxu0 0.0
      %996 = vmatpush.msra.mxu0 %v979
      %997 = vmatpush.msra.mxu0 %v978
      %998 = vmatpush.msra.mxu0 %v977
      %999 = vmatpush.msra.mxu0 %v976
      %1000 = vmatmul.f32.gmra.mxu0 %v982
      %v1001 = vpop.f32.mrf.mxu0
      %v1002 = vadd.f32 0.0, %v1001
      %1003 = vdwg.mxu0
      %v1005 = vperm.slane %v975, 0
      %v1007 = vadd.f32 %v1005, %v1002
      %v1008 = vld [vmem:[%s3 + $0x20] sm:$0xff]
      %v1009 = vld [vmem:[%s3 + $0x28] sm:$0xff]
      %v1010 = vld [vmem:[%s3 + $0x30] sm:$0xff]
      %v1011 = vld [vmem:[%s3 + $0x38] sm:$0xff]
      %v1012 = vrot.slane %v368, 1
      %v1013 = vsel %vm980, %v1012, 0
      %1015 = vmatpush.msra.mxu0 0.0
      %1016 = vmatpush.msra.mxu0 0.0
      %1017 = vmatpush.msra.mxu0 0.0
      %1018 = vmatpush.msra.mxu0 0.0
      %1019 = vmatpush.msra.mxu0 0.0
      %1020 = vmatpush.msra.mxu0 0.0
      %1021 = vmatpush.msra.mxu0 0.0
      %1022 = vmatpush.msra.mxu0 0.0
      %1023 = vmatpush.msra.mxu0 0.0
      %1024 = vmatpush.msra.mxu0 0.0
      %1025 = vmatpush.msra.mxu0 0.0
      %1026 = vmatpush.msra.mxu0 0.0
      %1027 = vmatpush.msra.mxu0 %v1011
      %1028 = vmatpush.msra.mxu0 %v1010
      %1029 = vmatpush.msra.mxu0 %v1009
      %1030 = vmatpush.msra.mxu0 %v1008
      %1031 = vmatmul.f32.gmra.mxu0 %v1013
      %v1032 = vpop.f32.mrf.mxu0
      %v1033 = vadd.f32 0.0, %v1032
      %1034 = vdwg.mxu0
      %v1035 = vadd.f32 %v1007, %v1033
      %v1036 = vld [vmem:[%s3 + $0x40] sm:$0xff]
      %v1037 = vld [vmem:[%s3 + $0x48] sm:$0xff]
      %v1038 = vld [vmem:[%s3 + $0x50] sm:$0xff]
      %v1039 = vld [vmem:[%s3 + $0x58] sm:$0xff]
      %v1040 = vrot.slane %v368, 2
      %v1041 = vsel %vm980, %v1040, 0
      %1043 = vmatpush.msra.mxu0 0.0
      %1044 = vmatpush.msra.mxu0 0.0
      %1045 = vmatpush.msra.mxu0 0.0
      %1046 = vmatpush.msra.mxu0 0.0
      %1047 = vmatpush.msra.mxu0 0.0
      %1048 = vmatpush.msra.mxu0 0.0
      %1049 = vmatpush.msra.mxu0 0.0
      %1050 = vmatpush.msra.mxu0 0.0
      %1051 = vmatpush.msra.mxu0 0.0
      %1052 = vmatpush.msra.mxu0 0.0
      %1053 = vmatpush.msra.mxu0 0.0
      %1054 = vmatpush.msra.mxu0 0.0
      %1055 = vmatpush.msra.mxu0 %v1039
      %1056 = vmatpush.msra.mxu0 %v1038
      %1057 = vmatpush.msra.mxu0 %v1037
      %1058 = vmatpush.msra.mxu0 %v1036
      %1059 = vmatmul.f32.gmra.mxu0 %v1041
      %v1060 = vpop.f32.mrf.mxu0
      %v1061 = vadd.f32 0.0, %v1060
      %1062 = vdwg.mxu0
      %v1063 = vadd.f32 %v1035, %v1061
      %v1064 = vld [vmem:[%s3 + $0x60] sm:$0xff]
      %v1065 = vld [vmem:[%s3 + $0x68] sm:$0xff]
      %v1066 = vld [vmem:[%s3 + $0x70] sm:$0xff]
      %v1067 = vld [vmem:[%s3 + $0x78] sm:$0xff]
      %v1069 = vsel %vm980, %v469, 0
      %1071 = vmatpush.msra.mxu0 0.0
      %1072 = vmatpush.msra.mxu0 0.0
      %1073 = vmatpush.msra.mxu0 0.0
      %1074 = vmatpush.msra.mxu0 0.0
      %1075 = vmatpush.msra.mxu0 0.0
      %1076 = vmatpush.msra.mxu0 0.0
      %1077 = vmatpush.msra.mxu0 0.0
      %1078 = vmatpush.msra.mxu0 0.0
      %1079 = vmatpush.msra.mxu0 0.0
      %1080 = vmatpush.msra.mxu0 0.0
      %1081 = vmatpush.msra.mxu0 0.0
      %1082 = vmatpush.msra.mxu0 0.0
      %1083 = vmatpush.msra.mxu0 %v1067
      %1084 = vmatpush.msra.mxu0 %v1066
      %1085 = vmatpush.msra.mxu0 %v1065
      %1086 = vmatpush.msra.mxu0 %v1064
      %1087 = vmatmul.f32.gmra.mxu0 %v1069
      %v1088 = vpop.f32.mrf.mxu0
      %v1089 = vadd.f32 0.0, %v1088
      %1090 = vdwg.mxu0
      %v1091 = vadd.f32 %v1063, %v1089
      %v1092 = vld [vmem:[%s3 + $0x80] sm:$0xff]
      %v1093 = vld [vmem:[%s3 + $0x88] sm:$0xff]
      %v1094 = vld [vmem:[%s3 + $0x90] sm:$0xff]
      %v1095 = vld [vmem:[%s3 + $0x98] sm:$0xff]
      %v1096 = vrot.slane %v469, 1
      %v1097 = vsel %vm980, %v1096, 0
      %1099 = vmatpush.msra.mxu0 0.0
      %1100 = vmatpush.msra.mxu0 0.0
      %1101 = vmatpush.msra.mxu0 0.0
      %1102 = vmatpush.msra.mxu0 0.0
      %1103 = vmatpush.msra.mxu0 0.0
      %1104 = vmatpush.msra.mxu0 0.0
      %1105 = vmatpush.msra.mxu0 0.0
      %1106 = vmatpush.msra.mxu0 0.0
      %1107 = vmatpush.msra.mxu0 0.0
      %1108 = vmatpush.msra.mxu0 0.0
      %1109 = vmatpush.msra.mxu0 0.0
      %1110 = vmatpush.msra.mxu0 0.0
      %1111 = vmatpush.msra.mxu0 %v1095
      %1112 = vmatpush.msra.mxu0 %v1094
      %1113 = vmatpush.msra.mxu0 %v1093
      %1114 = vmatpush.msra.mxu0 %v1092
      %1115 = vmatmul.f32.gmra.mxu0 %v1097
      %v1116 = vpop.f32.mrf.mxu0
      %v1117 = vadd.f32 0.0, %v1116
      %1118 = vdwg.mxu0
      %v1119 = vadd.f32 %v1091, %v1117
      %v1120 = vld [vmem:[%s3 + $0xa0] sm:$0xff]
      %v1121 = vld [vmem:[%s3 + $0xa8] sm:$0xff]
      %v1122 = vld [vmem:[%s3 + $0xb0] sm:$0xff]
      %v1123 = vld [vmem:[%s3 + $0xb8] sm:$0xff]
      %v1124 = vrot.slane %v469, 2
      %v1125 = vsel %vm980, %v1124, 0
      %1127 = vmatpush.msra.mxu0 0.0
      %1128 = vmatpush.msra.mxu0 0.0
      %1129 = vmatpush.msra.mxu0 0.0
      %1130 = vmatpush.msra.mxu0 0.0
      %1131 = vmatpush.msra.mxu0 0.0
      %1132 = vmatpush.msra.mxu0 0.0
      %1133 = vmatpush.msra.mxu0 0.0
      %1134 = vmatpush.msra.mxu0 0.0
      %1135 = vmatpush.msra.mxu0 0.0
      %1136 = vmatpush.msra.mxu0 0.0
      %1137 = vmatpush.msra.mxu0 0.0
      %1138 = vmatpush.msra.mxu0 0.0
      %1139 = vmatpush.msra.mxu0 %v1123
      %1140 = vmatpush.msra.mxu0 %v1122
      %1141 = vmatpush.msra.mxu0 %v1121
      %1142 = vmatpush.msra.mxu0 %v1120
      %1143 = vmatmul.f32.gmra.mxu0 %v1125
      %v1144 = vpop.f32.mrf.mxu0
      %v1145 = vadd.f32 0.0, %v1144
      %1146 = vdwg.mxu0
      %v1147 = vadd.f32 %v1119, %v1145
      %v1148 = vld [vmem:[%s3 + $0xc0] sm:$0xff]
      %v1149 = vld [vmem:[%s3 + $0xc8] sm:$0xff]
      %v1150 = vld [vmem:[%s3 + $0xd0] sm:$0xff]
      %v1151 = vld [vmem:[%s3 + $0xd8] sm:$0xff]
      %v1153 = vsel %vm980, %v570, 0
      %1155 = vmatpush.msra.mxu0 0.0
      %1156 = vmatpush.msra.mxu0 0.0
      %1157 = vmatpush.msra.mxu0 0.0
      %1158 = vmatpush.msra.mxu0 0.0
      %1159 = vmatpush.msra.mxu0 0.0
      %1160 = vmatpush.msra.mxu0 0.0
      %1161 = vmatpush.msra.mxu0 0.0
      %1162 = vmatpush.msra.mxu0 0.0
      %1163 = vmatpush.msra.mxu0 0.0
      %1164 = vmatpush.msra.mxu0 0.0
      %1165 = vmatpush.msra.mxu0 0.0
      %1166 = vmatpush.msra.mxu0 0.0
      %1167 = vmatpush.msra.mxu0 %v1151
      %1168 = vmatpush.msra.mxu0 %v1150
      %1169 = vmatpush.msra.mxu0 %v1149
      %1170 = vmatpush.msra.mxu0 %v1148
      %1171 = vmatmul.f32.gmra.mxu0 %v1153
      %v1172 = vpop.f32.mrf.mxu0
      %v1173 = vadd.f32 0.0, %v1172
      %1174 = vdwg.mxu0
      %v1175 = vadd.f32 %v1147, %v1173
      %v1176 = vld [vmem:[%s3 + $0xe0] sm:$0xff]
      %v1177 = vld [vmem:[%s3 + $0xe8] sm:$0xff]
      %v1178 = vld [vmem:[%s3 + $0xf0] sm:$0xff]
      %v1179 = vld [vmem:[%s3 + $0xf8] sm:$0xff]
      %v1180 = vrot.slane %v570, 1
      %v1181 = vsel %vm980, %v1180, 0
      %1183 = vmatpush.msra.mxu0 0.0
      %1184 = vmatpush.msra.mxu0 0.0
      %1185 = vmatpush.msra.mxu0 0.0
      %1186 = vmatpush.msra.mxu0 0.0
      %1187 = vmatpush.msra.mxu0 0.0
      %1188 = vmatpush.msra.mxu0 0.0
      %1189 = vmatpush.msra.mxu0 0.0
      %1190 = vmatpush.msra.mxu0 0.0
      %1191 = vmatpush.msra.mxu0 0.0
      %1192 = vmatpush.msra.mxu0 0.0
      %1193 = vmatpush.msra.mxu0 0.0
      %1194 = vmatpush.msra.mxu0 0.0
      %1195 = vmatpush.msra.mxu0 %v1179
      %1196 = vmatpush.msra.mxu0 %v1178
      %1197 = vmatpush.msra.mxu0 %v1177
      %1198 = vmatpush.msra.mxu0 %v1176
      %1199 = vmatmul.f32.gmra.mxu0 %v1181
      %v1200 = vpop.f32.mrf.mxu0
      %v1201 = vadd.f32 0.0, %v1200
      %1202 = vdwg.mxu0
      %v1203 = vadd.f32 %v1175, %v1201
      %v1204 = vld [vmem:[%s3 + $0x100] sm:$0xff]
      %v1205 = vld [vmem:[%s3 + $0x108] sm:$0xff]
      %v1206 = vld [vmem:[%s3 + $0x110] sm:$0xff]
      %v1207 = vld [vmem:[%s3 + $0x118] sm:$0xff]
      %v1208 = vrot.slane %v570, 2
      %v1209 = vsel %vm980, %v1208, 0
      %1211 = vmatpush.msra.mxu0 0.0
      %1212 = vmatpush.msra.mxu0 0.0
      %1213 = vmatpush.msra.mxu0 0.0
      %1214 = vmatpush.msra.mxu0 0.0
      %1215 = vmatpush.msra.mxu0 0.0
      %1216 = vmatpush.msra.mxu0 0.0
      %1217 = vmatpush.msra.mxu0 0.0
      %1218 = vmatpush.msra.mxu0 0.0
      %1219 = vmatpush.msra.mxu0 0.0
      %1220 = vmatpush.msra.mxu0 0.0
      %1221 = vmatpush.msra.mxu0 0.0
      %1222 = vmatpush.msra.mxu0 0.0
      %1223 = vmatpush.msra.mxu0 %v1207
      %1224 = vmatpush.msra.mxu0 %v1206
      %1225 = vmatpush.msra.mxu0 %v1205
      %1226 = vmatpush.msra.mxu0 %v1204
      %1227 = vmatmul.f32.gmra.mxu0 %v1209
      %v1228 = vpop.f32.mrf.mxu0
      %v1229 = vadd.f32 0.0, %v1228
      %1230 = vdwg.mxu0
      %v1231 = vadd.f32 %v1203, %v1229
      %v1232 = vmax.f32 %v1231, 0.0
      %1234 = vrot.lane.b32.xlu0 %v1232, 112
      %v1235 = vpop.permute.xlu0 %1234
      %v1237 = vmax.f32 %v1232, %v1235
      %1239 = vrot.lane.b32.xlu0 %v1237, 96
      %v1240 = vpop.permute.xlu0 %1239
      %v1242 = vmax.f32 %v1237, %v1240
      %vm1243 = vcmask 126976
      %1244 = vst.msk [vmem:[%s224] sm:$0x1f] %vm1243, %v1242
      %v1245 = vld [vmem:[%s4] sm:$0x1]
      %v1246 = vld [vmem:[%s3] sm:$0xff]
      %v1247 = vld [vmem:[%s3 + $0x8] sm:$0xff]
      %v1248 = vld [vmem:[%s3 + $0x10] sm:$0xff]
      %v1249 = vld [vmem:[%s3 + $0x18] sm:$0xff]
      %1250 = vmatpush.msra.mxu0 0.0
      %1251 = vmatpush.msra.mxu0 0.0
      %1252 = vmatpush.msra.mxu0 0.0
      %1253 = vmatpush.msra.mxu0 0.0
      %1254 = vmatpush.msra.mxu0 0.0
      %1255 = vmatpush.msra.mxu0 0.0
      %1256 = vmatpush.msra.mxu0 0.0
      %1257 = vmatpush.msra.mxu0 0.0
      %1258 = vmatpush.msra.mxu0 0.0
      %1259 = vmatpush.msra.mxu0 0.0
      %1260 = vmatpush.msra.mxu0 0.0
      %1261 = vmatpush.msra.mxu0 0.0
      %1262 = vmatpush.msra.mxu0 %v1249
      %1263 = vmatpush.msra.mxu0 %v1248
      %1264 = vmatpush.msra.mxu0 %v1247
      %1265 = vmatpush.msra.mxu0 %v1246
      %1266 = vmatmul.f32.gmra.mxu0 %v1069
      %v1267 = vpop.f32.mrf.mxu0
      %v1268 = vadd.f32 0.0, %v1267
      %1269 = vdwg.mxu0
      %v1271 = vperm.slane %v1245, 0
      %v1273 = vadd.f32 %v1271, %v1268
      %v1274 = vld [vmem:[%s3 + $0x20] sm:$0xff]
      %v1275 = vld [vmem:[%s3 + $0x28] sm:$0xff]
      %v1276 = vld [vmem:[%s3 + $0x30] sm:$0xff]
      %v1277 = vld [vmem:[%s3 + $0x38] sm:$0xff]
      %1278 = vmatpush.msra.mxu0 0.0
      %1279 = vmatpush.msra.mxu0 0.0
      %1280 = vmatpush.msra.mxu0 0.0
      %1281 = vmatpush.msra.mxu0 0.0
      %1282 = vmatpush.msra.mxu0 0.0
      %1283 = vmatpush.msra.mxu0 0.0
      %1284 = vmatpush.msra.mxu0 0.0
      %1285 = vmatpush.msra.mxu0 0.0
      %1286 = vmatpush.msra.mxu0 0.0
      %1287 = vmatpush.msra.mxu0 0.0
      %1288 = vmatpush.msra.mxu0 0.0
      %1289 = vmatpush.msra.mxu0 0.0
      %1290 = vmatpush.msra.mxu0 %v1277
      %1291 = vmatpush.msra.mxu0 %v1276
      %1292 = vmatpush.msra.mxu0 %v1275
      %1293 = vmatpush.msra.mxu0 %v1274
      %1294 = vmatmul.f32.gmra.mxu0 %v1097
      %v1295 = vpop.f32.mrf.mxu0
      %v1296 = vadd.f32 0.0, %v1295
      %1297 = vdwg.mxu0
      %v1298 = vadd.f32 %v1273, %v1296
      %v1299 = vld [vmem:[%s3 + $0x40] sm:$0xff]
      %v1300 = vld [vmem:[%s3 + $0x48] sm:$0xff]
      %v1301 = vld [vmem:[%s3 + $0x50] sm:$0xff]
      %v1302 = vld [vmem:[%s3 + $0x58] sm:$0xff]
      %1303 = vmatpush.msra.mxu0 0.0
      %1304 = vmatpush.msra.mxu0 0.0
      %1305 = vmatpush.msra.mxu0 0.0
      %1306 = vmatpush.msra.mxu0 0.0
      %1307 = vmatpush.msra.mxu0 0.0
      %1308 = vmatpush.msra.mxu0 0.0
      %1309 = vmatpush.msra.mxu0 0.0
      %1310 = vmatpush.msra.mxu0 0.0
      %1311 = vmatpush.msra.mxu0 0.0
      %1312 = vmatpush.msra.mxu0 0.0
      %1313 = vmatpush.msra.mxu0 0.0
      %1314 = vmatpush.msra.mxu0 0.0
      %1315 = vmatpush.msra.mxu0 %v1302
      %1316 = vmatpush.msra.mxu0 %v1301
      %1317 = vmatpush.msra.mxu0 %v1300
      %1318 = vmatpush.msra.mxu0 %v1299
      %1319 = vmatmul.f32.gmra.mxu0 %v1125
      %v1320 = vpop.f32.mrf.mxu0
      %v1321 = vadd.f32 0.0, %v1320
      %1322 = vdwg.mxu0
      %v1323 = vadd.f32 %v1298, %v1321
      %v1324 = vld [vmem:[%s3 + $0x60] sm:$0xff]
      %v1325 = vld [vmem:[%s3 + $0x68] sm:$0xff]
      %v1326 = vld [vmem:[%s3 + $0x70] sm:$0xff]
      %v1327 = vld [vmem:[%s3 + $0x78] sm:$0xff]
      %1328 = vmatpush.msra.mxu0 0.0
      %1329 = vmatpush.msra.mxu0 0.0
      %1330 = vmatpush.msra.mxu0 0.0
      %1331 = vmatpush.msra.mxu0 0.0
      %1332 = vmatpush.msra.mxu0 0.0
      %1333 = vmatpush.msra.mxu0 0.0
      %1334 = vmatpush.msra.mxu0 0.0
      %1335 = vmatpush.msra.mxu0 0.0
      %1336 = vmatpush.msra.mxu0 0.0
      %1337 = vmatpush.msra.mxu0 0.0
      %1338 = vmatpush.msra.mxu0 0.0
      %1339 = vmatpush.msra.mxu0 0.0
      %1340 = vmatpush.msra.mxu0 %v1327
      %1341 = vmatpush.msra.mxu0 %v1326
      %1342 = vmatpush.msra.mxu0 %v1325
      %1343 = vmatpush.msra.mxu0 %v1324
      %1344 = vmatmul.f32.gmra.mxu0 %v1153
      %v1345 = vpop.f32.mrf.mxu0
      %v1346 = vadd.f32 0.0, %v1345
      %1347 = vdwg.mxu0
      %v1348 = vadd.f32 %v1323, %v1346
      %v1349 = vld [vmem:[%s3 + $0x80] sm:$0xff]
      %v1350 = vld [vmem:[%s3 + $0x88] sm:$0xff]
      %v1351 = vld [vmem:[%s3 + $0x90] sm:$0xff]
      %v1352 = vld [vmem:[%s3 + $0x98] sm:$0xff]
      %1353 = vmatpush.msra.mxu0 0.0
      %1354 = vmatpush.msra.mxu0 0.0
      %1355 = vmatpush.msra.mxu0 0.0
      %1356 = vmatpush.msra.mxu0 0.0
      %1357 = vmatpush.msra.mxu0 0.0
      %1358 = vmatpush.msra.mxu0 0.0
      %1359 = vmatpush.msra.mxu0 0.0
      %1360 = vmatpush.msra.mxu0 0.0
      %1361 = vmatpush.msra.mxu0 0.0
      %1362 = vmatpush.msra.mxu0 0.0
      %1363 = vmatpush.msra.mxu0 0.0
      %1364 = vmatpush.msra.mxu0 0.0
      %1365 = vmatpush.msra.mxu0 %v1352
      %1366 = vmatpush.msra.mxu0 %v1351
      %1367 = vmatpush.msra.mxu0 %v1350
      %1368 = vmatpush.msra.mxu0 %v1349
      %1369 = vmatmul.f32.gmra.mxu0 %v1181
      %v1370 = vpop.f32.mrf.mxu0
      %v1371 = vadd.f32 0.0, %v1370
      %1372 = vdwg.mxu0
      %v1373 = vadd.f32 %v1348, %v1371
      %v1374 = vld [vmem:[%s3 + $0xa0] sm:$0xff]
      %v1375 = vld [vmem:[%s3 + $0xa8] sm:$0xff]
      %v1376 = vld [vmem:[%s3 + $0xb0] sm:$0xff]
      %v1377 = vld [vmem:[%s3 + $0xb8] sm:$0xff]
      %1378 = vmatpush.msra.mxu0 0.0
      %1379 = vmatpush.msra.mxu0 0.0
      %1380 = vmatpush.msra.mxu0 0.0
      %1381 = vmatpush.msra.mxu0 0.0
      %1382 = vmatpush.msra.mxu0 0.0
      %1383 = vmatpush.msra.mxu0 0.0
      %1384 = vmatpush.msra.mxu0 0.0
      %1385 = vmatpush.msra.mxu0 0.0
      %1386 = vmatpush.msra.mxu0 0.0
      %1387 = vmatpush.msra.mxu0 0.0
      %1388 = vmatpush.msra.mxu0 0.0
      %1389 = vmatpush.msra.mxu0 0.0
      %1390 = vmatpush.msra.mxu0 %v1377
      %1391 = vmatpush.msra.mxu0 %v1376
      %1392 = vmatpush.msra.mxu0 %v1375
      %1393 = vmatpush.msra.mxu0 %v1374
      %1394 = vmatmul.f32.gmra.mxu0 %v1209
      %v1395 = vpop.f32.mrf.mxu0
      %v1396 = vadd.f32 0.0, %v1395
      %1397 = vdwg.mxu0
      %v1398 = vadd.f32 %v1373, %v1396
      %v1399 = vld [vmem:[%s3 + $0xc0] sm:$0xff]
      %v1400 = vld [vmem:[%s3 + $0xc8] sm:$0xff]
      %v1401 = vld [vmem:[%s3 + $0xd0] sm:$0xff]
      %v1402 = vld [vmem:[%s3 + $0xd8] sm:$0xff]
      %v1404 = vsel %vm980, %v671, 0
      %1406 = vmatpush.msra.mxu0 0.0
      %1407 = vmatpush.msra.mxu0 0.0
      %1408 = vmatpush.msra.mxu0 0.0
      %1409 = vmatpush.msra.mxu0 0.0
      %1410 = vmatpush.msra.mxu0 0.0
      %1411 = vmatpush.msra.mxu0 0.0
      %1412 = vmatpush.msra.mxu0 0.0
      %1413 = vmatpush.msra.mxu0 0.0
      %1414 = vmatpush.msra.mxu0 0.0
      %1415 = vmatpush.msra.mxu0 0.0
      %1416 = vmatpush.msra.mxu0 0.0
      %1417 = vmatpush.msra.mxu0 0.0
      %1418 = vmatpush.msra.mxu0 %v1402
      %1419 = vmatpush.msra.mxu0 %v1401
      %1420 = vmatpush.msra.mxu0 %v1400
      %1421 = vmatpush.msra.mxu0 %v1399
      %1422 = vmatmul.f32.gmra.mxu0 %v1404
      %v1423 = vpop.f32.mrf.mxu0
      %v1424 = vadd.f32 0.0, %v1423
      %1425 = vdwg.mxu0
      %v1426 = vadd.f32 %v1398, %v1424
      %v1427 = vld [vmem:[%s3 + $0xe0] sm:$0xff]
      %v1428 = vld [vmem:[%s3 + $0xe8] sm:$0xff]
      %v1429 = vld [vmem:[%s3 + $0xf0] sm:$0xff]
      %v1430 = vld [vmem:[%s3 + $0xf8] sm:$0xff]
      %v1431 = vrot.slane %v671, 1
      %v1432 = vsel %vm980, %v1431, 0
      %1434 = vmatpush.msra.mxu0 0.0
      %1435 = vmatpush.msra.mxu0 0.0
      %1436 = vmatpush.msra.mxu0 0.0
      %1437 = vmatpush.msra.mxu0 0.0
      %1438 = vmatpush.msra.mxu0 0.0
      %1439 = vmatpush.msra.mxu0 0.0
      %1440 = vmatpush.msra.mxu0 0.0
      %1441 = vmatpush.msra.mxu0 0.0
      %1442 = vmatpush.msra.mxu0 0.0
      %1443 = vmatpush.msra.mxu0 0.0
      %1444 = vmatpush.msra.mxu0 0.0
      %1445 = vmatpush.msra.mxu0 0.0
      %1446 = vmatpush.msra.mxu0 %v1430
      %1447 = vmatpush.msra.mxu0 %v1429
      %1448 = vmatpush.msra.mxu0 %v1428
      %1449 = vmatpush.msra.mxu0 %v1427
      %1450 = vmatmul.f32.gmra.mxu0 %v1432
      %v1451 = vpop.f32.mrf.mxu0
      %v1452 = vadd.f32 0.0, %v1451
      %1453 = vdwg.mxu0
      %v1454 = vadd.f32 %v1426, %v1452
      %v1455 = vld [vmem:[%s3 + $0x100] sm:$0xff]
      %v1456 = vld [vmem:[%s3 + $0x108] sm:$0xff]
      %v1457 = vld [vmem:[%s3 + $0x110] sm:$0xff]
      %v1458 = vld [vmem:[%s3 + $0x118] sm:$0xff]
      %v1459 = vrot.slane %v671, 2
      %v1460 = vsel %vm980, %v1459, 0
      %1462 = vmatpush.msra.mxu0 0.0
      %1463 = vmatpush.msra.mxu0 0.0
      %1464 = vmatpush.msra.mxu0 0.0
      %1465 = vmatpush.msra.mxu0 0.0
      %1466 = vmatpush.msra.mxu0 0.0
      %1467 = vmatpush.msra.mxu0 0.0
      %1468 = vmatpush.msra.mxu0 0.0
      %1469 = vmatpush.msra.mxu0 0.0
      %1470 = vmatpush.msra.mxu0 0.0
      %1471 = vmatpush.msra.mxu0 0.0
      %1472 = vmatpush.msra.mxu0 0.0
      %1473 = vmatpush.msra.mxu0 0.0
      %1474 = vmatpush.msra.mxu0 %v1458
      %1475 = vmatpush.msra.mxu0 %v1457
      %1476 = vmatpush.msra.mxu0 %v1456
      %1477 = vmatpush.msra.mxu0 %v1455
      %1478 = vmatmul.f32.gmra.mxu0 %v1460
      %v1479 = vpop.f32.mrf.mxu0
      %v1480 = vadd.f32 0.0, %v1479
      %1481 = vdwg.mxu0
      %v1482 = vadd.f32 %v1454, %v1480
      %v1483 = vmax.f32 %v1482, 0.0
      %1485 = vrot.lane.b32.xlu0 %v1483, 112
      %v1486 = vpop.permute.xlu0 %1485
      %v1488 = vmax.f32 %v1483, %v1486
      %1490 = vrot.lane.b32.xlu0 %v1488, 96
      %v1491 = vpop.permute.xlu0 %1490
      %v1493 = vmax.f32 %v1488, %v1491
      %1494 = vst.msk [vmem:[%s224 + $0x5] sm:$0x1f] %vm1243, %v1493
      %v1495 = vld [vmem:[%s4] sm:$0x1]
      %v1496 = vld [vmem:[%s3] sm:$0xff]
      %v1497 = vld [vmem:[%s3 + $0x8] sm:$0xff]
      %v1498 = vld [vmem:[%s3 + $0x10] sm:$0xff]
      %v1499 = vld [vmem:[%s3 + $0x18] sm:$0xff]
      %1500 = vmatpush.msra.mxu0 0.0
      %1501 = vmatpush.msra.mxu0 0.0
      %1502 = vmatpush.msra.mxu0 0.0
      %1503 = vmatpush.msra.mxu0 0.0
      %1504 = vmatpush.msra.mxu0 0.0
      %1505 = vmatpush.msra.mxu0 0.0
      %1506 = vmatpush.msra.mxu0 0.0
      %1507 = vmatpush.msra.mxu0 0.0
      %1508 = vmatpush.msra.mxu0 0.0
      %1509 = vmatpush.msra.mxu0 0.0
      %1510 = vmatpush.msra.mxu0 0.0
      %1511 = vmatpush.msra.mxu0 0.0
      %1512 = vmatpush.msra.mxu0 %v1499
      %1513 = vmatpush.msra.mxu0 %v1498
      %1514 = vmatpush.msra.mxu0 %v1497
      %1515 = vmatpush.msra.mxu0 %v1496
      %1516 = vmatmul.f32.gmra.mxu0 %v1153
      %v1517 = vpop.f32.mrf.mxu0
      %v1518 = vadd.f32 0.0, %v1517
      %1519 = vdwg.mxu0
      %v1521 = vperm.slane %v1495, 0
      %v1523 = vadd.f32 %v1521, %v1518
      %v1524 = vld [vmem:[%s3 + $0x20] sm:$0xff]
      %v1525 = vld [vmem:[%s3 + $0x28] sm:$0xff]
      %v1526 = vld [vmem:[%s3 + $0x30] sm:$0xff]
      %v1527 = vld [vmem:[%s3 + $0x38] sm:$0xff]
      %1528 = vmatpush.msra.mxu0 0.0
      %1529 = vmatpush.msra.mxu0 0.0
      %1530 = vmatpush.msra.mxu0 0.0
      %1531 = vmatpush.msra.mxu0 0.0
      %1532 = vmatpush.msra.mxu0 0.0
      %1533 = vmatpush.msra.mxu0 0.0
      %1534 = vmatpush.msra.mxu0 0.0
      %1535 = vmatpush.msra.mxu0 0.0
      %1536 = vmatpush.msra.mxu0 0.0
      %1537 = vmatpush.msra.mxu0 0.0
      %1538 = vmatpush.msra.mxu0 0.0
      %1539 = vmatpush.msra.mxu0 0.0
      %1540 = vmatpush.msra.mxu0 %v1527
      %1541 = vmatpush.msra.mxu0 %v1526
      %1542 = vmatpush.msra.mxu0 %v1525
      %1543 = vmatpush.msra.mxu0 %v1524
      %1544 = vmatmul.f32.gmra.mxu0 %v1181
      %v1545 = vpop.f32.mrf.mxu0
      %v1546 = vadd.f32 0.0, %v1545
      %1547 = vdwg.mxu0
      %v1548 = vadd.f32 %v1523, %v1546
      %v1549 = vld [vmem:[%s3 + $0x40] sm:$0xff]
      %v1550 = vld [vmem:[%s3 + $0x48] sm:$0xff]
      %v1551 = vld [vmem:[%s3 + $0x50] sm:$0xff]
      %v1552 = vld [vmem:[%s3 + $0x58] sm:$0xff]
      %1553 = vmatpush.msra.mxu0 0.0
      %1554 = vmatpush.msra.mxu0 0.0
      %1555 = vmatpush.msra.mxu0 0.0
      %1556 = vmatpush.msra.mxu0 0.0
      %1557 = vmatpush.msra.mxu0 0.0
      %1558 = vmatpush.msra.mxu0 0.0
      %1559 = vmatpush.msra.mxu0 0.0
      %1560 = vmatpush.msra.mxu0 0.0
      %1561 = vmatpush.msra.mxu0 0.0
      %1562 = vmatpush.msra.mxu0 0.0
      %1563 = vmatpush.msra.mxu0 0.0
      %1564 = vmatpush.msra.mxu0 0.0
      %1565 = vmatpush.msra.mxu0 %v1552
      %1566 = vmatpush.msra.mxu0 %v1551
      %1567 = vmatpush.msra.mxu0 %v1550
      %1568 = vmatpush.msra.mxu0 %v1549
      %1569 = vmatmul.f32.gmra.mxu0 %v1209
      %v1570 = vpop.f32.mrf.mxu0
      %v1571 = vadd.f32 0.0, %v1570
      %1572 = vdwg.mxu0
      %v1573 = vadd.f32 %v1548, %v1571
      %v1574 = vld [vmem:[%s3 + $0x60] sm:$0xff]
      %v1575 = vld [vmem:[%s3 + $0x68] sm:$0xff]
      %v1576 = vld [vmem:[%s3 + $0x70] sm:$0xff]
      %v1577 = vld [vmem:[%s3 + $0x78] sm:$0xff]
      %1578 = vmatpush.msra.mxu0 0.0
      %1579 = vmatpush.msra.mxu0 0.0
      %1580 = vmatpush.msra.mxu0 0.0
      %1581 = vmatpush.msra.mxu0 0.0
      %1582 = vmatpush.msra.mxu0 0.0
      %1583 = vmatpush.msra.mxu0 0.0
      %1584 = vmatpush.msra.mxu0 0.0
      %1585 = vmatpush.msra.mxu0 0.0
      %1586 = vmatpush.msra.mxu0 0.0
      %1587 = vmatpush.msra.mxu0 0.0
      %1588 = vmatpush.msra.mxu0 0.0
      %1589 = vmatpush.msra.mxu0 0.0
      %1590 = vmatpush.msra.mxu0 %v1577
      %1591 = vmatpush.msra.mxu0 %v1576
      %1592 = vmatpush.msra.mxu0 %v1575
      %1593 = vmatpush.msra.mxu0 %v1574
      %1594 = vmatmul.f32.gmra.mxu0 %v1404
      %v1595 = vpop.f32.mrf.mxu0
      %v1596 = vadd.f32 0.0, %v1595
      %1597 = vdwg.mxu0
      %v1598 = vadd.f32 %v1573, %v1596
      %v1599 = vld [vmem:[%s3 + $0x80] sm:$0xff]
      %v1600 = vld [vmem:[%s3 + $0x88] sm:$0xff]
      %v1601 = vld [vmem:[%s3 + $0x90] sm:$0xff]
      %v1602 = vld [vmem:[%s3 + $0x98] sm:$0xff]
      %1603 = vmatpush.msra.mxu0 0.0
      %1604 = vmatpush.msra.mxu0 0.0
      %1605 = vmatpush.msra.mxu0 0.0
      %1606 = vmatpush.msra.mxu0 0.0
      %1607 = vmatpush.msra.mxu0 0.0
      %1608 = vmatpush.msra.mxu0 0.0
      %1609 = vmatpush.msra.mxu0 0.0
      %1610 = vmatpush.msra.mxu0 0.0
      %1611 = vmatpush.msra.mxu0 0.0
      %1612 = vmatpush.msra.mxu0 0.0
      %1613 = vmatpush.msra.mxu0 0.0
      %1614 = vmatpush.msra.mxu0 0.0
      %1615 = vmatpush.msra.mxu0 %v1602
      %1616 = vmatpush.msra.mxu0 %v1601
      %1617 = vmatpush.msra.mxu0 %v1600
      %1618 = vmatpush.msra.mxu0 %v1599
      %1619 = vmatmul.f32.gmra.mxu0 %v1432
      %v1620 = vpop.f32.mrf.mxu0
      %v1621 = vadd.f32 0.0, %v1620
      %1622 = vdwg.mxu0
      %v1623 = vadd.f32 %v1598, %v1621
      %v1624 = vld [vmem:[%s3 + $0xa0] sm:$0xff]
      %v1625 = vld [vmem:[%s3 + $0xa8] sm:$0xff]
      %v1626 = vld [vmem:[%s3 + $0xb0] sm:$0xff]
      %v1627 = vld [vmem:[%s3 + $0xb8] sm:$0xff]
      %1628 = vmatpush.msra.mxu0 0.0
      %1629 = vmatpush.msra.mxu0 0.0
      %1630 = vmatpush.msra.mxu0 0.0
      %1631 = vmatpush.msra.mxu0 0.0
      %1632 = vmatpush.msra.mxu0 0.0
      %1633 = vmatpush.msra.mxu0 0.0
      %1634 = vmatpush.msra.mxu0 0.0
      %1635 = vmatpush.msra.mxu0 0.0
      %1636 = vmatpush.msra.mxu0 0.0
      %1637 = vmatpush.msra.mxu0 0.0
      %1638 = vmatpush.msra.mxu0 0.0
      %1639 = vmatpush.msra.mxu0 0.0
      %1640 = vmatpush.msra.mxu0 %v1627
      %1641 = vmatpush.msra.mxu0 %v1626
      %1642 = vmatpush.msra.mxu0 %v1625
      %1643 = vmatpush.msra.mxu0 %v1624
      %1644 = vmatmul.f32.gmra.mxu0 %v1460
      %v1645 = vpop.f32.mrf.mxu0
      %v1646 = vadd.f32 0.0, %v1645
      %1647 = vdwg.mxu0
      %v1648 = vadd.f32 %v1623, %v1646
      %v1649 = vld [vmem:[%s3 + $0xc0] sm:$0xff]
      %v1650 = vld [vmem:[%s3 + $0xc8] sm:$0xff]
      %v1651 = vld [vmem:[%s3 + $0xd0] sm:$0xff]
      %v1652 = vld [vmem:[%s3 + $0xd8] sm:$0xff]
      %v1654 = vsel %vm980, %v772, 0
      %1656 = vmatpush.msra.mxu0 0.0
      %1657 = vmatpush.msra.mxu0 0.0
      %1658 = vmatpush.msra.mxu0 0.0
      %1659 = vmatpush.msra.mxu0 0.0
      %1660 = vmatpush.msra.mxu0 0.0
      %1661 = vmatpush.msra.mxu0 0.0
      %1662 = vmatpush.msra.mxu0 0.0
      %1663 = vmatpush.msra.mxu0 0.0
      %1664 = vmatpush.msra.mxu0 0.0
      %1665 = vmatpush.msra.mxu0 0.0
      %1666 = vmatpush.msra.mxu0 0.0
      %1667 = vmatpush.msra.mxu0 0.0
      %1668 = vmatpush.msra.mxu0 %v1652
      %1669 = vmatpush.msra.mxu0 %v1651
      %1670 = vmatpush.msra.mxu0 %v1650
      %1671 = vmatpush.msra.mxu0 %v1649
      %1672 = vmatmul.f32.gmra.mxu0 %v1654
      %v1673 = vpop.f32.mrf.mxu0
      %v1674 = vadd.f32 0.0, %v1673
      %1675 = vdwg.mxu0
      %v1676 = vadd.f32 %v1648, %v1674
      %v1677 = vld [vmem:[%s3 + $0xe0] sm:$0xff]
      %v1678 = vld [vmem:[%s3 + $0xe8] sm:$0xff]
      %v1679 = vld [vmem:[%s3 + $0xf0] sm:$0xff]
      %v1680 = vld [vmem:[%s3 + $0xf8] sm:$0xff]
      %v1681 = vrot.slane %v772, 1
      %v1682 = vsel %vm980, %v1681, 0
      %1684 = vmatpush.msra.mxu0 0.0
      %1685 = vmatpush.msra.mxu0 0.0
      %1686 = vmatpush.msra.mxu0 0.0
      %1687 = vmatpush.msra.mxu0 0.0
      %1688 = vmatpush.msra.mxu0 0.0
      %1689 = vmatpush.msra.mxu0 0.0
      %1690 = vmatpush.msra.mxu0 0.0
      %1691 = vmatpush.msra.mxu0 0.0
      %1692 = vmatpush.msra.mxu0 0.0
      %1693 = vmatpush.msra.mxu0 0.0
      %1694 = vmatpush.msra.mxu0 0.0
      %1695 = vmatpush.msra.mxu0 0.0
      %1696 = vmatpush.msra.mxu0 %v1680
      %1697 = vmatpush.msra.mxu0 %v1679
      %1698 = vmatpush.msra.mxu0 %v1678
      %1699 = vmatpush.msra.mxu0 %v1677
      %1700 = vmatmul.f32.gmra.mxu0 %v1682
      %v1701 = vpop.f32.mrf.mxu0
      %v1702 = vadd.f32 0.0, %v1701
      %1703 = vdwg.mxu0
      %v1704 = vadd.f32 %v1676, %v1702
      %v1705 = vld [vmem:[%s3 + $0x100] sm:$0xff]
      %v1706 = vld [vmem:[%s3 + $0x108] sm:$0xff]
      %v1707 = vld [vmem:[%s3 + $0x110] sm:$0xff]
      %v1708 = vld [vmem:[%s3 + $0x118] sm:$0xff]
      %v1709 = vrot.slane %v772, 2
      %v1710 = vsel %vm980, %v1709, 0
      %1712 = vmatpush.msra.mxu0 0.0
      %1713 = vmatpush.msra.mxu0 0.0
      %1714 = vmatpush.msra.mxu0 0.0
      %1715 = vmatpush.msra.mxu0 0.0
      %1716 = vmatpush.msra.mxu0 0.0
      %1717 = vmatpush.msra.mxu0 0.0
      %1718 = vmatpush.msra.mxu0 0.0
      %1719 = vmatpush.msra.mxu0 0.0
      %1720 = vmatpush.msra.mxu0 0.0
      %1721 = vmatpush.msra.mxu0 0.0
      %1722 = vmatpush.msra.mxu0 0.0
      %1723 = vmatpush.msra.mxu0 0.0
      %1724 = vmatpush.msra.mxu0 %v1708
      %1725 = vmatpush.msra.mxu0 %v1707
      %1726 = vmatpush.msra.mxu0 %v1706
      %1727 = vmatpush.msra.mxu0 %v1705
      %1728 = vmatmul.f32.gmra.mxu0 %v1710
      %v1729 = vpop.f32.mrf.mxu0
      %v1730 = vadd.f32 0.0, %v1729
      %1731 = vdwg.mxu0
      %v1732 = vadd.f32 %v1704, %v1730
      %v1733 = vmax.f32 %v1732, 0.0
      %1735 = vrot.lane.b32.xlu0 %v1733, 112
      %v1736 = vpop.permute.xlu0 %1735
      %v1738 = vmax.f32 %v1733, %v1736
      %1740 = vrot.lane.b32.xlu0 %v1738, 96
      %v1741 = vpop.permute.xlu0 %1740
      %v1743 = vmax.f32 %v1738, %v1741
      %1744 = vst.msk [vmem:[%s224 + $0xa] sm:$0x1f] %vm1243, %v1743
      %v1745 = vld [vmem:[%s4] sm:$0x1]
      %v1746 = vld [vmem:[%s3] sm:$0xff]
      %v1747 = vld [vmem:[%s3 + $0x8] sm:$0xff]
      %v1748 = vld [vmem:[%s3 + $0x10] sm:$0xff]
      %v1749 = vld [vmem:[%s3 + $0x18] sm:$0xff]
      %1750 = vmatpush.msra.mxu0 0.0
      %1751 = vmatpush.msra.mxu0 0.0
      %1752 = vmatpush.msra.mxu0 0.0
      %1753 = vmatpush.msra.mxu0 0.0
      %1754 = vmatpush.msra.mxu0 0.0
      %1755 = vmatpush.msra.mxu0 0.0
      %1756 = vmatpush.msra.mxu0 0.0
      %1757 = vmatpush.msra.mxu0 0.0
      %1758 = vmatpush.msra.mxu0 0.0
      %1759 = vmatpush.msra.mxu0 0.0
      %1760 = vmatpush.msra.mxu0 0.0
      %1761 = vmatpush.msra.mxu0 0.0
      %1762 = vmatpush.msra.mxu0 %v1749
      %1763 = vmatpush.msra.mxu0 %v1748
      %1764 = vmatpush.msra.mxu0 %v1747
      %1765 = vmatpush.msra.mxu0 %v1746
      %1766 = vmatmul.f32.gmra.mxu0 %v1404
      %v1767 = vpop.f32.mrf.mxu0
      %v1768 = vadd.f32 0.0, %v1767
      %1769 = vdwg.mxu0
      %v1771 = vperm.slane %v1745, 0
      %v1773 = vadd.f32 %v1771, %v1768
      %v1774 = vld [vmem:[%s3 + $0x20] sm:$0xff]
      %v1775 = vld [vmem:[%s3 + $0x28] sm:$0xff]
      %v1776 = vld [vmem:[%s3 + $0x30] sm:$0xff]
      %v1777 = vld [vmem:[%s3 + $0x38] sm:$0xff]
      %1778 = vmatpush.msra.mxu0 0.0
      %1779 = vmatpush.msra.mxu0 0.0
      %1780 = vmatpush.msra.mxu0 0.0
      %1781 = vmatpush.msra.mxu0 0.0
      %1782 = vmatpush.msra.mxu0 0.0
      %1783 = vmatpush.msra.mxu0 0.0
      %1784 = vmatpush.msra.mxu0 0.0
      %1785 = vmatpush.msra.mxu0 0.0
      %1786 = vmatpush.msra.mxu0 0.0
      %1787 = vmatpush.msra.mxu0 0.0
      %1788 = vmatpush.msra.mxu0 0.0
      %1789 = vmatpush.msra.mxu0 0.0
      %1790 = vmatpush.msra.mxu0 %v1777
      %1791 = vmatpush.msra.mxu0 %v1776
      %1792 = vmatpush.msra.mxu0 %v1775
      %1793 = vmatpush.msra.mxu0 %v1774
      %1794 = vmatmul.f32.gmra.mxu0 %v1432
      %v1795 = vpop.f32.mrf.mxu0
      %v1796 = vadd.f32 0.0, %v1795
      %1797 = vdwg.mxu0
      %v1798 = vadd.f32 %v1773, %v1796
      %v1799 = vld [vmem:[%s3 + $0x40] sm:$0xff]
      %v1800 = vld [vmem:[%s3 + $0x48] sm:$0xff]
      %v1801 = vld [vmem:[%s3 + $0x50] sm:$0xff]
      %v1802 = vld [vmem:[%s3 + $0x58] sm:$0xff]
      %1803 = vmatpush.msra.mxu0 0.0
      %1804 = vmatpush.msra.mxu0 0.0
      %1805 = vmatpush.msra.mxu0 0.0
      %1806 = vmatpush.msra.mxu0 0.0
      %1807 = vmatpush.msra.mxu0 0.0
      %1808 = vmatpush.msra.mxu0 0.0
      %1809 = vmatpush.msra.mxu0 0.0
      %1810 = vmatpush.msra.mxu0 0.0
      %1811 = vmatpush.msra.mxu0 0.0
      %1812 = vmatpush.msra.mxu0 0.0
      %1813 = vmatpush.msra.mxu0 0.0
      %1814 = vmatpush.msra.mxu0 0.0
      %1815 = vmatpush.msra.mxu0 %v1802
      %1816 = vmatpush.msra.mxu0 %v1801
      %1817 = vmatpush.msra.mxu0 %v1800
      %1818 = vmatpush.msra.mxu0 %v1799
      %1819 = vmatmul.f32.gmra.mxu0 %v1460
      %v1820 = vpop.f32.mrf.mxu0
      %v1821 = vadd.f32 0.0, %v1820
      %1822 = vdwg.mxu0
      %v1823 = vadd.f32 %v1798, %v1821
      %v1824 = vld [vmem:[%s3 + $0x60] sm:$0xff]
      %v1825 = vld [vmem:[%s3 + $0x68] sm:$0xff]
      %v1826 = vld [vmem:[%s3 + $0x70] sm:$0xff]
      %v1827 = vld [vmem:[%s3 + $0x78] sm:$0xff]
      %1828 = vmatpush.msra.mxu0 0.0
      %1829 = vmatpush.msra.mxu0 0.0
      %1830 = vmatpush.msra.mxu0 0.0
      %1831 = vmatpush.msra.mxu0 0.0
      %1832 = vmatpush.msra.mxu0 0.0
      %1833 = vmatpush.msra.mxu0 0.0
      %1834 = vmatpush.msra.mxu0 0.0
      %1835 = vmatpush.msra.mxu0 0.0
      %1836 = vmatpush.msra.mxu0 0.0
      %1837 = vmatpush.msra.mxu0 0.0
      %1838 = vmatpush.msra.mxu0 0.0
      %1839 = vmatpush.msra.mxu0 0.0
      %1840 = vmatpush.msra.mxu0 %v1827
      %1841 = vmatpush.msra.mxu0 %v1826
      %1842 = vmatpush.msra.mxu0 %v1825
      %1843 = vmatpush.msra.mxu0 %v1824
      %1844 = vmatmul.f32.gmra.mxu0 %v1654
      %v1845 = vpop.f32.mrf.mxu0
      %v1846 = vadd.f32 0.0, %v1845
      %1847 = vdwg.mxu0
      %v1848 = vadd.f32 %v1823, %v1846
      %v1849 = vld [vmem:[%s3 + $0x80] sm:$0xff]
      %v1850 = vld [vmem:[%s3 + $0x88] sm:$0xff]
      %v1851 = vld [vmem:[%s3 + $0x90] sm:$0xff]
      %v1852 = vld [vmem:[%s3 + $0x98] sm:$0xff]
      %1853 = vmatpush.msra.mxu0 0.0
      %1854 = vmatpush.msra.mxu0 0.0
      %1855 = vmatpush.msra.mxu0 0.0
      %1856 = vmatpush.msra.mxu0 0.0
      %1857 = vmatpush.msra.mxu0 0.0
      %1858 = vmatpush.msra.mxu0 0.0
      %1859 = vmatpush.msra.mxu0 0.0
      %1860 = vmatpush.msra.mxu0 0.0
      %1861 = vmatpush.msra.mxu0 0.0
      %1862 = vmatpush.msra.mxu0 0.0
      %1863 = vmatpush.msra.mxu0 0.0
      %1864 = vmatpush.msra.mxu0 0.0
      %1865 = vmatpush.msra.mxu0 %v1852
      %1866 = vmatpush.msra.mxu0 %v1851
      %1867 = vmatpush.msra.mxu0 %v1850
      %1868 = vmatpush.msra.mxu0 %v1849
      %1869 = vmatmul.f32.gmra.mxu0 %v1682
      %v1870 = vpop.f32.mrf.mxu0
      %v1871 = vadd.f32 0.0, %v1870
      %1872 = vdwg.mxu0
      %v1873 = vadd.f32 %v1848, %v1871
      %v1874 = vld [vmem:[%s3 + $0xa0] sm:$0xff]
      %v1875 = vld [vmem:[%s3 + $0xa8] sm:$0xff]
      %v1876 = vld [vmem:[%s3 + $0xb0] sm:$0xff]
      %v1877 = vld [vmem:[%s3 + $0xb8] sm:$0xff]
      %1878 = vmatpush.msra.mxu0 0.0
      %1879 = vmatpush.msra.mxu0 0.0
      %1880 = vmatpush.msra.mxu0 0.0
      %1881 = vmatpush.msra.mxu0 0.0
      %1882 = vmatpush.msra.mxu0 0.0
      %1883 = vmatpush.msra.mxu0 0.0
      %1884 = vmatpush.msra.mxu0 0.0
      %1885 = vmatpush.msra.mxu0 0.0
      %1886 = vmatpush.msra.mxu0 0.0
      %1887 = vmatpush.msra.mxu0 0.0
      %1888 = vmatpush.msra.mxu0 0.0
      %1889 = vmatpush.msra.mxu0 0.0
      %1890 = vmatpush.msra.mxu0 %v1877
      %1891 = vmatpush.msra.mxu0 %v1876
      %1892 = vmatpush.msra.mxu0 %v1875
      %1893 = vmatpush.msra.mxu0 %v1874
      %1894 = vmatmul.f32.gmra.mxu0 %v1710
      %v1895 = vpop.f32.mrf.mxu0
      %v1896 = vadd.f32 0.0, %v1895
      %1897 = vdwg.mxu0
      %v1898 = vadd.f32 %v1873, %v1896
      %v1899 = vld [vmem:[%s3 + $0xc0] sm:$0xff]
      %v1900 = vld [vmem:[%s3 + $0xc8] sm:$0xff]
      %v1901 = vld [vmem:[%s3 + $0xd0] sm:$0xff]
      %v1902 = vld [vmem:[%s3 + $0xd8] sm:$0xff]
      %v1904 = vsel %vm980, %v873, 0
      %1906 = vmatpush.msra.mxu0 0.0
      %1907 = vmatpush.msra.mxu0 0.0
      %1908 = vmatpush.msra.mxu0 0.0
      %1909 = vmatpush.msra.mxu0 0.0
      %1910 = vmatpush.msra.mxu0 0.0
      %1911 = vmatpush.msra.mxu0 0.0
      %1912 = vmatpush.msra.mxu0 0.0
      %1913 = vmatpush.msra.mxu0 0.0
      %1914 = vmatpush.msra.mxu0 0.0
      %1915 = vmatpush.msra.mxu0 0.0
      %1916 = vmatpush.msra.mxu0 0.0
      %1917 = vmatpush.msra.mxu0 0.0
      %1918 = vmatpush.msra.mxu0 %v1902
      %1919 = vmatpush.msra.mxu0 %v1901
      %1920 = vmatpush.msra.mxu0 %v1900
      %1921 = vmatpush.msra.mxu0 %v1899
      %1922 = vmatmul.f32.gmra.mxu0 %v1904
      %v1923 = vpop.f32.mrf.mxu0
      %v1924 = vadd.f32 0.0, %v1923
      %1925 = vdwg.mxu0
      %v1926 = vadd.f32 %v1898, %v1924
      %v1927 = vld [vmem:[%s3 + $0xe0] sm:$0xff]
      %v1928 = vld [vmem:[%s3 + $0xe8] sm:$0xff]
      %v1929 = vld [vmem:[%s3 + $0xf0] sm:$0xff]
      %v1930 = vld [vmem:[%s3 + $0xf8] sm:$0xff]
      %v1931 = vrot.slane %v873, 1
      %v1932 = vsel %vm980, %v1931, 0
      %1934 = vmatpush.msra.mxu0 0.0
      %1935 = vmatpush.msra.mxu0 0.0
      %1936 = vmatpush.msra.mxu0 0.0
      %1937 = vmatpush.msra.mxu0 0.0
      %1938 = vmatpush.msra.mxu0 0.0
      %1939 = vmatpush.msra.mxu0 0.0
      %1940 = vmatpush.msra.mxu0 0.0
      %1941 = vmatpush.msra.mxu0 0.0
      %1942 = vmatpush.msra.mxu0 0.0
      %1943 = vmatpush.msra.mxu0 0.0
      %1944 = vmatpush.msra.mxu0 0.0
      %1945 = vmatpush.msra.mxu0 0.0
      %1946 = vmatpush.msra.mxu0 %v1930
      %1947 = vmatpush.msra.mxu0 %v1929
      %1948 = vmatpush.msra.mxu0 %v1928
      %1949 = vmatpush.msra.mxu0 %v1927
      %1950 = vmatmul.f32.gmra.mxu0 %v1932
      %v1951 = vpop.f32.mrf.mxu0
      %v1952 = vadd.f32 0.0, %v1951
      %1953 = vdwg.mxu0
      %v1954 = vadd.f32 %v1926, %v1952
      %v1955 = vld [vmem:[%s3 + $0x100] sm:$0xff]
      %v1956 = vld [vmem:[%s3 + $0x108] sm:$0xff]
      %v1957 = vld [vmem:[%s3 + $0x110] sm:$0xff]
      %v1958 = vld [vmem:[%s3 + $0x118] sm:$0xff]
      %v1959 = vrot.slane %v873, 2
      %v1960 = vsel %vm980, %v1959, 0
      %1962 = vmatpush.msra.mxu0 0.0
      %1963 = vmatpush.msra.mxu0 0.0
      %1964 = vmatpush.msra.mxu0 0.0
      %1965 = vmatpush.msra.mxu0 0.0
      %1966 = vmatpush.msra.mxu0 0.0
      %1967 = vmatpush.msra.mxu0 0.0
      %1968 = vmatpush.msra.mxu0 0.0
      %1969 = vmatpush.msra.mxu0 0.0
      %1970 = vmatpush.msra.mxu0 0.0
      %1971 = vmatpush.msra.mxu0 0.0
      %1972 = vmatpush.msra.mxu0 0.0
      %1973 = vmatpush.msra.mxu0 0.0
      %1974 = vmatpush.msra.mxu0 %v1958
      %1975 = vmatpush.msra.mxu0 %v1957
      %1976 = vmatpush.msra.mxu0 %v1956
      %1977 = vmatpush.msra.mxu0 %v1955
      %1978 = vmatmul.f32.gmra.mxu0 %v1960
      %v1979 = vpop.f32.mrf.mxu0
      %v1980 = vadd.f32 0.0, %v1979
      %1981 = vdwg.mxu0
      %v1982 = vadd.f32 %v1954, %v1980
      %v1983 = vmax.f32 %v1982, 0.0
      %1985 = vrot.lane.b32.xlu0 %v1983, 112
      %v1986 = vpop.permute.xlu0 %1985
      %v1988 = vmax.f32 %v1983, %v1986
      %1990 = vrot.lane.b32.xlu0 %v1988, 96
      %v1991 = vpop.permute.xlu0 %1990
      %v1993 = vmax.f32 %v1988, %v1991
      %1994 = vst.msk [vmem:[%s224 + $0xf] sm:$0x1f] %vm1243, %v1993
      %v1995 = vld [vmem:[%s4] sm:$0x1]
      %v1996 = vld [vmem:[%s3] sm:$0xff]
      %v1997 = vld [vmem:[%s3 + $0x8] sm:$0xff]
      %v1998 = vld [vmem:[%s3 + $0x10] sm:$0xff]
      %v1999 = vld [vmem:[%s3 + $0x18] sm:$0xff]
      %2000 = vmatpush.msra.mxu0 0.0
      %2001 = vmatpush.msra.mxu0 0.0
      %2002 = vmatpush.msra.mxu0 0.0
      %2003 = vmatpush.msra.mxu0 0.0
      %2004 = vmatpush.msra.mxu0 0.0
      %2005 = vmatpush.msra.mxu0 0.0
      %2006 = vmatpush.msra.mxu0 0.0
      %2007 = vmatpush.msra.mxu0 0.0
      %2008 = vmatpush.msra.mxu0 0.0
      %2009 = vmatpush.msra.mxu0 0.0
      %2010 = vmatpush.msra.mxu0 0.0
      %2011 = vmatpush.msra.mxu0 0.0
      %2012 = vmatpush.msra.mxu0 %v1999
      %2013 = vmatpush.msra.mxu0 %v1998
      %2014 = vmatpush.msra.mxu0 %v1997
      %2015 = vmatpush.msra.mxu0 %v1996
      %2016 = vmatmul.f32.gmra.mxu0 %v1654
      %v2017 = vpop.f32.mrf.mxu0
      %v2018 = vadd.f32 0.0, %v2017
      %2019 = vdwg.mxu0
      %v2021 = vperm.slane %v1995, 0
      %v2023 = vadd.f32 %v2021, %v2018
      %v2024 = vld [vmem:[%s3 + $0x20] sm:$0xff]
      %v2025 = vld [vmem:[%s3 + $0x28] sm:$0xff]
      %v2026 = vld [vmem:[%s3 + $0x30] sm:$0xff]
      %v2027 = vld [vmem:[%s3 + $0x38] sm:$0xff]
      %2028 = vmatpush.msra.mxu0 0.0
      %2029 = vmatpush.msra.mxu0 0.0
      %2030 = vmatpush.msra.mxu0 0.0
      %2031 = vmatpush.msra.mxu0 0.0
      %2032 = vmatpush.msra.mxu0 0.0
      %2033 = vmatpush.msra.mxu0 0.0
      %2034 = vmatpush.msra.mxu0 0.0
      %2035 = vmatpush.msra.mxu0 0.0
      %2036 = vmatpush.msra.mxu0 0.0
      %2037 = vmatpush.msra.mxu0 0.0
      %2038 = vmatpush.msra.mxu0 0.0
      %2039 = vmatpush.msra.mxu0 0.0
      %2040 = vmatpush.msra.mxu0 %v2027
      %2041 = vmatpush.msra.mxu0 %v2026
      %2042 = vmatpush.msra.mxu0 %v2025
      %2043 = vmatpush.msra.mxu0 %v2024
      %2044 = vmatmul.f32.gmra.mxu0 %v1682
      %v2045 = vpop.f32.mrf.mxu0
      %v2046 = vadd.f32 0.0, %v2045
      %2047 = vdwg.mxu0
      %v2048 = vadd.f32 %v2023, %v2046
      %v2049 = vld [vmem:[%s3 + $0x40] sm:$0xff]
      %v2050 = vld [vmem:[%s3 + $0x48] sm:$0xff]
      %v2051 = vld [vmem:[%s3 + $0x50] sm:$0xff]
      %v2052 = vld [vmem:[%s3 + $0x58] sm:$0xff]
      %2053 = vmatpush.msra.mxu0 0.0
      %2054 = vmatpush.msra.mxu0 0.0
      %2055 = vmatpush.msra.mxu0 0.0
      %2056 = vmatpush.msra.mxu0 0.0
      %2057 = vmatpush.msra.mxu0 0.0
      %2058 = vmatpush.msra.mxu0 0.0
      %2059 = vmatpush.msra.mxu0 0.0
      %2060 = vmatpush.msra.mxu0 0.0
      %2061 = vmatpush.msra.mxu0 0.0
      %2062 = vmatpush.msra.mxu0 0.0
      %2063 = vmatpush.msra.mxu0 0.0
      %2064 = vmatpush.msra.mxu0 0.0
      %2065 = vmatpush.msra.mxu0 %v2052
      %2066 = vmatpush.msra.mxu0 %v2051
      %2067 = vmatpush.msra.mxu0 %v2050
      %2068 = vmatpush.msra.mxu0 %v2049
      %2069 = vmatmul.f32.gmra.mxu0 %v1710
      %v2070 = vpop.f32.mrf.mxu0
      %v2071 = vadd.f32 0.0, %v2070
      %2072 = vdwg.mxu0
      %v2073 = vadd.f32 %v2048, %v2071
      %v2074 = vld [vmem:[%s3 + $0x60] sm:$0xff]
      %v2075 = vld [vmem:[%s3 + $0x68] sm:$0xff]
      %v2076 = vld [vmem:[%s3 + $0x70] sm:$0xff]
      %v2077 = vld [vmem:[%s3 + $0x78] sm:$0xff]
      %2078 = vmatpush.msra.mxu0 0.0
      %2079 = vmatpush.msra.mxu0 0.0
      %2080 = vmatpush.msra.mxu0 0.0
      %2081 = vmatpush.msra.mxu0 0.0
      %2082 = vmatpush.msra.mxu0 0.0
      %2083 = vmatpush.msra.mxu0 0.0
      %2084 = vmatpush.msra.mxu0 0.0
      %2085 = vmatpush.msra.mxu0 0.0
      %2086 = vmatpush.msra.mxu0 0.0
      %2087 = vmatpush.msra.mxu0 0.0
      %2088 = vmatpush.msra.mxu0 0.0
      %2089 = vmatpush.msra.mxu0 0.0
      %2090 = vmatpush.msra.mxu0 %v2077
      %2091 = vmatpush.msra.mxu0 %v2076
      %2092 = vmatpush.msra.mxu0 %v2075
      %2093 = vmatpush.msra.mxu0 %v2074
      %2094 = vmatmul.f32.gmra.mxu0 %v1904
      %v2095 = vpop.f32.mrf.mxu0
      %v2096 = vadd.f32 0.0, %v2095
      %2097 = vdwg.mxu0
      %v2098 = vadd.f32 %v2073, %v2096
      %v2099 = vld [vmem:[%s3 + $0x80] sm:$0xff]
      %v2100 = vld [vmem:[%s3 + $0x88] sm:$0xff]
      %v2101 = vld [vmem:[%s3 + $0x90] sm:$0xff]
      %v2102 = vld [vmem:[%s3 + $0x98] sm:$0xff]
      %2103 = vmatpush.msra.mxu0 0.0
      %2104 = vmatpush.msra.mxu0 0.0
      %2105 = vmatpush.msra.mxu0 0.0
      %2106 = vmatpush.msra.mxu0 0.0
      %2107 = vmatpush.msra.mxu0 0.0
      %2108 = vmatpush.msra.mxu0 0.0
      %2109 = vmatpush.msra.mxu0 0.0
      %2110 = vmatpush.msra.mxu0 0.0
      %2111 = vmatpush.msra.mxu0 0.0
      %2112 = vmatpush.msra.mxu0 0.0
      %2113 = vmatpush.msra.mxu0 0.0
      %2114 = vmatpush.msra.mxu0 0.0
      %2115 = vmatpush.msra.mxu0 %v2102
      %2116 = vmatpush.msra.mxu0 %v2101
      %2117 = vmatpush.msra.mxu0 %v2100
      %2118 = vmatpush.msra.mxu0 %v2099
      %2119 = vmatmul.f32.gmra.mxu0 %v1932
      %v2120 = vpop.f32.mrf.mxu0
      %v2121 = vadd.f32 0.0, %v2120
      %2122 = vdwg.mxu0
      %v2123 = vadd.f32 %v2098, %v2121
      %v2124 = vld [vmem:[%s3 + $0xa0] sm:$0xff]
      %v2125 = vld [vmem:[%s3 + $0xa8] sm:$0xff]
      %v2126 = vld [vmem:[%s3 + $0xb0] sm:$0xff]
      %v2127 = vld [vmem:[%s3 + $0xb8] sm:$0xff]
      %2128 = vmatpush.msra.mxu0 0.0
      %2129 = vmatpush.msra.mxu0 0.0
      %2130 = vmatpush.msra.mxu0 0.0
      %2131 = vmatpush.msra.mxu0 0.0
      %2132 = vmatpush.msra.mxu0 0.0
      %2133 = vmatpush.msra.mxu0 0.0
      %2134 = vmatpush.msra.mxu0 0.0
      %2135 = vmatpush.msra.mxu0 0.0
      %2136 = vmatpush.msra.mxu0 0.0
      %2137 = vmatpush.msra.mxu0 0.0
      %2138 = vmatpush.msra.mxu0 0.0
      %2139 = vmatpush.msra.mxu0 0.0
      %2140 = vmatpush.msra.mxu0 %v2127
      %2141 = vmatpush.msra.mxu0 %v2126
      %2142 = vmatpush.msra.mxu0 %v2125
      %2143 = vmatpush.msra.mxu0 %v2124
      %2144 = vmatmul.f32.gmra.mxu0 %v1960
      %v2145 = vpop.f32.mrf.mxu0
      %v2146 = vadd.f32 0.0, %v2145
      %2147 = vdwg.mxu0
      %v2148 = vadd.f32 %v2123, %v2146
      %v2149 = vld [vmem:[%s3 + $0xc0] sm:$0xff]
      %v2150 = vld [vmem:[%s3 + $0xc8] sm:$0xff]
      %v2151 = vld [vmem:[%s3 + $0xd0] sm:$0xff]
      %v2152 = vld [vmem:[%s3 + $0xd8] sm:$0xff]
      %v2154 = vsel %vm980, %v974, 0
      %2156 = vmatpush.msra.mxu0 0.0
      %2157 = vmatpush.msra.mxu0 0.0
      %2158 = vmatpush.msra.mxu0 0.0
      %2159 = vmatpush.msra.mxu0 0.0
      %2160 = vmatpush.msra.mxu0 0.0
      %2161 = vmatpush.msra.mxu0 0.0
      %2162 = vmatpush.msra.mxu0 0.0
      %2163 = vmatpush.msra.mxu0 0.0
      %2164 = vmatpush.msra.mxu0 0.0
      %2165 = vmatpush.msra.mxu0 0.0
      %2166 = vmatpush.msra.mxu0 0.0
      %2167 = vmatpush.msra.mxu0 0.0
      %2168 = vmatpush.msra.mxu0 %v2152
      %2169 = vmatpush.msra.mxu0 %v2151
      %2170 = vmatpush.msra.mxu0 %v2150
      %2171 = vmatpush.msra.mxu0 %v2149
      %2172 = vmatmul.f32.gmra.mxu0 %v2154
      %v2173 = vpop.f32.mrf.mxu0
      %v2174 = vadd.f32 0.0, %v2173
      %2175 = vdwg.mxu0
      %v2176 = vadd.f32 %v2148, %v2174
      %v2177 = vld [vmem:[%s3 + $0xe0] sm:$0xff]
      %v2178 = vld [vmem:[%s3 + $0xe8] sm:$0xff]
      %v2179 = vld [vmem:[%s3 + $0xf0] sm:$0xff]
      %v2180 = vld [vmem:[%s3 + $0xf8] sm:$0xff]
      %v2181 = vrot.slane %v974, 1
      %v2182 = vsel %vm980, %v2181, 0
      %2184 = vmatpush.msra.mxu0 0.0
      %2185 = vmatpush.msra.mxu0 0.0
      %2186 = vmatpush.msra.mxu0 0.0
      %2187 = vmatpush.msra.mxu0 0.0
      %2188 = vmatpush.msra.mxu0 0.0
      %2189 = vmatpush.msra.mxu0 0.0
      %2190 = vmatpush.msra.mxu0 0.0
      %2191 = vmatpush.msra.mxu0 0.0
      %2192 = vmatpush.msra.mxu0 0.0
      %2193 = vmatpush.msra.mxu0 0.0
      %2194 = vmatpush.msra.mxu0 0.0
      %2195 = vmatpush.msra.mxu0 0.0
      %2196 = vmatpush.msra.mxu0 %v2180
      %2197 = vmatpush.msra.mxu0 %v2179
      %2198 = vmatpush.msra.mxu0 %v2178
      %2199 = vmatpush.msra.mxu0 %v2177
      %2200 = vmatmul.f32.gmra.mxu0 %v2182
      %v2201 = vpop.f32.mrf.mxu0
      %v2202 = vadd.f32 0.0, %v2201
      %2203 = vdwg.mxu0
      %v2204 = vadd.f32 %v2176, %v2202
      %v2205 = vld [vmem:[%s3 + $0x100] sm:$0xff]
      %v2206 = vld [vmem:[%s3 + $0x108] sm:$0xff]
      %v2207 = vld [vmem:[%s3 + $0x110] sm:$0xff]
      %v2208 = vld [vmem:[%s3 + $0x118] sm:$0xff]
      %v2209 = vrot.slane %v974, 2
      %v2210 = vsel %vm980, %v2209, 0
      %2212 = vmatpush.msra.mxu0 0.0
      %2213 = vmatpush.msra.mxu0 0.0
      %2214 = vmatpush.msra.mxu0 0.0
      %2215 = vmatpush.msra.mxu0 0.0
      %2216 = vmatpush.msra.mxu0 0.0
      %2217 = vmatpush.msra.mxu0 0.0
      %2218 = vmatpush.msra.mxu0 0.0
      %2219 = vmatpush.msra.mxu0 0.0
      %2220 = vmatpush.msra.mxu0 0.0
      %2221 = vmatpush.msra.mxu0 0.0
      %2222 = vmatpush.msra.mxu0 0.0
      %2223 = vmatpush.msra.mxu0 0.0
      %2224 = vmatpush.msra.mxu0 %v2208
      %2225 = vmatpush.msra.mxu0 %v2207
      %2226 = vmatpush.msra.mxu0 %v2206
      %2227 = vmatpush.msra.mxu0 %v2205
      %2228 = vmatmul.f32.gmra.mxu0 %v2210
      %v2229 = vpop.f32.mrf.mxu0
      %v2230 = vadd.f32 0.0, %v2229
      %2231 = vdwg.mxu0
      %v2232 = vadd.f32 %v2204, %v2230
      %v2233 = vmax.f32 %v2232, 0.0
      %2235 = vrot.lane.b32.xlu0 %v2233, 112
      %v2236 = vpop.permute.xlu0 %2235
      %v2238 = vmax.f32 %v2233, %v2236
      %2240 = vrot.lane.b32.xlu0 %v2238, 96
      %v2241 = vpop.permute.xlu0 %2240
      %v2243 = vmax.f32 %v2238, %v2241
      %2244 = vst.msk [vmem:[%s224 + $0x14] sm:$0x1f] %vm1243, %v2243
      %p2245 = scmp.lt.s32.totalorder %s16, 1
      %s2246 = scalar_select %p2245, %s16, 1
      %s2247 = smul.addr %s2246, 4
      %s2248 = smul.addr %s2247, 8
      %s2249 = scalar_lea.vmem %s5, %s2248
      // Predicated region
      $region41: #{cnn_cifar_forward.2} parent=39 // pred_check
        %p2250 = pneg %p144
      $region42: #{cnn_cifar_forward.2} parent=39 // pred_check_branch
        %2252 = sbr.rel (%p2250) target = $region44
      $region43: #{cnn_cifar_forward.2} parent=39 // pred_region
        _
      $region44: #{cnn_cifar_forward.2} parent=39 // pred_fallthru
        _
    $region40: #{cnn_cifar_forward.2} parent=5 // pred_fallthru
      _
    %p2253 = scmp.le.s32.totalorder 2, %s11
    // Predicated region
    $region45: #{cnn_cifar_forward.2} parent=5 // pred_check
      %p2254 = pneg %p2253
    $region46: #{cnn_cifar_forward.2} parent=5 // pred_check_branch
      %2256 = sbr.rel (%p2254) target = $region48
    $region47: #{cnn_cifar_forward.2} parent=5 // pred_region
      %s2257 = ssub.s32 %s11, 2
      // Predicated region
      $region49: #{cnn_cifar_forward.2} parent=47 // pred_check
        %p2258 = pneg %p150
      $region50: #{cnn_cifar_forward.2} parent=47 // pred_check_branch
        %2260 = sbr.rel (%p2258) target = $region52
      $region51: #{cnn_cifar_forward.2} parent=47 // pred_region
        %p2261 = scmp.lt.s32.totalorder %s17, 1
        %s2262 = scalar_select %p2261, %s17, 1
        %s2263 = smul.addr %s2262, 4
        %s2264 = smul.addr %s2263, 8
        %s2265 = scalar_lea.vmem %s5, %s2264
      $region52: #{cnn_cifar_forward.2} parent=47 // pred_fallthru
        _
    $region48: #{cnn_cifar_forward.2} parent=5 // pred_fallthru
      _
  $region6: #{cnn_cifar_forward.2} parent=0 // loop_footer
    %s15 = sadd.s32 1, %s11
  $region7: #{cnn_cifar_forward.2} parent=0 // loop_footer_branch
    %10 = sbr.rel target = $region3
  $region8: #{cnn_cifar_forward.2} parent=0 // loop_exit
    _

</llo_original>
